<compile_context>
chip_gen: v7x
topology: tpu7x:2x2x1
jax: 0.10.0
libtpu: 0.0.40
codegen_flags: <defaults>
</compile_context>

<pallas_src>
import functools
import math

import jax
import jax.numpy as jnp
from jax.experimental import pallas as pl
from jax.experimental.pallas import tpu as pltpu


def _relpos_kernel(q_ref, hemb_ref, wemb_ref, o_ref, *, compute_dtype):
    # q_ref    : (TN, 1, W, D)        q slab for this (N-block, x row)
    # hemb_ref : (1, H_pad, D)        height embeddings for this x row
    # wemb_ref : (W, W, D)            full width embedding table (y, v, d)
    # o_ref    : (TN, 1, W, H_pad*W)  lane-dense output slab, lane index c = u*W + v
    tn, _, w, _ = q_ref.shape
    h_pad = hemb_ref.shape[1]

    q_t = q_ref[:, 0].astype(compute_dtype)      # (TN, W, D)
    he = hemb_ref[0].astype(compute_dtype)       # (H_pad, D)
    we = wemb_ref[...].astype(compute_dtype)     # (W, W, D)

    # height score: contract D against this row's height embeddings.
    hs = jnp.einsum('nyd,ud->nyu', q_t, he,
                    preferred_element_type=jnp.float32)      # (TN, W, H_pad)
    # width score: per-y contraction against the width embeddings.
    ws = jnp.einsum('nyd,yvd->nyv', q_t, we,
                    preferred_element_type=jnp.float32)      # (TN, W, W)

    # Lane-dense combine: out[..., u*W + v] = hs[..., u] + ws[..., v].
    # Single broadcast-add (VPU) + one reshape; no per-u slicing / concatenation.
    out = hs[:, :, :, None] + ws[:, :, None, :]              # (TN, W, H_pad, W) f32
    o_ref[:, 0] = out.reshape(tn, w, h_pad * w).astype(o_ref.dtype)


def _vmem_budget_and_limit():
    """Generation-aware (budget_bytes, vmem_limit_bytes)."""
    vmem_cap = 64 * 1024 * 1024
    try:
        info = pltpu.get_tpu_info()
        vmem_cap = getattr(info, "vmem_capacity_bytes", vmem_cap) or vmem_cap
    except Exception:
        pass
    if vmem_cap >= 100 * 1024 * 1024:
        # v5e / v6e: 128 MiB VMEM -> large blocks amortize per-grid-step overhead.
        return 56 * 1024 * 1024, 96 * 1024 * 1024
    # v7x: 64 MiB per TensorCore -> stay conservative.
    return 22 * 1024 * 1024, 44 * 1024 * 1024


def _padded_u(H, W, max_overhead=0.125):
    """Pad the u axis so the lane axis H_pad*W is a multiple of 128, only when the
    extra bytes written are a small fraction of H*W."""
    HW = H * W
    if HW < 128 or HW % 128 == 0:
        return H
    step = 128 // math.gcd(W, 128)
    H_pad = ((H + step - 1) // step) * step
    if (H_pad * W - HW) / HW <= max_overhead:
        return H_pad
    return H


def _choose_tn(N, H_pad, W, D, HWp, budget_bytes, out_itemsize):
    """Largest TN fitting the VMEM budget; guarantees >= 2 blocks along N (when
    N >= 2) so both TensorCores of a v7x chip get disjoint output slabs."""

    def divisors_desc(n):
        return [d for d in range(n, 0, -1) if n % d == 0]

    def vmem_estimate(tn):
        q_blk = tn * W * D * 4
        he_blk = H_pad * D * 4
        we_blk = W * W * D * 4
        out_blk = tn * W * HWp * out_itemsize
        # f32 broadcast-add working set (hs/ws + combined slab, generous).
        temps = 3 * tn * W * HWp * 4 + tn * W * (H_pad + W) * 4
        # double-buffered pipeline buffers (q, hemb, out) + constant wemb (2 bufs)
        return 2 * (q_blk + he_blk + out_blk) + 2 * we_blk + temps

    cands = divisors_desc(N)
    if N >= 2:
        cands = [d for d in cands if N // d >= 2]
    for tn in cands:
        if vmem_estimate(tn) <= budget_bytes:
            return tn
    return cands[-1] if cands else 1


def rel_pos_emb(q, rel_height_w, rel_width_w, max_pos_size, *,
                out_dtype=None, compute_dtype=jnp.float32):
    """q: (batch, heads, H, W, D). Returns (batch, heads, H, W, H, W).

    out_dtype=jnp.bfloat16 halves the (dominant) output writeback bytes if the
    consumer tolerates it; compute_dtype=jnp.bfloat16 feeds the MXU natively
    (accumulation stays f32).  Defaults keep exact module semantics.
    """
    batch, heads, H, W, D = q.shape
    N = batch * heads
    out_dtype = q.dtype if out_dtype is None else out_dtype
    qf = q.reshape(N, H, W, D)

    # rel_ind[i, j] = (j - i) + max_pos_size - 1  (embedding gather: plain JAX glue)
    idx_h = (jnp.arange(H)[None, :] - jnp.arange(H)[:, None]) + max_pos_size - 1
    idx_w = (jnp.arange(W)[None, :] - jnp.arange(W)[:, None]) + max_pos_size - 1
    hemb = rel_height_w[idx_h]   # (H, H, D)   hemb[x, u, d]
    wemb = rel_width_w[idx_w]    # (W, W, D)   wemb[y, v, d]

    # Optional lane-padding of the u axis (zero rows -> garbage lanes sliced off).
    H_pad = _padded_u(H, W)
    if H_pad != H:
        hemb = jnp.pad(hemb, ((0, 0), (0, H_pad - H), (0, 0)))
    HWp = H_pad * W

    budget, vmem_limit = _vmem_budget_and_limit()
    TN = _choose_tn(N, H_pad, W, D, HWp, budget, jnp.dtype(out_dtype).itemsize)
    grid = (N // TN, H)   # x-row streaming lives in the grid (Tx = 1 per step)

    kernel = functools.partial(_relpos_kernel, compute_dtype=compute_dtype)

    out = pl.pallas_call(
        kernel,
        out_shape=jax.ShapeDtypeStruct((N, H, W, HWp), out_dtype),
        grid_spec=pltpu.PrefetchScalarGridSpec(
            num_scalar_prefetch=0,
            grid=grid,
            in_specs=[
                pl.BlockSpec((TN, 1, W, D), lambda n, x: (n, x, 0, 0)),
                pl.BlockSpec((1, H_pad, D), lambda n, x: (x, 0, 0)),
                pl.BlockSpec((W, W, D), lambda n, x: (0, 0, 0)),
            ],
            out_specs=pl.BlockSpec((TN, 1, W, HWp), lambda n, x: (n, x, 0, 0)),
        ),
        compiler_params=pltpu.CompilerParams(
            dimension_semantics=("parallel", "parallel"),
            vmem_limit_bytes=vmem_limit,
        ),
    )(qf, hemb, wemb)

    # Free reshapes: split N -> (batch, heads) and the lane axis -> (H_pad, W).
    out = out.reshape(batch, heads, H, W, H_pad, W)
    if H_pad != H:
        out = out[..., :H, :]
    return out


def _reference(q, rel_height_w, rel_width_w, max_pos_size):
    batch, heads, H, W, D = q.shape
    idx_h = (jnp.arange(H)[None, :] - jnp.arange(H)[:, None]) + max_pos_size - 1
    idx_w = (jnp.arange(W)[None, :] - jnp.arange(W)[:, None]) + max_pos_size - 1
    hemb = rel_height_w[idx_h]   # (H, H, D)
    wemb = rel_width_w[idx_w]    # (W, W, D)
    hs = jnp.einsum('bhxyd,xud->bhxyu', q, hemb)
    ws = jnp.einsum('bhxyd,yvd->bhxyv', q, wemb)
    return hs[..., :, None] + ws[..., None, :]


if __name__ == "__main__":
    # Small deterministic config.
    batch, heads = 2, 2
    H = W = 8
    dim_head = 32
    max_pos_size = 16

    key = jax.random.PRNGKey(0)
    kq, kh, kw = jax.random.split(key, 3)
    q = jax.random.normal(kq, (batch, heads, H, W, dim_head), dtype=jnp.float32)
    # nn.Embedding default init ~ N(0, 1); synthetic deterministic weights.
    rel_height_w = jax.random.normal(kh, (2 * max_pos_size - 1, dim_head), dtype=jnp.float32)
    rel_width_w = jax.random.normal(kw, (2 * max_pos_size - 1, dim_head), dtype=jnp.float32)

    out = rel_pos_emb(q, rel_height_w, rel_width_w, max_pos_size)
    out = jax.block_until_ready(out)

    ref = _reference(q, rel_height_w, rel_width_w, max_pos_size)
    assert out.shape == (batch, heads, H, W, H, W), out.shape
    assert jnp.allclose(out, ref, atol=1e-4, rtol=1e-4), "mismatch vs reference"

    print("KERNEL_OK")
</pallas_src>

<mosaic_0001>
module attributes {stable_mosaic.version = 11 : i64} {
  func.func @_relpos_kernel(%arg0: i32, %arg1: i32, %arg2: memref<2x1x8x32xf32, #tpu.memory_space<vmem>>, %arg3: memref<1x8x32xf32, #tpu.memory_space<vmem>>, %arg4: memref<8x8x32xf32, #tpu.memory_space<vmem>>, %arg5: memref<2x1x8x64xf32, #tpu.memory_space<vmem>>) attributes {dimension_semantics = [#tpu.dimension_semantics<parallel>, #tpu.dimension_semantics<parallel>], iteration_bounds = array<i64: 2, 8>, scalar_prefetch = 0 : i64, scratch_operands = 0 : i64, tpu.core_type = #tpu.core_type<tc>, window_params = [{transform_indices = @transform_0, window_bounds = array<i64: 2, 1, 8, 32>}, {transform_indices = @transform_1, window_bounds = array<i64: 1, 8, 32>}, {pipeline_mode = #tpu.pipeline_mode<synchronous>, transform_indices = @transform_2, window_bounds = array<i64: 8, 8, 32>}, {transform_indices = @transform_3, window_bounds = array<i64: 2, 1, 8, 64>}]} {
    %c0 = arith.constant 0 : index
    %c0_0 = arith.constant 0 : index
    %c0_1 = arith.constant 0 : index
    %c0_2 = arith.constant 0 : index
    %0 = vector.load %arg2[%c0, %c0_0, %c0_1, %c0_2] : memref<2x1x8x32xf32, #tpu.memory_space<vmem>>, vector<2x1x8x32xf32>
    %1 = vector.shape_cast %0 : vector<2x1x8x32xf32> to vector<2x8x32xf32>
    %c0_3 = arith.constant 0 : index
    %c0_4 = arith.constant 0 : index
    %c0_5 = arith.constant 0 : index
    %2 = vector.load %arg3[%c0_3, %c0_4, %c0_5] : memref<1x8x32xf32, #tpu.memory_space<vmem>>, vector<1x8x32xf32>
    %3 = vector.shape_cast %2 : vector<1x8x32xf32> to vector<8x32xf32>
    %c0_6 = arith.constant 0 : index
    %c0_7 = arith.constant 0 : index
    %c0_8 = arith.constant 0 : index
    %4 = vector.load %arg4[%c0_6, %c0_7, %c0_8] : memref<8x8x32xf32, #tpu.memory_space<vmem>>, vector<8x8x32xf32>
    "tpu.trace_start"() <{level = 10 : i32, message = "nyd,ud->nyu"}> : () -> ()
    %cst = arith.constant dense<0.000000e+00> : vector<2x8x8xf32>
    %5 = tpu.matmul %1, %3, %cst {dimension_numbers = #tpu.dot_dimension_numbers<[2], [1], [0, 1], [0], [0, 0, 0, 1, 1, 0], [], []>} : vector<2x8x32xf32>, vector<8x32xf32>, vector<2x8x8xf32> -> vector<2x8x8xf32>
    "tpu.trace_stop"() : () -> ()
    "tpu.trace_start"() <{level = 10 : i32, message = "nyd,yvd->nyv"}> : () -> ()
    %cst_9 = arith.constant dense<0.000000e+00> : vector<8x8x2xf32>
    %6 = tpu.matmul %4, %1, %cst_9 {dimension_numbers = #tpu.dot_dimension_numbers<[2], [2], [1], [0], [0, 0, 0, 1, 1, 0], [0], [1]>} : vector<8x8x32xf32>, vector<2x8x32xf32>, vector<8x8x2xf32> -> vector<8x8x2xf32>
    %7 = tpu.transpose %6, [2, 0, 1] : vector<8x8x2xf32> -> vector<2x8x8xf32>
    "tpu.trace_stop"() : () -> ()
    %8 = vector.shape_cast %5 : vector<2x8x8xf32> to vector<2x8x8x1xf32>
    %9 = vector.shape_cast %7 : vector<2x8x8xf32> to vector<2x8x1x8xf32>
    %10 = vector.broadcast %8 : vector<2x8x8x1xf32> to vector<2x8x8x8xf32>
    %11 = vector.broadcast %9 : vector<2x8x1x8xf32> to vector<2x8x8x8xf32>
    %12 = arith.addf %10, %11 : vector<2x8x8x8xf32>
    %13 = vector.shape_cast %12 : vector<2x8x8x8xf32> to vector<2x8x64xf32>
    %c0_10 = arith.constant 0 : index
    %c0_11 = arith.constant 0 : index
    %c0_12 = arith.constant 0 : index
    %c0_13 = arith.constant 0 : index
    %14 = vector.load %arg5[%c0_10, %c0_11, %c0_12, %c0_13] : memref<2x1x8x64xf32, #tpu.memory_space<vmem>>, vector<2x1x8x64xf32>
    %15 = vector.shape_cast %14 : vector<2x1x8x64xf32> to vector<2x8x64xf32>
    %16 = vector.shape_cast %13 : vector<2x8x64xf32> to vector<2x1x8x64xf32>
    tpu.vector_store %arg5[%c0_10, %c0_11, %c0_12, %c0_13], %16 {strides = array<i32>} : memref<2x1x8x64xf32, #tpu.memory_space<vmem>>, vector<2x1x8x64xf32>,
    return
  }
  func.func @transform_0(%arg0: i32, %arg1: i32) -> (i32, i32, i32, i32) {
    %c0_i32 = arith.constant 0 : i32
    %c0_i32_0 = arith.constant 0 : i32
    %c0_i32_1 = arith.constant 0 : i32
    return %arg0, %arg1, %c0_i32, %c0_i32_0 : i32, i32, i32, i32
  }
  func.func @transform_1(%arg0: i32, %arg1: i32) -> (i32, i32, i32) {
    %c0_i32 = arith.constant 0 : i32
    %c0_i32_0 = arith.constant 0 : i32
    %c0_i32_1 = arith.constant 0 : i32
    return %arg1, %c0_i32, %c0_i32_0 : i32, i32, i32
  }
  func.func @transform_2(%arg0: i32, %arg1: i32) -> (i32, i32, i32) {
    %c0_i32 = arith.constant 0 : i32
    %c0_i32_0 = arith.constant 0 : i32
    %c0_i32_1 = arith.constant 0 : i32
    %c0_i32_2 = arith.constant 0 : i32
    return %c0_i32, %c0_i32_0, %c0_i32_1 : i32, i32, i32
  }
  func.func @transform_3(%arg0: i32, %arg1: i32) -> (i32, i32, i32, i32) {
    %c0_i32 = arith.constant 0 : i32
    %c0_i32_0 = arith.constant 0 : i32
    %c0_i32_1 = arith.constant 0 : i32
    return %arg0, %arg1, %c0_i32, %c0_i32_0 : i32, i32, i32, i32
  }
}

</mosaic_0001>

<llo_original>
// kernel: tpu_custom_call.1
$region0: #{tpu_custom_call.1}
  #allocation0 [shape = 'u32[]', space=smem, size = 0x4, offset = 0x4, fixed_abs, tag = 'smem constant byte address 0x4 - core index']
  #allocation1 [shape = 'u32[144,128]{1,0:T(1,128)}', space=vmem, size = 0x12000, scoped, tag = 'internal scratch']
  %s0 = inlined_call_operand.hbm [shape: f32[4,8,8,32], index: 0, kind: input, shape index: {}]
  %s1 = inlined_call_operand.hbm [shape: f32[8,8,32], index: 1, kind: input, shape index: {}]
  %s2 = inlined_call_operand.hbm [shape: f32[8,8,32], index: 2, kind: input, shape index: {}]
  %s3 = inlined_call_operand.hbm [shape: f32[4,8,8,64], index: 3, kind: output, shape index: {}]
  %s4 = sld [smem:[#allocation0]]
  $region57: #{tpu_custom_call.1} parent=0
    _
  %s6 = ssub.s32 1, %s4
  %s7 = scalar_select 0, %s6, %s4
  $region1: #{tpu_custom_call.1} parent=0
    #allocation2 [shape = 'u8[16384]{0}', space=vmem, size = 0x4000, scoped, tag = 'input window, operand 0']
    #allocation3 [shape = 's32[2]{0}', space=sflag, size = 0x8, scoped, tag = 'scoped memory for tpu_custom_call.1']
    #allocation4 [shape = 's32[2]{0}', space=sflag, size = 0x8, scoped, tag = 'scoped memory for tpu_custom_call.1']
    #allocation5 [shape = 'u8[8192]{0}', space=vmem, size = 0x2000, scoped, tag = 'input window, operand 1']
    #allocation6 [shape = 's32[2]{0}', space=sflag, size = 0x8, scoped, tag = 'scoped memory for tpu_custom_call.1']
    #allocation7 [shape = 'u8[32768]{0}', space=vmem, size = 0x8000, scoped, tag = 'input window, operand 2, single buffered']
    #allocation8 [shape = 'u8[16384]{0}', space=vmem, size = 0x4000, scoped, tag = 'output window, operand 0']
    %8 = vsyncpa [#allocation3], 0
    %s9 = scalar_lea.sflag [#allocation3], 1
    %10 = vsyncpa %s9, 0
    %11 = vsyncpa [#allocation6], 0
    %s12 = scalar_lea.sflag [#allocation6], 1
    %13 = vsyncpa %s12, 0
    %14 = vsyncpa [#allocation4], 0
    %s15 = scalar_lea.sflag [#allocation4], 1
    %16 = vsyncpa %s15, 0
    loop: start=0, step=1, limit=18
    $region2: #{tpu_custom_call.1} parent=1 // loop_pre_header
      _
    $region3: #{tpu_custom_call.1} parent=1 // loop_header
      %s18 = sphi 0, %s22
      %p19 = scmp.ge.s32.totalorder %s18, 18
      %s25 = sphi 0, %s37
      %s26 = sphi 0, %s33
      %s27 = sphi 0, %s25
      %s28 = sphi 0, %s26
      %s29 = sphi 0, %s27
      %s30 = sphi 0, %s28
      %s42 = sphi 0, %s44
      %s45 = sphi 0, %s42
      %s46 = sphi 0, %s45
      %s62 = sphi 0, %s46
      %s68 = sphi 0, %s70
      %s71 = sphi 0, %s68
      %s72 = sphi 0, %s71
      %s88 = sphi 0, %s72
      %s92 = sphi 0, %s92
      %s94 = sphi 0, %s92
      %s95 = sphi 0, %s94
      %s109 = sphi 0, %s95
      %s117 = sphi 0, %s119
      %s120 = sphi 0, %s117
      %s121 = sphi 0, %s120
      %s137 = sphi 0, %s121
    $region4: #{tpu_custom_call.1} parent=1 // loop_header_branch
      %21 = sbr.rel (%p19) target = $region8
    $region5: #{tpu_custom_call.1} parent=1 // loop_body
      %s23 = ssub.s32 %s18, 1
      %s24 = ssub.s32 %s18, 2
      %s31 = sadd.s32 1, %s26
      %p32 = scmp.ge.s32.totalorder %s31, 8
      %s33 = scalar_select %p32, 0, %s31
      %s34 = sadd.s32 1, %s25
      %s35 = scalar_select %p32, %s34, %s25
      %p36 = scmp.ge.s32.totalorder %s35, 2
      %s37 = scalar_select %p36, 0, %s35
      %s38 = ssub.s32 %s25, %s37
      %s39 = ssub.s32 %s26, %s33
      %s40 = sor.u32 %s38, %s39
      %p41 = scmp.eq.s32.totalorder %s40, 0
      %s43 = sadd.s32 %s42, 1
      %s44 = scalar_select %p41, %s42, %s43
      %p47 = pneg %p41
      %p48 = scmp.eq.s32.totalorder %s18, 15
      %p49 = por %p47, %p48
      %p50 = scmp.ne.s32.totalorder %s42, %s45
      %p51 = scmp.eq.s32.totalorder %s18, 0
      %p52 = por %p50, %p51
      %p53 = scmp.ne.s32.totalorder %s42, %s45
      %p54 = scmp.eq.s32.totalorder %s23, 15
      %p55 = por %p53, %p54
      %p56 = scmp.ne.s32.totalorder %s45, %s46
      %p57 = scmp.eq.s32.totalorder %s23, 0
      %p58 = por %p56, %p57
      %p59 = scmp.ne.s32.totalorder %s45, %s46
      %p60 = scmp.eq.s32.totalorder %s24, 15
      %p61 = por %p59, %p60
      %p63 = scmp.ne.s32.totalorder %s46, %s62
      %p64 = scmp.eq.s32.totalorder %s24, 0
      %p65 = por %p63, %p64
      %s66 = ssub.s32 %s26, %s33
      %p67 = scmp.eq.s32.totalorder %s66, 0
      %s69 = sadd.s32 %s68, 1
      %s70 = scalar_select %p67, %s68, %s69
      %p73 = pneg %p67
      %p74 = scmp.eq.s32.totalorder %s18, 15
      %p75 = por %p73, %p74
      %p76 = scmp.ne.s32.totalorder %s68, %s71
      %p77 = scmp.eq.s32.totalorder %s18, 0
      %p78 = por %p76, %p77
      %p79 = scmp.ne.s32.totalorder %s68, %s71
      %p80 = scmp.eq.s32.totalorder %s23, 15
      %p81 = por %p79, %p80
      %p82 = scmp.ne.s32.totalorder %s71, %s72
      %p83 = scmp.eq.s32.totalorder %s23, 0
      %p84 = por %p82, %p83
      %p85 = scmp.ne.s32.totalorder %s71, %s72
      %p86 = scmp.eq.s32.totalorder %s24, 15
      %p87 = por %p85, %p86
      %p89 = scmp.ne.s32.totalorder %s72, %s88
      %p90 = scmp.eq.s32.totalorder %s24, 0
      %p91 = por %p89, %p90
      %s93 = sadd.s32 %s92, 1
      %p96 = scmp.eq.s32.totalorder %s18, 15
      %p97 = scmp.ne.s32.totalorder %s92, %s94
      %p98 = scmp.eq.s32.totalorder %s18, 0
      %p99 = por %p97, %p98
      %p100 = scmp.ne.s32.totalorder %s92, %s94
      %p101 = scmp.eq.s32.totalorder %s23, 15
      %p102 = por %p100, %p101
      %p103 = scmp.ne.s32.totalorder %s94, %s95
      %p104 = scmp.eq.s32.totalorder %s23, 0
      %p105 = por %p103, %p104
      %p106 = scmp.ne.s32.totalorder %s94, %s95
      %p107 = scmp.eq.s32.totalorder %s24, 15
      %p108 = por %p106, %p107
      %p110 = scmp.ne.s32.totalorder %s95, %s109
      %p111 = scmp.eq.s32.totalorder %s24, 0
      %p112 = por %p110, %p111
      %s113 = ssub.s32 %s25, %s37
      %s114 = ssub.s32 %s26, %s33
      %s115 = sor.u32 %s113, %s114
      %p116 = scmp.eq.s32.totalorder %s115, 0
      %s118 = sadd.s32 %s117, 1
      %s119 = scalar_select %p116, %s117, %s118
      %p122 = pneg %p116
      %p123 = scmp.eq.s32.totalorder %s18, 15
      %p124 = por %p122, %p123
      %p125 = scmp.ne.s32.totalorder %s117, %s120
      %p126 = scmp.eq.s32.totalorder %s18, 0
      %p127 = por %p125, %p126
      %p128 = scmp.ne.s32.totalorder %s117, %s120
      %p129 = scmp.eq.s32.totalorder %s23, 15
      %p130 = por %p128, %p129
      %p131 = scmp.ne.s32.totalorder %s120, %s121
      %p132 = scmp.eq.s32.totalorder %s23, 0
      %p133 = por %p131, %p132
      %p134 = scmp.ne.s32.totalorder %s120, %s121
      %p135 = scmp.eq.s32.totalorder %s24, 15
      %p136 = por %p134, %p135
      %p138 = scmp.ne.s32.totalorder %s121, %s137
      %p139 = scmp.eq.s32.totalorder %s24, 0
      %p140 = por %p138, %p139
      %p141 = scmp.le.s32.totalorder 1, %s18
      %p142 = scmp.lt.s32.totalorder %s18, 17
      %p143 = pnand %p141, %p142
      %p144 = pneg %p143
      // Predicated region
      $region9: #{tpu_custom_call.1} parent=5 // pred_check
        _
      $region10: #{tpu_custom_call.1} parent=5 // pred_check_branch
        %146 = sbr.rel (%p143) target = $region12
      $region11: #{tpu_custom_call.1} parent=5 // pred_region
        %s147 = ssub.s32 %s18, 1
        // Predicated region
        $region13: #{tpu_custom_call.1} parent=11 // pred_check
          %p148 = pneg %p105
        $region14: #{tpu_custom_call.1} parent=11 // pred_check_branch
          %150 = sbr.rel (%p148) target = $region16
        $region15: #{tpu_custom_call.1} parent=11 // pred_region
          %s152 = ssub.s32 1024, 1024
          %153 = vsyncadd [#allocation6], %s152
          %s154 = sshll.u32 [#allocation7], 4
          %s155 = int_to_ptr.vmem [resolvable:$true] %s154
          %160 = dma.hbm_to_vmem [thread:$0]  %s2, 1024, %s155, [#allocation6], 128, 128, 8
        $region16: #{tpu_custom_call.1} parent=11 // pred_fallthru
          _
      $region12: #{tpu_custom_call.1} parent=5 // pred_fallthru
        _
      %p161 = scmp.lt.s32.totalorder %s18, 16
      // Predicated region
      $region17: #{tpu_custom_call.1} parent=5 // pred_check
        %p162 = pneg %p161
      $region18: #{tpu_custom_call.1} parent=5 // pred_check_branch
        %164 = sbr.rel (%p162) target = $region20
      $region19: #{tpu_custom_call.1} parent=5 // pred_region
        // Predicated region
        $region21: #{tpu_custom_call.1} parent=19 // pred_check
          %p165 = pneg %p52
        $region22: #{tpu_custom_call.1} parent=19 // pred_check_branch
          %167 = sbr.rel (%p165) target = $region24
        $region23: #{tpu_custom_call.1} parent=19 // pred_region
          %s168 = sand.u32 %s42, 1
          %s169 = scalar_lea.sflag [#allocation3], %s168
          %s170 = sand.u32 %s42, 1
          %s171 = smul.addr %s170, 16
          %s172 = scalar_lea.vmem [#allocation2], %s171
          %s173 = smul.u32 2, %s25
          %s175 = ssub.s32 256, 256
          %176 = vsyncadd %s169, %s175
          %s177 = smul.addr %s173, 8
          %s178 = sadd.s32 %s26, %s177
          %s179 = smul.addr %s178, 128
          %s180 = scalar_lea.hbm %s0, %s179
          %s181 = sshll.u32 %s172, 4
          %s182 = int_to_ptr.vmem [resolvable:$true] %s181
          %187 = dma.hbm_to_vmem [thread:$0]  %s180, 256, %s182, %s169, 1024, 128, 8
        $region24: #{tpu_custom_call.1} parent=19 // pred_fallthru
          _
        // Predicated region
        $region25: #{tpu_custom_call.1} parent=19 // pred_check
          %p188 = pneg %p78
        $region26: #{tpu_custom_call.1} parent=19 // pred_check_branch
          %190 = sbr.rel (%p188) target = $region28
        $region27: #{tpu_custom_call.1} parent=19 // pred_region
          %s191 = sand.u32 %s18, 1
          %s192 = scalar_lea.sflag [#allocation6], %s191
          %s193 = sand.u32 %s68, 1
          %s194 = smul.addr %s193, 8
          %s195 = scalar_lea.vmem [#allocation5], %s194
          %s197 = ssub.s32 128, 128
          %198 = vsyncadd %s192, %s197
          %s199 = smul.addr %s26, 128
          %s200 = scalar_lea.hbm %s1, %s199
          %s202 = sshll.u32 %s195, 4
          %s203 = int_to_ptr.vmem [resolvable:$true] %s202
          %205 = dma.hbm_to_vmem [thread:$0]  %s200, 128, %s203, %s192
        $region28: #{tpu_custom_call.1} parent=19 // pred_fallthru
          _
      $region20: #{tpu_custom_call.1} parent=5 // pred_fallthru
        _
      %p206 = scmp.le.s32.totalorder 1, %s18
      %p207 = scmp.lt.s32.totalorder %s18, 17
      %p208 = pnand %p206, %p207
      %p209 = pneg %p208
      // Predicated region
      $region29: #{tpu_custom_call.1} parent=5 // pred_check
        _
      $region30: #{tpu_custom_call.1} parent=5 // pred_check_branch
        %211 = sbr.rel (%p208) target = $region32
      $region31: #{tpu_custom_call.1} parent=5 // pred_region
        %s212 = ssub.s32 %s18, 1
        %s213 = sand.u32 %s45, 1
        %s214 = scalar_lea.sflag [#allocation3], %s213
        %s215 = sand.u32 %s45, 1
        %s216 = smul.addr %s215, 16
        %s217 = scalar_lea.vmem [#allocation2], %s216
        // Predicated region
        $region33: #{tpu_custom_call.1} parent=31 // pred_check
          %p218 = pneg %p58
        $region34: #{tpu_custom_call.1} parent=31 // pred_check_branch
          %220 = sbr.rel (%p218) target = $region36
        $region35: #{tpu_custom_call.1} parent=31 // pred_region
          %221 = dma.done %s214, 256
        $region36: #{tpu_custom_call.1} parent=31 // pred_fallthru
          _
        %s222 = sand.u32 %s23, 1
        %s223 = scalar_lea.sflag [#allocation6], %s222
        %s224 = sand.u32 %s71, 1
        %s225 = smul.addr %s224, 8
        %s226 = scalar_lea.vmem [#allocation5], %s225
        // Predicated region
        $region37: #{tpu_custom_call.1} parent=31 // pred_check
          %p227 = pneg %p84
        $region38: #{tpu_custom_call.1} parent=31 // pred_check_branch
          %229 = sbr.rel (%p227) target = $region40
        $region39: #{tpu_custom_call.1} parent=31 // pred_region
          %230 = dma.done %s223, 128
        $region40: #{tpu_custom_call.1} parent=31 // pred_fallthru
          _
        // Predicated region
        $region41: #{tpu_custom_call.1} parent=31 // pred_check
          %p231 = pneg %p105
        $region42: #{tpu_custom_call.1} parent=31 // pred_check_branch
          %233 = sbr.rel (%p231) target = $region44
        $region43: #{tpu_custom_call.1} parent=31 // pred_region
          %234 = dma.done [#allocation6], 1024
        $region44: #{tpu_custom_call.1} parent=31 // pred_fallthru
          _
        %s235 = sand.u32 %s45, 1
        %s236 = scalar_lea.sflag [#allocation3], %s235
        %s237 = sand.u32 %s45, 1
        %s238 = smul.addr %s237, 16
        %s239 = scalar_lea.vmem [#allocation2], %s238
        %p240 = pneg %p58
        %p241 = pneg %p55
        %s242 = sand.u32 %s23, 1
        %s243 = scalar_lea.sflag [#allocation6], %s242
        %s244 = sand.u32 %s71, 1
        %s245 = smul.addr %s244, 8
        %s246 = scalar_lea.vmem [#allocation5], %s245
        %p247 = pneg %p84
        %p248 = pneg %p81
        %p249 = pneg %p105
        %p250 = pneg %p102
        %p251 = pneg %p133
        %p252 = pneg %p130
        %s253 = sand.u32 %s120, 1
        %s254 = scalar_lea.sflag [#allocation4], %s253
        %s255 = sand.u32 %s120, 1
        %s256 = smul.addr %s255, 16
        %s257 = scalar_lea.vmem [#allocation8], %s256
        %s258 = smul.u32 2, %s27
        %s259 = smul.u32 2, %s27
        %v260 = vld [vmem:[%s217] sm:$0xff]
        %v261 = vld [vmem:[%s217 + $0x8] sm:$0xff]
        %v262 = vld [vmem:[%s226] sm:$0xff]
        %v263 = vld [vmem:[#allocation7] sm:$0xff]
        %v264 = vld [vmem:[#allocation7 + $0x8] sm:$0xff]
        %v265 = vld [vmem:[#allocation7 + $0x10] sm:$0xff]
        %v266 = vld [vmem:[#allocation7 + $0x18] sm:$0xff]
        %v267 = vld [vmem:[#allocation7 + $0x20] sm:$0xff]
        %v268 = vld [vmem:[#allocation7 + $0x28] sm:$0xff]
        %v269 = vld [vmem:[#allocation7 + $0x30] sm:$0xff]
        %v270 = vld [vmem:[#allocation7 + $0x38] sm:$0xff]
        %vm271 = vcmask 261120
        %v273 = vsel %vm271, %v260, 0
        %v276 = vsel %vm271, %v261, 0
        %v279 = vsel %vm271, %v262, 0
        %281 = vmatprep.subr.mxu0 0.0
        %282 = vmatpush1.xpose.msra.mxu0 %v279
        %283 = vmatprep.subr.mxu0 0.0
        %284 = vmatpush1.xpose.msra.mxu0 0.0
        %285 = vmatprep.subr.mxu0 0.0
        %286 = vmatpush1.xpose.msra.mxu0 0.0
        %287 = vmatprep.subr.mxu0 0.0
        %288 = vmatpush1.xpose.msra.mxu0 0.0
        %289 = vmatprep.subr.mxu0 0.0
        %290 = vmatpush1.xpose.msra.mxu0 0.0
        %291 = vmatprep.subr.mxu0 0.0
        %292 = vmatpush1.xpose.msra.mxu0 0.0
        %293 = vmatprep.subr.mxu0 0.0
        %294 = vmatpush1.xpose.msra.mxu0 0.0
        %295 = vmatprep.subr.mxu0 0.0
        %296 = vmatpush1.xpose.msra.mxu0 0.0
        %297 = vmatprep.subr.mxu0 0.0
        %298 = vmatpush1.xpose.msra.mxu0 0.0
        %299 = vmatprep.subr.mxu0 0.0
        %300 = vmatpush1.xpose.msra.mxu0 0.0
        %301 = vmatprep.subr.mxu0 0.0
        %302 = vmatpush1.xpose.msra.mxu0 0.0
        %303 = vmatprep.subr.mxu0 0.0
        %304 = vmatpush1.xpose.msra.mxu0 0.0
        %305 = vmatprep.subr.mxu0 0.0
        %306 = vmatpush1.xpose.msra.mxu0 0.0
        %307 = vmatprep.subr.mxu0 0.0
        %308 = vmatpush1.xpose.msra.mxu0 0.0
        %309 = vmatprep.subr.mxu0 0.0
        %310 = vmatpush1.xpose.msra.mxu0 0.0
        %311 = vmatprep.subr.mxu0 0.0
        %312 = vmatpush1.xpose.msra.mxu0 0.0
        %313 = vmatprep.subr.mxu0 0.0
        %314 = vmatpush1.xpose.msra.mxu0 0.0
        %315 = vmatprep.subr.mxu0 0.0
        %316 = vmatpush1.xpose.msra.mxu0 0.0
        %317 = vmatprep.subr.mxu0 0.0
        %318 = vmatpush1.xpose.msra.mxu0 0.0
        %319 = vmatprep.subr.mxu0 0.0
        %320 = vmatpush1.xpose.msra.mxu0 0.0
        %321 = vmatprep.subr.mxu0 0.0
        %322 = vmatpush1.xpose.msra.mxu0 0.0
        %323 = vmatprep.subr.mxu0 0.0
        %324 = vmatpush1.xpose.msra.mxu0 0.0
        %325 = vmatprep.subr.mxu0 0.0
        %326 = vmatpush1.xpose.msra.mxu0 0.0
        %327 = vmatprep.subr.mxu0 0.0
        %328 = vmatpush1.xpose.msra.mxu0 0.0
        %329 = vmatprep.subr.mxu0 0.0
        %330 = vmatpush1.xpose.msra.mxu0 0.0
        %331 = vmatprep.subr.mxu0 0.0
        %332 = vmatpush1.xpose.msra.mxu0 0.0
        %333 = vmatprep.subr.mxu0 0.0
        %334 = vmatpush1.xpose.msra.mxu0 0.0
        %335 = vmatprep.subr.mxu0 0.0
        %336 = vmatpush1.xpose.msra.mxu0 0.0
        %337 = vmatprep.subr.mxu0 0.0
        %338 = vmatpush1.xpose.msra.mxu0 0.0
        %339 = vmatprep.subr.mxu0 0.0
        %340 = vmatpush1.xpose.msra.mxu0 0.0
        %341 = vmatprep.subr.mxu0 0.0
        %342 = vmatpush1.xpose.msra.mxu0 0.0
        %343 = vmatprep.subr.mxu0 0.0
        %344 = vmatpush1.xpose.msra.mxu0 0.0
        %345 = vmatprep.mubr.f32.mxu0 0.0
        %346 = vmatmul.mubr.f32.gmra.mrb[0].mxu0 %v273
        %v347 = vpop.f32.mrb[0].mxu0
        %v348 = vadd.f32 0.0, %v347
        %v349 = vpop.f32.mrb[0].mxu0
        %350 = vmatprep.mubr.f32.mxu0 0.0
        %351 = vmatmul.mubr.f32.gmra.mrb[0].mxu0 %v276
        %v352 = vpop.f32.mrb[0].mxu0
        %v353 = vadd.f32 0.0, %v352
        %v354 = vpop.f32.mrb[0].mxu0
        %355 = vdwg.mxu0
        %356 = vxpose.xlu0.b32.start [1/16] %v260, 128
        %357 = vxpose.xlu0.b32.cont [2/16] 0.0, 128
        %358 = vxpose.xlu0.b32.cont [3/16] 0.0, 128
        %359 = vxpose.xlu0.b32.cont [4/16] 0.0, 128
        %360 = vxpose.xlu0.b32.cont [5/16] 0.0, 128
        %361 = vxpose.xlu0.b32.cont [6/16] 0.0, 128
        %362 = vxpose.xlu0.b32.cont [7/16] 0.0, 128
        %363 = vxpose.xlu0.b32.cont [8/16] 0.0, 128
        %364 = vxpose.xlu0.b32.cont [9/16] 0.0, 128
        %365 = vxpose.xlu0.b32.cont [10/16] 0.0, 128
        %366 = vxpose.xlu0.b32.cont [11/16] 0.0, 128
        %367 = vxpose.xlu0.b32.cont [12/16] 0.0, 128
        %368 = vxpose.xlu0.b32.cont [13/16] 0.0, 128
        %369 = vxpose.xlu0.b32.cont [14/16] 0.0, 128
        %370 = vxpose.xlu0.b32.cont [15/16] 0.0, 128
        %371 = vxpose.xlu0.b32.end [16/16] 0.0, 128
        %v372 = vpop.trf.xlu0
        %v373 = vpop.trf.xlu0
        %v374 = vpop.trf.xlu0
        %v375 = vpop.trf.xlu0
        %v376 = vpop.trf.xlu0
        %v377 = vpop.trf.xlu0
        %v378 = vpop.trf.xlu0
        %v379 = vpop.trf.xlu0
        %v380 = vpop.trf.xlu0
        %v381 = vpop.trf.xlu0
        %v382 = vpop.trf.xlu0
        %v383 = vpop.trf.xlu0
        %v384 = vpop.trf.xlu0
        %v385 = vpop.trf.xlu0
        %v386 = vpop.trf.xlu0
        %v387 = vpop.trf.xlu0
        %388 = vxpose.xlu0.b32.start [1/16] %v261, 128
        %389 = vxpose.xlu0.b32.cont [2/16] 0.0, 128
        %390 = vxpose.xlu0.b32.cont [3/16] 0.0, 128
        %391 = vxpose.xlu0.b32.cont [4/16] 0.0, 128
        %392 = vxpose.xlu0.b32.cont [5/16] 0.0, 128
        %393 = vxpose.xlu0.b32.cont [6/16] 0.0, 128
        %394 = vxpose.xlu0.b32.cont [7/16] 0.0, 128
        %395 = vxpose.xlu0.b32.cont [8/16] 0.0, 128
        %396 = vxpose.xlu0.b32.cont [9/16] 0.0, 128
        %397 = vxpose.xlu0.b32.cont [10/16] 0.0, 128
        %398 = vxpose.xlu0.b32.cont [11/16] 0.0, 128
        %399 = vxpose.xlu0.b32.cont [12/16] 0.0, 128
        %400 = vxpose.xlu0.b32.cont [13/16] 0.0, 128
        %401 = vxpose.xlu0.b32.cont [14/16] 0.0, 128
        %402 = vxpose.xlu0.b32.cont [15/16] 0.0, 128
        %403 = vxpose.xlu0.b32.end [16/16] 0.0, 128
        %v404 = vpop.trf.xlu0
        %v405 = vpop.trf.xlu0
        %v406 = vpop.trf.xlu0
        %v407 = vpop.trf.xlu0
        %v408 = vpop.trf.xlu0
        %v409 = vpop.trf.xlu0
        %v410 = vpop.trf.xlu0
        %v411 = vpop.trf.xlu0
        %v412 = vpop.trf.xlu0
        %v413 = vpop.trf.xlu0
        %v414 = vpop.trf.xlu0
        %v415 = vpop.trf.xlu0
        %v416 = vpop.trf.xlu0
        %v417 = vpop.trf.xlu0
        %v418 = vpop.trf.xlu0
        %v419 = vpop.trf.xlu0
        %v420 = vcombine.high %v372, 0.0
        %v422 = vunpack.c.l.s4 1983009808
        %v423 = vunpack.c.0.s8 %v422
        %v424 = vlaneseq
        %v425 = vshrl.u32 %v424, 7
        %v426 = vsub.s32 %v423, %v425
        %v427 = vrot.slane %v372, %v426
        %v429 = vunpack.c.l.s4 1983009808
        %v430 = vunpack.c.0.s8 %v429
        %v431 = vlaneseq
        %v432 = vshrl.u32 %v431, 7
        %v433 = vsub.s32 %v430, %v432
        %v434 = vrot.slane %v420, %v433
        %v435 = vcombine.high %v404, 0.0
        %v437 = vunpack.c.l.s4 1983009808
        %v438 = vunpack.c.0.s8 %v437
        %v439 = vlaneseq
        %v440 = vshrl.u32 %v439, 7
        %v441 = vsub.s32 %v438, %v440
        %v442 = vrot.slane %v404, %v441
        %v444 = vunpack.c.l.s4 1983009808
        %v445 = vunpack.c.0.s8 %v444
        %v446 = vlaneseq
        %v447 = vshrl.u32 %v446, 7
        %v448 = vsub.s32 %v445, %v447
        %v449 = vrot.slane %v435, %v448
        %v450 = vcombine.low %v427, %v442
        %v451 = vcombine.high %v427, %v442
        %v453 = vunpack.c.l.s4 1934713408
        %v454 = vunpack.c.0.s8 %v453
        %v455 = vlaneseq
        %v456 = vshrl.u32 %v455, 7
        %v457 = vsub.s32 %v454, %v456
        %v458 = vrot.slane %v450, %v457
        %v460 = vunpack.c.l.s4 1934713408
        %v461 = vunpack.c.0.s8 %v460
        %v462 = vlaneseq
        %v463 = vshrl.u32 %v462, 7
        %v464 = vsub.s32 %v461, %v463
        %v465 = vrot.slane %v451, %v464
        %v466 = vcombine.low %v434, %v449
        %v467 = vcombine.high %v434, %v449
        %v469 = vunpack.c.l.s4 1934713408
        %v470 = vunpack.c.0.s8 %v469
        %v471 = vlaneseq
        %v472 = vshrl.u32 %v471, 7
        %v473 = vsub.s32 %v470, %v472
        %v474 = vrot.slane %v466, %v473
        %v476 = vunpack.c.l.s4 1934713408
        %v477 = vunpack.c.0.s8 %v476
        %v478 = vlaneseq
        %v479 = vshrl.u32 %v478, 7
        %v480 = vsub.s32 %v477, %v479
        %v481 = vrot.slane %v467, %v480
        %v482 = vcombine.high %v458, 0.0
        %v483 = vcombine.high %v465, 0.0
        %v484 = vcombine.high %v474, 0.0
        %v485 = vcombine.high %v481, 0.0
        %v486 = vcombine.high %v373, 0.0
        %v488 = vunpack.c.l.s4 1983009808
        %v489 = vunpack.c.0.s8 %v488
        %v490 = vlaneseq
        %v491 = vshrl.u32 %v490, 7
        %v492 = vsub.s32 %v489, %v491
        %v493 = vrot.slane %v373, %v492
        %v495 = vunpack.c.l.s4 1983009808
        %v496 = vunpack.c.0.s8 %v495
        %v497 = vlaneseq
        %v498 = vshrl.u32 %v497, 7
        %v499 = vsub.s32 %v496, %v498
        %v500 = vrot.slane %v486, %v499
        %v501 = vcombine.high %v405, 0.0
        %v503 = vunpack.c.l.s4 1983009808
        %v504 = vunpack.c.0.s8 %v503
        %v505 = vlaneseq
        %v506 = vshrl.u32 %v505, 7
        %v507 = vsub.s32 %v504, %v506
        %v508 = vrot.slane %v405, %v507
        %v510 = vunpack.c.l.s4 1983009808
        %v511 = vunpack.c.0.s8 %v510
        %v512 = vlaneseq
        %v513 = vshrl.u32 %v512, 7
        %v514 = vsub.s32 %v511, %v513
        %v515 = vrot.slane %v501, %v514
        %v516 = vcombine.low %v493, %v508
        %v517 = vcombine.high %v493, %v508
        %v519 = vunpack.c.l.s4 1934713408
        %v520 = vunpack.c.0.s8 %v519
        %v521 = vlaneseq
        %v522 = vshrl.u32 %v521, 7
        %v523 = vsub.s32 %v520, %v522
        %v524 = vrot.slane %v516, %v523
        %v526 = vunpack.c.l.s4 1934713408
        %v527 = vunpack.c.0.s8 %v526
        %v528 = vlaneseq
        %v529 = vshrl.u32 %v528, 7
        %v530 = vsub.s32 %v527, %v529
        %v531 = vrot.slane %v517, %v530
        %v532 = vcombine.low %v500, %v515
        %v533 = vcombine.high %v500, %v515
        %v535 = vunpack.c.l.s4 1934713408
        %v536 = vunpack.c.0.s8 %v535
        %v537 = vlaneseq
        %v538 = vshrl.u32 %v537, 7
        %v539 = vsub.s32 %v536, %v538
        %v540 = vrot.slane %v532, %v539
        %v542 = vunpack.c.l.s4 1934713408
        %v543 = vunpack.c.0.s8 %v542
        %v544 = vlaneseq
        %v545 = vshrl.u32 %v544, 7
        %v546 = vsub.s32 %v543, %v545
        %v547 = vrot.slane %v533, %v546
        %v548 = vcombine.high %v524, 0.0
        %v549 = vcombine.high %v531, 0.0
        %v550 = vcombine.high %v540, 0.0
        %v551 = vcombine.high %v547, 0.0
        %v552 = vcombine.high %v374, 0.0
        %v554 = vunpack.c.l.s4 1983009808
        %v555 = vunpack.c.0.s8 %v554
        %v556 = vlaneseq
        %v557 = vshrl.u32 %v556, 7
        %v558 = vsub.s32 %v555, %v557
        %v559 = vrot.slane %v374, %v558
        %v561 = vunpack.c.l.s4 1983009808
        %v562 = vunpack.c.0.s8 %v561
        %v563 = vlaneseq
        %v564 = vshrl.u32 %v563, 7
        %v565 = vsub.s32 %v562, %v564
        %v566 = vrot.slane %v552, %v565
        %v567 = vcombine.high %v406, 0.0
        %v569 = vunpack.c.l.s4 1983009808
        %v570 = vunpack.c.0.s8 %v569
        %v571 = vlaneseq
        %v572 = vshrl.u32 %v571, 7
        %v573 = vsub.s32 %v570, %v572
        %v574 = vrot.slane %v406, %v573
        %v576 = vunpack.c.l.s4 1983009808
        %v577 = vunpack.c.0.s8 %v576
        %v578 = vlaneseq
        %v579 = vshrl.u32 %v578, 7
        %v580 = vsub.s32 %v577, %v579
        %v581 = vrot.slane %v567, %v580
        %v582 = vcombine.low %v559, %v574
        %v583 = vcombine.high %v559, %v574
        %v585 = vunpack.c.l.s4 1934713408
        %v586 = vunpack.c.0.s8 %v585
        %v587 = vlaneseq
        %v588 = vshrl.u32 %v587, 7
        %v589 = vsub.s32 %v586, %v588
        %v590 = vrot.slane %v582, %v589
        %v592 = vunpack.c.l.s4 1934713408
        %v593 = vunpack.c.0.s8 %v592
        %v594 = vlaneseq
        %v595 = vshrl.u32 %v594, 7
        %v596 = vsub.s32 %v593, %v595
        %v597 = vrot.slane %v583, %v596
        %v598 = vcombine.low %v566, %v581
        %v599 = vcombine.high %v566, %v581
        %v601 = vunpack.c.l.s4 1934713408
        %v602 = vunpack.c.0.s8 %v601
        %v603 = vlaneseq
        %v604 = vshrl.u32 %v603, 7
        %v605 = vsub.s32 %v602, %v604
        %v606 = vrot.slane %v598, %v605
        %v608 = vunpack.c.l.s4 1934713408
        %v609 = vunpack.c.0.s8 %v608
        %v610 = vlaneseq
        %v611 = vshrl.u32 %v610, 7
        %v612 = vsub.s32 %v609, %v611
        %v613 = vrot.slane %v599, %v612
        %v614 = vcombine.high %v590, 0.0
        %v615 = vcombine.high %v597, 0.0
        %v616 = vcombine.high %v606, 0.0
        %v617 = vcombine.high %v613, 0.0
        %v618 = vcombine.high %v375, 0.0
        %v620 = vunpack.c.l.s4 1983009808
        %v621 = vunpack.c.0.s8 %v620
        %v622 = vlaneseq
        %v623 = vshrl.u32 %v622, 7
        %v624 = vsub.s32 %v621, %v623
        %v625 = vrot.slane %v375, %v624
        %v627 = vunpack.c.l.s4 1983009808
        %v628 = vunpack.c.0.s8 %v627
        %v629 = vlaneseq
        %v630 = vshrl.u32 %v629, 7
        %v631 = vsub.s32 %v628, %v630
        %v632 = vrot.slane %v618, %v631
        %v633 = vcombine.high %v407, 0.0
        %v635 = vunpack.c.l.s4 1983009808
        %v636 = vunpack.c.0.s8 %v635
        %v637 = vlaneseq
        %v638 = vshrl.u32 %v637, 7
        %v639 = vsub.s32 %v636, %v638
        %v640 = vrot.slane %v407, %v639
        %v642 = vunpack.c.l.s4 1983009808
        %v643 = vunpack.c.0.s8 %v642
        %v644 = vlaneseq
        %v645 = vshrl.u32 %v644, 7
        %v646 = vsub.s32 %v643, %v645
        %v647 = vrot.slane %v633, %v646
        %v648 = vcombine.low %v625, %v640
        %v649 = vcombine.high %v625, %v640
        %v651 = vunpack.c.l.s4 1934713408
        %v652 = vunpack.c.0.s8 %v651
        %v653 = vlaneseq
        %v654 = vshrl.u32 %v653, 7
        %v655 = vsub.s32 %v652, %v654
        %v656 = vrot.slane %v648, %v655
        %v658 = vunpack.c.l.s4 1934713408
        %v659 = vunpack.c.0.s8 %v658
        %v660 = vlaneseq
        %v661 = vshrl.u32 %v660, 7
        %v662 = vsub.s32 %v659, %v661
        %v663 = vrot.slane %v649, %v662
        %v664 = vcombine.low %v632, %v647
        %v665 = vcombine.high %v632, %v647
        %v667 = vunpack.c.l.s4 1934713408
        %v668 = vunpack.c.0.s8 %v667
        %v669 = vlaneseq
        %v670 = vshrl.u32 %v669, 7
        %v671 = vsub.s32 %v668, %v670
        %v672 = vrot.slane %v664, %v671
        %v674 = vunpack.c.l.s4 1934713408
        %v675 = vunpack.c.0.s8 %v674
        %v676 = vlaneseq
        %v677 = vshrl.u32 %v676, 7
        %v678 = vsub.s32 %v675, %v677
        %v679 = vrot.slane %v665, %v678
        %v680 = vcombine.high %v656, 0.0
        %v681 = vcombine.high %v663, 0.0
        %v682 = vcombine.high %v672, 0.0
        %v683 = vcombine.high %v679, 0.0
        %684 = vxpose.xlu0.b32.start [1/16] %v458, 128
        %685 = vxpose.xlu0.b32.cont [2/16] 0.0, 128
        %686 = vxpose.xlu0.b32.cont [3/16] 0.0, 128
        %687 = vxpose.xlu0.b32.cont [4/16] 0.0, 128
        %688 = vxpose.xlu0.b32.cont [5/16] 0.0, 128
        %689 = vxpose.xlu0.b32.cont [6/16] 0.0, 128
        %690 = vxpose.xlu0.b32.cont [7/16] 0.0, 128
        %691 = vxpose.xlu0.b32.cont [8/16] 0.0, 128
        %692 = vxpose.xlu0.b32.cont [9/16] 0.0, 128
        %693 = vxpose.xlu0.b32.cont [10/16] 0.0, 128
        %694 = vxpose.xlu0.b32.cont [11/16] 0.0, 128
        %695 = vxpose.xlu0.b32.cont [12/16] 0.0, 128
        %696 = vxpose.xlu0.b32.cont [13/16] 0.0, 128
        %697 = vxpose.xlu0.b32.cont [14/16] 0.0, 128
        %698 = vxpose.xlu0.b32.cont [15/16] 0.0, 128
        %699 = vxpose.xlu0.b32.end [16/16] 0.0, 128
        %v700 = vpop.trf.xlu0
        %v701 = vpop.trf.xlu0
        %v702 = vpop.trf.xlu0
        %v703 = vpop.trf.xlu0
        %v704 = vpop.trf.xlu0
        %v705 = vpop.trf.xlu0
        %v706 = vpop.trf.xlu0
        %v707 = vpop.trf.xlu0
        %v708 = vpop.trf.xlu0
        %v709 = vpop.trf.xlu0
        %v710 = vpop.trf.xlu0
        %v711 = vpop.trf.xlu0
        %v712 = vpop.trf.xlu0
        %v713 = vpop.trf.xlu0
        %v714 = vpop.trf.xlu0
        %v715 = vpop.trf.xlu0
        %716 = vxpose.xlu0.b32.start [1/16] %v482, 128
        %717 = vxpose.xlu0.b32.cont [2/16] 0.0, 128
        %718 = vxpose.xlu0.b32.cont [3/16] 0.0, 128
        %719 = vxpose.xlu0.b32.cont [4/16] 0.0, 128
        %720 = vxpose.xlu0.b32.cont [5/16] 0.0, 128
        %721 = vxpose.xlu0.b32.cont [6/16] 0.0, 128
        %722 = vxpose.xlu0.b32.cont [7/16] 0.0, 128
        %723 = vxpose.xlu0.b32.cont [8/16] 0.0, 128
        %724 = vxpose.xlu0.b32.cont [9/16] 0.0, 128
        %725 = vxpose.xlu0.b32.cont [10/16] 0.0, 128
        %726 = vxpose.xlu0.b32.cont [11/16] 0.0, 128
        %727 = vxpose.xlu0.b32.cont [12/16] 0.0, 128
        %728 = vxpose.xlu0.b32.cont [13/16] 0.0, 128
        %729 = vxpose.xlu0.b32.cont [14/16] 0.0, 128
        %730 = vxpose.xlu0.b32.cont [15/16] 0.0, 128
        %731 = vxpose.xlu0.b32.end [16/16] 0.0, 128
        %v732 = vpop.trf.xlu0
        %v733 = vpop.trf.xlu0
        %v734 = vpop.trf.xlu0
        %v735 = vpop.trf.xlu0
        %v736 = vpop.trf.xlu0
        %v737 = vpop.trf.xlu0
        %v738 = vpop.trf.xlu0
        %v739 = vpop.trf.xlu0
        %v740 = vpop.trf.xlu0
        %v741 = vpop.trf.xlu0
        %v742 = vpop.trf.xlu0
        %v743 = vpop.trf.xlu0
        %v744 = vpop.trf.xlu0
        %v745 = vpop.trf.xlu0
        %v746 = vpop.trf.xlu0
        %v747 = vpop.trf.xlu0
        %748 = vxpose.xlu0.b32.start [1/16] %v465, 128
        %749 = vxpose.xlu0.b32.cont [2/16] 0.0, 128
        %750 = vxpose.xlu0.b32.cont [3/16] 0.0, 128
        %751 = vxpose.xlu0.b32.cont [4/16] 0.0, 128
        %752 = vxpose.xlu0.b32.cont [5/16] 0.0, 128
        %753 = vxpose.xlu0.b32.cont [6/16] 0.0, 128
        %754 = vxpose.xlu0.b32.cont [7/16] 0.0, 128
        %755 = vxpose.xlu0.b32.cont [8/16] 0.0, 128
        %756 = vxpose.xlu0.b32.cont [9/16] 0.0, 128
        %757 = vxpose.xlu0.b32.cont [10/16] 0.0, 128
        %758 = vxpose.xlu0.b32.cont [11/16] 0.0, 128
        %759 = vxpose.xlu0.b32.cont [12/16] 0.0, 128
        %760 = vxpose.xlu0.b32.cont [13/16] 0.0, 128
        %761 = vxpose.xlu0.b32.cont [14/16] 0.0, 128
        %762 = vxpose.xlu0.b32.cont [15/16] 0.0, 128
        %763 = vxpose.xlu0.b32.end [16/16] 0.0, 128
        %v764 = vpop.trf.xlu0
        %v765 = vpop.trf.xlu0
        %v766 = vpop.trf.xlu0
        %v767 = vpop.trf.xlu0
        %v768 = vpop.trf.xlu0
        %v769 = vpop.trf.xlu0
        %v770 = vpop.trf.xlu0
        %v771 = vpop.trf.xlu0
        %v772 = vpop.trf.xlu0
        %v773 = vpop.trf.xlu0
        %v774 = vpop.trf.xlu0
        %v775 = vpop.trf.xlu0
        %v776 = vpop.trf.xlu0
        %v777 = vpop.trf.xlu0
        %v778 = vpop.trf.xlu0
        %v779 = vpop.trf.xlu0
        %780 = vxpose.xlu0.b32.start [1/16] %v483, 128
        %781 = vxpose.xlu0.b32.cont [2/16] 0.0, 128
        %782 = vxpose.xlu0.b32.cont [3/16] 0.0, 128
        %783 = vxpose.xlu0.b32.cont [4/16] 0.0, 128
        %784 = vxpose.xlu0.b32.cont [5/16] 0.0, 128
        %785 = vxpose.xlu0.b32.cont [6/16] 0.0, 128
        %786 = vxpose.xlu0.b32.cont [7/16] 0.0, 128
        %787 = vxpose.xlu0.b32.cont [8/16] 0.0, 128
        %788 = vxpose.xlu0.b32.cont [9/16] 0.0, 128
        %789 = vxpose.xlu0.b32.cont [10/16] 0.0, 128
        %790 = vxpose.xlu0.b32.cont [11/16] 0.0, 128
        %791 = vxpose.xlu0.b32.cont [12/16] 0.0, 128
        %792 = vxpose.xlu0.b32.cont [13/16] 0.0, 128
        %793 = vxpose.xlu0.b32.cont [14/16] 0.0, 128
        %794 = vxpose.xlu0.b32.cont [15/16] 0.0, 128
        %795 = vxpose.xlu0.b32.end [16/16] 0.0, 128
        %v796 = vpop.trf.xlu0
        %v797 = vpop.trf.xlu0
        %v798 = vpop.trf.xlu0
        %v799 = vpop.trf.xlu0
        %v800 = vpop.trf.xlu0
        %v801 = vpop.trf.xlu0
        %v802 = vpop.trf.xlu0
        %v803 = vpop.trf.xlu0
        %v804 = vpop.trf.xlu0
        %v805 = vpop.trf.xlu0
        %v806 = vpop.trf.xlu0
        %v807 = vpop.trf.xlu0
        %v808 = vpop.trf.xlu0
        %v809 = vpop.trf.xlu0
        %v810 = vpop.trf.xlu0
        %v811 = vpop.trf.xlu0
        %812 = vxpose.xlu0.b32.start [1/16] %v474, 128
        %813 = vxpose.xlu0.b32.cont [2/16] 0.0, 128
        %814 = vxpose.xlu0.b32.cont [3/16] 0.0, 128
        %815 = vxpose.xlu0.b32.cont [4/16] 0.0, 128
        %816 = vxpose.xlu0.b32.cont [5/16] 0.0, 128
        %817 = vxpose.xlu0.b32.cont [6/16] 0.0, 128
        %818 = vxpose.xlu0.b32.cont [7/16] 0.0, 128
        %819 = vxpose.xlu0.b32.cont [8/16] 0.0, 128
        %820 = vxpose.xlu0.b32.cont [9/16] 0.0, 128
        %821 = vxpose.xlu0.b32.cont [10/16] 0.0, 128
        %822 = vxpose.xlu0.b32.cont [11/16] 0.0, 128
        %823 = vxpose.xlu0.b32.cont [12/16] 0.0, 128
        %824 = vxpose.xlu0.b32.cont [13/16] 0.0, 128
        %825 = vxpose.xlu0.b32.cont [14/16] 0.0, 128
        %826 = vxpose.xlu0.b32.cont [15/16] 0.0, 128
        %827 = vxpose.xlu0.b32.end [16/16] 0.0, 128
        %v828 = vpop.trf.xlu0
        %v829 = vpop.trf.xlu0
        %v830 = vpop.trf.xlu0
        %v831 = vpop.trf.xlu0
        %v832 = vpop.trf.xlu0
        %v833 = vpop.trf.xlu0
        %v834 = vpop.trf.xlu0
        %v835 = vpop.trf.xlu0
        %v836 = vpop.trf.xlu0
        %v837 = vpop.trf.xlu0
        %v838 = vpop.trf.xlu0
        %v839 = vpop.trf.xlu0
        %v840 = vpop.trf.xlu0
        %v841 = vpop.trf.xlu0
        %v842 = vpop.trf.xlu0
        %v843 = vpop.trf.xlu0
        %844 = vxpose.xlu0.b32.start [1/16] %v484, 128
        %845 = vxpose.xlu0.b32.cont [2/16] 0.0, 128
        %846 = vxpose.xlu0.b32.cont [3/16] 0.0, 128
        %847 = vxpose.xlu0.b32.cont [4/16] 0.0, 128
        %848 = vxpose.xlu0.b32.cont [5/16] 0.0, 128
        %849 = vxpose.xlu0.b32.cont [6/16] 0.0, 128
        %850 = vxpose.xlu0.b32.cont [7/16] 0.0, 128
        %851 = vxpose.xlu0.b32.cont [8/16] 0.0, 128
        %852 = vxpose.xlu0.b32.cont [9/16] 0.0, 128
        %853 = vxpose.xlu0.b32.cont [10/16] 0.0, 128
        %854 = vxpose.xlu0.b32.cont [11/16] 0.0, 128
        %855 = vxpose.xlu0.b32.cont [12/16] 0.0, 128
        %856 = vxpose.xlu0.b32.cont [13/16] 0.0, 128
        %857 = vxpose.xlu0.b32.cont [14/16] 0.0, 128
        %858 = vxpose.xlu0.b32.cont [15/16] 0.0, 128
        %859 = vxpose.xlu0.b32.end [16/16] 0.0, 128
        %v860 = vpop.trf.xlu0
        %v861 = vpop.trf.xlu0
        %v862 = vpop.trf.xlu0
        %v863 = vpop.trf.xlu0
        %v864 = vpop.trf.xlu0
        %v865 = vpop.trf.xlu0
        %v866 = vpop.trf.xlu0
        %v867 = vpop.trf.xlu0
        %v868 = vpop.trf.xlu0
        %v869 = vpop.trf.xlu0
        %v870 = vpop.trf.xlu0
        %v871 = vpop.trf.xlu0
        %v872 = vpop.trf.xlu0
        %v873 = vpop.trf.xlu0
        %v874 = vpop.trf.xlu0
        %v875 = vpop.trf.xlu0
        %876 = vxpose.xlu0.b32.start [1/16] %v481, 128
        %877 = vxpose.xlu0.b32.cont [2/16] 0.0, 128
        %878 = vxpose.xlu0.b32.cont [3/16] 0.0, 128
        %879 = vxpose.xlu0.b32.cont [4/16] 0.0, 128
        %880 = vxpose.xlu0.b32.cont [5/16] 0.0, 128
        %881 = vxpose.xlu0.b32.cont [6/16] 0.0, 128
        %882 = vxpose.xlu0.b32.cont [7/16] 0.0, 128
        %883 = vxpose.xlu0.b32.cont [8/16] 0.0, 128
        %884 = vxpose.xlu0.b32.cont [9/16] 0.0, 128
        %885 = vxpose.xlu0.b32.cont [10/16] 0.0, 128
        %886 = vxpose.xlu0.b32.cont [11/16] 0.0, 128
        %887 = vxpose.xlu0.b32.cont [12/16] 0.0, 128
        %888 = vxpose.xlu0.b32.cont [13/16] 0.0, 128
        %889 = vxpose.xlu0.b32.cont [14/16] 0.0, 128
        %890 = vxpose.xlu0.b32.cont [15/16] 0.0, 128
        %891 = vxpose.xlu0.b32.end [16/16] 0.0, 128
        %v892 = vpop.trf.xlu0
        %v893 = vpop.trf.xlu0
        %v894 = vpop.trf.xlu0
        %v895 = vpop.trf.xlu0
        %v896 = vpop.trf.xlu0
        %v897 = vpop.trf.xlu0
        %v898 = vpop.trf.xlu0
        %v899 = vpop.trf.xlu0
        %v900 = vpop.trf.xlu0
        %v901 = vpop.trf.xlu0
        %v902 = vpop.trf.xlu0
        %v903 = vpop.trf.xlu0
        %v904 = vpop.trf.xlu0
        %v905 = vpop.trf.xlu0
        %v906 = vpop.trf.xlu0
        %v907 = vpop.trf.xlu0
        %908 = vxpose.xlu0.b32.start [1/16] %v485, 128
        %909 = vxpose.xlu0.b32.cont [2/16] 0.0, 128
        %910 = vxpose.xlu0.b32.cont [3/16] 0.0, 128
        %911 = vxpose.xlu0.b32.cont [4/16] 0.0, 128
        %912 = vxpose.xlu0.b32.cont [5/16] 0.0, 128
        %913 = vxpose.xlu0.b32.cont [6/16] 0.0, 128
        %914 = vxpose.xlu0.b32.cont [7/16] 0.0, 128
        %915 = vxpose.xlu0.b32.cont [8/16] 0.0, 128
        %916 = vxpose.xlu0.b32.cont [9/16] 0.0, 128
        %917 = vxpose.xlu0.b32.cont [10/16] 0.0, 128
        %918 = vxpose.xlu0.b32.cont [11/16] 0.0, 128
        %919 = vxpose.xlu0.b32.cont [12/16] 0.0, 128
        %920 = vxpose.xlu0.b32.cont [13/16] 0.0, 128
        %921 = vxpose.xlu0.b32.cont [14/16] 0.0, 128
        %922 = vxpose.xlu0.b32.cont [15/16] 0.0, 128
        %923 = vxpose.xlu0.b32.end [16/16] 0.0, 128
        %v924 = vpop.trf.xlu0
        %v925 = vpop.trf.xlu0
        %v926 = vpop.trf.xlu0
        %v927 = vpop.trf.xlu0
        %v928 = vpop.trf.xlu0
        %v929 = vpop.trf.xlu0
        %v930 = vpop.trf.xlu0
        %v931 = vpop.trf.xlu0
        %v932 = vpop.trf.xlu0
        %v933 = vpop.trf.xlu0
        %v934 = vpop.trf.xlu0
        %v935 = vpop.trf.xlu0
        %v936 = vpop.trf.xlu0
        %v937 = vpop.trf.xlu0
        %v938 = vpop.trf.xlu0
        %v939 = vpop.trf.xlu0
        %940 = vxpose.xlu0.b32.start [1/16] %v524, 128
        %941 = vxpose.xlu0.b32.cont [2/16] 0.0, 128
        %942 = vxpose.xlu0.b32.cont [3/16] 0.0, 128
        %943 = vxpose.xlu0.b32.cont [4/16] 0.0, 128
        %944 = vxpose.xlu0.b32.cont [5/16] 0.0, 128
        %945 = vxpose.xlu0.b32.cont [6/16] 0.0, 128
        %946 = vxpose.xlu0.b32.cont [7/16] 0.0, 128
        %947 = vxpose.xlu0.b32.cont [8/16] 0.0, 128
        %948 = vxpose.xlu0.b32.cont [9/16] 0.0, 128
        %949 = vxpose.xlu0.b32.cont [10/16] 0.0, 128
        %950 = vxpose.xlu0.b32.cont [11/16] 0.0, 128
        %951 = vxpose.xlu0.b32.cont [12/16] 0.0, 128
        %952 = vxpose.xlu0.b32.cont [13/16] 0.0, 128
        %953 = vxpose.xlu0.b32.cont [14/16] 0.0, 128
        %954 = vxpose.xlu0.b32.cont [15/16] 0.0, 128
        %955 = vxpose.xlu0.b32.end [16/16] 0.0, 128
        %v956 = vpop.trf.xlu0
        %v957 = vpop.trf.xlu0
        %v958 = vpop.trf.xlu0
        %v959 = vpop.trf.xlu0
        %v960 = vpop.trf.xlu0
        %v961 = vpop.trf.xlu0
        %v962 = vpop.trf.xlu0
        %v963 = vpop.trf.xlu0
        %v964 = vpop.trf.xlu0
        %v965 = vpop.trf.xlu0
        %v966 = vpop.trf.xlu0
        %v967 = vpop.trf.xlu0
        %v968 = vpop.trf.xlu0
        %v969 = vpop.trf.xlu0
        %v970 = vpop.trf.xlu0
        %v971 = vpop.trf.xlu0
        %972 = vxpose.xlu0.b32.start [1/16] %v548, 128
        %973 = vxpose.xlu0.b32.cont [2/16] 0.0, 128
        %974 = vxpose.xlu0.b32.cont [3/16] 0.0, 128
        %975 = vxpose.xlu0.b32.cont [4/16] 0.0, 128
        %976 = vxpose.xlu0.b32.cont [5/16] 0.0, 128
        %977 = vxpose.xlu0.b32.cont [6/16] 0.0, 128
        %978 = vxpose.xlu0.b32.cont [7/16] 0.0, 128
        %979 = vxpose.xlu0.b32.cont [8/16] 0.0, 128
        %980 = vxpose.xlu0.b32.cont [9/16] 0.0, 128
        %981 = vxpose.xlu0.b32.cont [10/16] 0.0, 128
        %982 = vxpose.xlu0.b32.cont [11/16] 0.0, 128
        %983 = vxpose.xlu0.b32.cont [12/16] 0.0, 128
        %984 = vxpose.xlu0.b32.cont [13/16] 0.0, 128
        %985 = vxpose.xlu0.b32.cont [14/16] 0.0, 128
        %986 = vxpose.xlu0.b32.cont [15/16] 0.0, 128
        %987 = vxpose.xlu0.b32.end [16/16] 0.0, 128
        %v988 = vpop.trf.xlu0
        %v989 = vpop.trf.xlu0
        %v990 = vpop.trf.xlu0
        %v991 = vpop.trf.xlu0
        %v992 = vpop.trf.xlu0
        %v993 = vpop.trf.xlu0
        %v994 = vpop.trf.xlu0
        %v995 = vpop.trf.xlu0
        %v996 = vpop.trf.xlu0
        %v997 = vpop.trf.xlu0
        %v998 = vpop.trf.xlu0
        %v999 = vpop.trf.xlu0
        %v1000 = vpop.trf.xlu0
        %v1001 = vpop.trf.xlu0
        %v1002 = vpop.trf.xlu0
        %v1003 = vpop.trf.xlu0
        %1004 = vxpose.xlu0.b32.start [1/16] %v531, 128
        %1005 = vxpose.xlu0.b32.cont [2/16] 0.0, 128
        %1006 = vxpose.xlu0.b32.cont [3/16] 0.0, 128
        %1007 = vxpose.xlu0.b32.cont [4/16] 0.0, 128
        %1008 = vxpose.xlu0.b32.cont [5/16] 0.0, 128
        %1009 = vxpose.xlu0.b32.cont [6/16] 0.0, 128
        %1010 = vxpose.xlu0.b32.cont [7/16] 0.0, 128
        %1011 = vxpose.xlu0.b32.cont [8/16] 0.0, 128
        %1012 = vxpose.xlu0.b32.cont [9/16] 0.0, 128
        %1013 = vxpose.xlu0.b32.cont [10/16] 0.0, 128
        %1014 = vxpose.xlu0.b32.cont [11/16] 0.0, 128
        %1015 = vxpose.xlu0.b32.cont [12/16] 0.0, 128
        %1016 = vxpose.xlu0.b32.cont [13/16] 0.0, 128
        %1017 = vxpose.xlu0.b32.cont [14/16] 0.0, 128
        %1018 = vxpose.xlu0.b32.cont [15/16] 0.0, 128
        %1019 = vxpose.xlu0.b32.end [16/16] 0.0, 128
        %v1020 = vpop.trf.xlu0
        %v1021 = vpop.trf.xlu0
        %v1022 = vpop.trf.xlu0
        %v1023 = vpop.trf.xlu0
        %v1024 = vpop.trf.xlu0
        %v1025 = vpop.trf.xlu0
        %v1026 = vpop.trf.xlu0
        %v1027 = vpop.trf.xlu0
        %v1028 = vpop.trf.xlu0
        %v1029 = vpop.trf.xlu0
        %v1030 = vpop.trf.xlu0
        %v1031 = vpop.trf.xlu0
        %v1032 = vpop.trf.xlu0
        %v1033 = vpop.trf.xlu0
        %v1034 = vpop.trf.xlu0
        %v1035 = vpop.trf.xlu0
        %1036 = vxpose.xlu0.b32.start [1/16] %v549, 128
        %1037 = vxpose.xlu0.b32.cont [2/16] 0.0, 128
        %1038 = vxpose.xlu0.b32.cont [3/16] 0.0, 128
        %1039 = vxpose.xlu0.b32.cont [4/16] 0.0, 128
        %1040 = vxpose.xlu0.b32.cont [5/16] 0.0, 128
        %1041 = vxpose.xlu0.b32.cont [6/16] 0.0, 128
        %1042 = vxpose.xlu0.b32.cont [7/16] 0.0, 128
        %1043 = vxpose.xlu0.b32.cont [8/16] 0.0, 128
        %1044 = vxpose.xlu0.b32.cont [9/16] 0.0, 128
        %1045 = vxpose.xlu0.b32.cont [10/16] 0.0, 128
        %1046 = vxpose.xlu0.b32.cont [11/16] 0.0, 128
        %1047 = vxpose.xlu0.b32.cont [12/16] 0.0, 128
        %1048 = vxpose.xlu0.b32.cont [13/16] 0.0, 128
        %1049 = vxpose.xlu0.b32.cont [14/16] 0.0, 128
        %1050 = vxpose.xlu0.b32.cont [15/16] 0.0, 128
        %1051 = vxpose.xlu0.b32.end [16/16] 0.0, 128
        %v1052 = vpop.trf.xlu0
        %v1053 = vpop.trf.xlu0
        %v1054 = vpop.trf.xlu0
        %v1055 = vpop.trf.xlu0
        %v1056 = vpop.trf.xlu0
        %v1057 = vpop.trf.xlu0
        %v1058 = vpop.trf.xlu0
        %v1059 = vpop.trf.xlu0
        %v1060 = vpop.trf.xlu0
        %v1061 = vpop.trf.xlu0
        %v1062 = vpop.trf.xlu0
        %v1063 = vpop.trf.xlu0
        %v1064 = vpop.trf.xlu0
        %v1065 = vpop.trf.xlu0
        %v1066 = vpop.trf.xlu0
        %v1067 = vpop.trf.xlu0
        %1068 = vxpose.xlu0.b32.start [1/16] %v540, 128
        %1069 = vxpose.xlu0.b32.cont [2/16] 0.0, 128
        %1070 = vxpose.xlu0.b32.cont [3/16] 0.0, 128
        %1071 = vxpose.xlu0.b32.cont [4/16] 0.0, 128
        %1072 = vxpose.xlu0.b32.cont [5/16] 0.0, 128
        %1073 = vxpose.xlu0.b32.cont [6/16] 0.0, 128
        %1074 = vxpose.xlu0.b32.cont [7/16] 0.0, 128
        %1075 = vxpose.xlu0.b32.cont [8/16] 0.0, 128
        %1076 = vxpose.xlu0.b32.cont [9/16] 0.0, 128
        %1077 = vxpose.xlu0.b32.cont [10/16] 0.0, 128
        %1078 = vxpose.xlu0.b32.cont [11/16] 0.0, 128
        %1079 = vxpose.xlu0.b32.cont [12/16] 0.0, 128
        %1080 = vxpose.xlu0.b32.cont [13/16] 0.0, 128
        %1081 = vxpose.xlu0.b32.cont [14/16] 0.0, 128
        %1082 = vxpose.xlu0.b32.cont [15/16] 0.0, 128
        %1083 = vxpose.xlu0.b32.end [16/16] 0.0, 128
        %v1084 = vpop.trf.xlu0
        %v1085 = vpop.trf.xlu0
        %v1086 = vpop.trf.xlu0
        %v1087 = vpop.trf.xlu0
        %v1088 = vpop.trf.xlu0
        %v1089 = vpop.trf.xlu0
        %v1090 = vpop.trf.xlu0
        %v1091 = vpop.trf.xlu0
        %v1092 = vpop.trf.xlu0
        %v1093 = vpop.trf.xlu0
        %v1094 = vpop.trf.xlu0
        %v1095 = vpop.trf.xlu0
        %v1096 = vpop.trf.xlu0
        %v1097 = vpop.trf.xlu0
        %v1098 = vpop.trf.xlu0
        %v1099 = vpop.trf.xlu0
        %1100 = vxpose.xlu0.b32.start [1/16] %v550, 128
        %1101 = vxpose.xlu0.b32.cont [2/16] 0.0, 128
        %1102 = vxpose.xlu0.b32.cont [3/16] 0.0, 128
        %1103 = vxpose.xlu0.b32.cont [4/16] 0.0, 128
        %1104 = vxpose.xlu0.b32.cont [5/16] 0.0, 128
        %1105 = vxpose.xlu0.b32.cont [6/16] 0.0, 128
        %1106 = vxpose.xlu0.b32.cont [7/16] 0.0, 128
        %1107 = vxpose.xlu0.b32.cont [8/16] 0.0, 128
        %1108 = vxpose.xlu0.b32.cont [9/16] 0.0, 128
        %1109 = vxpose.xlu0.b32.cont [10/16] 0.0, 128
        %1110 = vxpose.xlu0.b32.cont [11/16] 0.0, 128
        %1111 = vxpose.xlu0.b32.cont [12/16] 0.0, 128
        %1112 = vxpose.xlu0.b32.cont [13/16] 0.0, 128
        %1113 = vxpose.xlu0.b32.cont [14/16] 0.0, 128
        %1114 = vxpose.xlu0.b32.cont [15/16] 0.0, 128
        %1115 = vxpose.xlu0.b32.end [16/16] 0.0, 128
        %v1116 = vpop.trf.xlu0
        %v1117 = vpop.trf.xlu0
        %v1118 = vpop.trf.xlu0
        %v1119 = vpop.trf.xlu0
        %v1120 = vpop.trf.xlu0
        %v1121 = vpop.trf.xlu0
        %v1122 = vpop.trf.xlu0
        %v1123 = vpop.trf.xlu0
        %v1124 = vpop.trf.xlu0
        %v1125 = vpop.trf.xlu0
        %v1126 = vpop.trf.xlu0
        %v1127 = vpop.trf.xlu0
        %v1128 = vpop.trf.xlu0
        %v1129 = vpop.trf.xlu0
        %v1130 = vpop.trf.xlu0
        %v1131 = vpop.trf.xlu0
        %1132 = vxpose.xlu0.b32.start [1/16] %v547, 128
        %1133 = vxpose.xlu0.b32.cont [2/16] 0.0, 128
        %1134 = vxpose.xlu0.b32.cont [3/16] 0.0, 128
        %1135 = vxpose.xlu0.b32.cont [4/16] 0.0, 128
        %1136 = vxpose.xlu0.b32.cont [5/16] 0.0, 128
        %1137 = vxpose.xlu0.b32.cont [6/16] 0.0, 128
        %1138 = vxpose.xlu0.b32.cont [7/16] 0.0, 128
        %1139 = vxpose.xlu0.b32.cont [8/16] 0.0, 128
        %1140 = vxpose.xlu0.b32.cont [9/16] 0.0, 128
        %1141 = vxpose.xlu0.b32.cont [10/16] 0.0, 128
        %1142 = vxpose.xlu0.b32.cont [11/16] 0.0, 128
        %1143 = vxpose.xlu0.b32.cont [12/16] 0.0, 128
        %1144 = vxpose.xlu0.b32.cont [13/16] 0.0, 128
        %1145 = vxpose.xlu0.b32.cont [14/16] 0.0, 128
        %1146 = vxpose.xlu0.b32.cont [15/16] 0.0, 128
        %1147 = vxpose.xlu0.b32.end [16/16] 0.0, 128
        %v1148 = vpop.trf.xlu0
        %v1149 = vpop.trf.xlu0
        %v1150 = vpop.trf.xlu0
        %v1151 = vpop.trf.xlu0
        %v1152 = vpop.trf.xlu0
        %v1153 = vpop.trf.xlu0
        %v1154 = vpop.trf.xlu0
        %v1155 = vpop.trf.xlu0
        %v1156 = vpop.trf.xlu0
        %v1157 = vpop.trf.xlu0
        %v1158 = vpop.trf.xlu0
        %v1159 = vpop.trf.xlu0
        %v1160 = vpop.trf.xlu0
        %v1161 = vpop.trf.xlu0
        %v1162 = vpop.trf.xlu0
        %v1163 = vpop.trf.xlu0
        %1164 = vxpose.xlu0.b32.start [1/16] %v551, 128
        %1165 = vxpose.xlu0.b32.cont [2/16] 0.0, 128
        %1166 = vxpose.xlu0.b32.cont [3/16] 0.0, 128
        %1167 = vxpose.xlu0.b32.cont [4/16] 0.0, 128
        %1168 = vxpose.xlu0.b32.cont [5/16] 0.0, 128
        %1169 = vxpose.xlu0.b32.cont [6/16] 0.0, 128
        %1170 = vxpose.xlu0.b32.cont [7/16] 0.0, 128
        %1171 = vxpose.xlu0.b32.cont [8/16] 0.0, 128
        %1172 = vxpose.xlu0.b32.cont [9/16] 0.0, 128
        %1173 = vxpose.xlu0.b32.cont [10/16] 0.0, 128
        %1174 = vxpose.xlu0.b32.cont [11/16] 0.0, 128
        %1175 = vxpose.xlu0.b32.cont [12/16] 0.0, 128
        %1176 = vxpose.xlu0.b32.cont [13/16] 0.0, 128
        %1177 = vxpose.xlu0.b32.cont [14/16] 0.0, 128
        %1178 = vxpose.xlu0.b32.cont [15/16] 0.0, 128
        %1179 = vxpose.xlu0.b32.end [16/16] 0.0, 128
        %v1180 = vpop.trf.xlu0
        %v1181 = vpop.trf.xlu0
        %v1182 = vpop.trf.xlu0
        %v1183 = vpop.trf.xlu0
        %v1184 = vpop.trf.xlu0
        %v1185 = vpop.trf.xlu0
        %v1186 = vpop.trf.xlu0
        %v1187 = vpop.trf.xlu0
        %v1188 = vpop.trf.xlu0
        %v1189 = vpop.trf.xlu0
        %v1190 = vpop.trf.xlu0
        %v1191 = vpop.trf.xlu0
        %v1192 = vpop.trf.xlu0
        %v1193 = vpop.trf.xlu0
        %v1194 = vpop.trf.xlu0
        %v1195 = vpop.trf.xlu0
        %1196 = vxpose.xlu0.b32.start [1/16] %v590, 128
        %1197 = vxpose.xlu0.b32.cont [2/16] 0.0, 128
        %1198 = vxpose.xlu0.b32.cont [3/16] 0.0, 128
        %1199 = vxpose.xlu0.b32.cont [4/16] 0.0, 128
        %1200 = vxpose.xlu0.b32.cont [5/16] 0.0, 128
        %1201 = vxpose.xlu0.b32.cont [6/16] 0.0, 128
        %1202 = vxpose.xlu0.b32.cont [7/16] 0.0, 128
        %1203 = vxpose.xlu0.b32.cont [8/16] 0.0, 128
        %1204 = vxpose.xlu0.b32.cont [9/16] 0.0, 128
        %1205 = vxpose.xlu0.b32.cont [10/16] 0.0, 128
        %1206 = vxpose.xlu0.b32.cont [11/16] 0.0, 128
        %1207 = vxpose.xlu0.b32.cont [12/16] 0.0, 128
        %1208 = vxpose.xlu0.b32.cont [13/16] 0.0, 128
        %1209 = vxpose.xlu0.b32.cont [14/16] 0.0, 128
        %1210 = vxpose.xlu0.b32.cont [15/16] 0.0, 128
        %1211 = vxpose.xlu0.b32.end [16/16] 0.0, 128
        %v1212 = vpop.trf.xlu0
        %v1213 = vpop.trf.xlu0
        %v1214 = vpop.trf.xlu0
        %v1215 = vpop.trf.xlu0
        %v1216 = vpop.trf.xlu0
        %v1217 = vpop.trf.xlu0
        %v1218 = vpop.trf.xlu0
        %v1219 = vpop.trf.xlu0
        %v1220 = vpop.trf.xlu0
        %v1221 = vpop.trf.xlu0
        %v1222 = vpop.trf.xlu0
        %v1223 = vpop.trf.xlu0
        %v1224 = vpop.trf.xlu0
        %v1225 = vpop.trf.xlu0
        %v1226 = vpop.trf.xlu0
        %v1227 = vpop.trf.xlu0
        %1228 = vxpose.xlu0.b32.start [1/16] %v614, 128
        %1229 = vxpose.xlu0.b32.cont [2/16] 0.0, 128
        %1230 = vxpose.xlu0.b32.cont [3/16] 0.0, 128
        %1231 = vxpose.xlu0.b32.cont [4/16] 0.0, 128
        %1232 = vxpose.xlu0.b32.cont [5/16] 0.0, 128
        %1233 = vxpose.xlu0.b32.cont [6/16] 0.0, 128
        %1234 = vxpose.xlu0.b32.cont [7/16] 0.0, 128
        %1235 = vxpose.xlu0.b32.cont [8/16] 0.0, 128
        %1236 = vxpose.xlu0.b32.cont [9/16] 0.0, 128
        %1237 = vxpose.xlu0.b32.cont [10/16] 0.0, 128
        %1238 = vxpose.xlu0.b32.cont [11/16] 0.0, 128
        %1239 = vxpose.xlu0.b32.cont [12/16] 0.0, 128
        %1240 = vxpose.xlu0.b32.cont [13/16] 0.0, 128
        %1241 = vxpose.xlu0.b32.cont [14/16] 0.0, 128
        %1242 = vxpose.xlu0.b32.cont [15/16] 0.0, 128
        %1243 = vxpose.xlu0.b32.end [16/16] 0.0, 128
        %v1244 = vpop.trf.xlu0
        %v1245 = vpop.trf.xlu0
        %v1246 = vpop.trf.xlu0
        %v1247 = vpop.trf.xlu0
        %v1248 = vpop.trf.xlu0
        %v1249 = vpop.trf.xlu0
        %v1250 = vpop.trf.xlu0
        %v1251 = vpop.trf.xlu0
        %v1252 = vpop.trf.xlu0
        %v1253 = vpop.trf.xlu0
        %v1254 = vpop.trf.xlu0
        %v1255 = vpop.trf.xlu0
        %v1256 = vpop.trf.xlu0
        %v1257 = vpop.trf.xlu0
        %v1258 = vpop.trf.xlu0
        %v1259 = vpop.trf.xlu0
        %1260 = vxpose.xlu0.b32.start [1/16] %v597, 128
        %1261 = vxpose.xlu0.b32.cont [2/16] 0.0, 128
        %1262 = vxpose.xlu0.b32.cont [3/16] 0.0, 128
        %1263 = vxpose.xlu0.b32.cont [4/16] 0.0, 128
        %1264 = vxpose.xlu0.b32.cont [5/16] 0.0, 128
        %1265 = vxpose.xlu0.b32.cont [6/16] 0.0, 128
        %1266 = vxpose.xlu0.b32.cont [7/16] 0.0, 128
        %1267 = vxpose.xlu0.b32.cont [8/16] 0.0, 128
        %1268 = vxpose.xlu0.b32.cont [9/16] 0.0, 128
        %1269 = vxpose.xlu0.b32.cont [10/16] 0.0, 128
        %1270 = vxpose.xlu0.b32.cont [11/16] 0.0, 128
        %1271 = vxpose.xlu0.b32.cont [12/16] 0.0, 128
        %1272 = vxpose.xlu0.b32.cont [13/16] 0.0, 128
        %1273 = vxpose.xlu0.b32.cont [14/16] 0.0, 128
        %1274 = vxpose.xlu0.b32.cont [15/16] 0.0, 128
        %1275 = vxpose.xlu0.b32.end [16/16] 0.0, 128
        %v1276 = vpop.trf.xlu0
        %v1277 = vpop.trf.xlu0
        %v1278 = vpop.trf.xlu0
        %v1279 = vpop.trf.xlu0
        %v1280 = vpop.trf.xlu0
        %v1281 = vpop.trf.xlu0
        %v1282 = vpop.trf.xlu0
        %v1283 = vpop.trf.xlu0
        %v1284 = vpop.trf.xlu0
        %v1285 = vpop.trf.xlu0
        %v1286 = vpop.trf.xlu0
        %v1287 = vpop.trf.xlu0
        %v1288 = vpop.trf.xlu0
        %v1289 = vpop.trf.xlu0
        %v1290 = vpop.trf.xlu0
        %v1291 = vpop.trf.xlu0
        %1292 = vxpose.xlu0.b32.start [1/16] %v615, 128
        %1293 = vxpose.xlu0.b32.cont [2/16] 0.0, 128
        %1294 = vxpose.xlu0.b32.cont [3/16] 0.0, 128
        %1295 = vxpose.xlu0.b32.cont [4/16] 0.0, 128
        %1296 = vxpose.xlu0.b32.cont [5/16] 0.0, 128
        %1297 = vxpose.xlu0.b32.cont [6/16] 0.0, 128
        %1298 = vxpose.xlu0.b32.cont [7/16] 0.0, 128
        %1299 = vxpose.xlu0.b32.cont [8/16] 0.0, 128
        %1300 = vxpose.xlu0.b32.cont [9/16] 0.0, 128
        %1301 = vxpose.xlu0.b32.cont [10/16] 0.0, 128
        %1302 = vxpose.xlu0.b32.cont [11/16] 0.0, 128
        %1303 = vxpose.xlu0.b32.cont [12/16] 0.0, 128
        %1304 = vxpose.xlu0.b32.cont [13/16] 0.0, 128
        %1305 = vxpose.xlu0.b32.cont [14/16] 0.0, 128
        %1306 = vxpose.xlu0.b32.cont [15/16] 0.0, 128
        %1307 = vxpose.xlu0.b32.end [16/16] 0.0, 128
        %v1308 = vpop.trf.xlu0
        %v1309 = vpop.trf.xlu0
        %v1310 = vpop.trf.xlu0
        %v1311 = vpop.trf.xlu0
        %v1312 = vpop.trf.xlu0
        %v1313 = vpop.trf.xlu0
        %v1314 = vpop.trf.xlu0
        %v1315 = vpop.trf.xlu0
        %v1316 = vpop.trf.xlu0
        %v1317 = vpop.trf.xlu0
        %v1318 = vpop.trf.xlu0
        %v1319 = vpop.trf.xlu0
        %v1320 = vpop.trf.xlu0
        %v1321 = vpop.trf.xlu0
        %v1322 = vpop.trf.xlu0
        %v1323 = vpop.trf.xlu0
        %1324 = vxpose.xlu0.b32.start [1/16] %v606, 128
        %1325 = vxpose.xlu0.b32.cont [2/16] 0.0, 128
        %1326 = vxpose.xlu0.b32.cont [3/16] 0.0, 128
        %1327 = vxpose.xlu0.b32.cont [4/16] 0.0, 128
        %1328 = vxpose.xlu0.b32.cont [5/16] 0.0, 128
        %1329 = vxpose.xlu0.b32.cont [6/16] 0.0, 128
        %1330 = vxpose.xlu0.b32.cont [7/16] 0.0, 128
        %1331 = vxpose.xlu0.b32.cont [8/16] 0.0, 128
        %1332 = vxpose.xlu0.b32.cont [9/16] 0.0, 128
        %1333 = vxpose.xlu0.b32.cont [10/16] 0.0, 128
        %1334 = vxpose.xlu0.b32.cont [11/16] 0.0, 128
        %1335 = vxpose.xlu0.b32.cont [12/16] 0.0, 128
        %1336 = vxpose.xlu0.b32.cont [13/16] 0.0, 128
        %1337 = vxpose.xlu0.b32.cont [14/16] 0.0, 128
        %1338 = vxpose.xlu0.b32.cont [15/16] 0.0, 128
        %1339 = vxpose.xlu0.b32.end [16/16] 0.0, 128
        %v1340 = vpop.trf.xlu0
        %v1341 = vpop.trf.xlu0
        %v1342 = vpop.trf.xlu0
        %v1343 = vpop.trf.xlu0
        %v1344 = vpop.trf.xlu0
        %v1345 = vpop.trf.xlu0
        %v1346 = vpop.trf.xlu0
        %v1347 = vpop.trf.xlu0
        %v1348 = vpop.trf.xlu0
        %v1349 = vpop.trf.xlu0
        %v1350 = vpop.trf.xlu0
        %v1351 = vpop.trf.xlu0
        %v1352 = vpop.trf.xlu0
        %v1353 = vpop.trf.xlu0
        %v1354 = vpop.trf.xlu0
        %v1355 = vpop.trf.xlu0
        %1356 = vxpose.xlu0.b32.start [1/16] %v616, 128
        %1357 = vxpose.xlu0.b32.cont [2/16] 0.0, 128
        %1358 = vxpose.xlu0.b32.cont [3/16] 0.0, 128
        %1359 = vxpose.xlu0.b32.cont [4/16] 0.0, 128
        %1360 = vxpose.xlu0.b32.cont [5/16] 0.0, 128
        %1361 = vxpose.xlu0.b32.cont [6/16] 0.0, 128
        %1362 = vxpose.xlu0.b32.cont [7/16] 0.0, 128
        %1363 = vxpose.xlu0.b32.cont [8/16] 0.0, 128
        %1364 = vxpose.xlu0.b32.cont [9/16] 0.0, 128
        %1365 = vxpose.xlu0.b32.cont [10/16] 0.0, 128
        %1366 = vxpose.xlu0.b32.cont [11/16] 0.0, 128
        %1367 = vxpose.xlu0.b32.cont [12/16] 0.0, 128
        %1368 = vxpose.xlu0.b32.cont [13/16] 0.0, 128
        %1369 = vxpose.xlu0.b32.cont [14/16] 0.0, 128
        %1370 = vxpose.xlu0.b32.cont [15/16] 0.0, 128
        %1371 = vxpose.xlu0.b32.end [16/16] 0.0, 128
        %v1372 = vpop.trf.xlu0
        %v1373 = vpop.trf.xlu0
        %v1374 = vpop.trf.xlu0
        %v1375 = vpop.trf.xlu0
        %v1376 = vpop.trf.xlu0
        %v1377 = vpop.trf.xlu0
        %v1378 = vpop.trf.xlu0
        %v1379 = vpop.trf.xlu0
        %v1380 = vpop.trf.xlu0
        %v1381 = vpop.trf.xlu0
        %v1382 = vpop.trf.xlu0
        %v1383 = vpop.trf.xlu0
        %v1384 = vpop.trf.xlu0
        %v1385 = vpop.trf.xlu0
        %v1386 = vpop.trf.xlu0
        %v1387 = vpop.trf.xlu0
        %1388 = vxpose.xlu0.b32.start [1/16] %v613, 128
        %1389 = vxpose.xlu0.b32.cont [2/16] 0.0, 128
        %1390 = vxpose.xlu0.b32.cont [3/16] 0.0, 128
        %1391 = vxpose.xlu0.b32.cont [4/16] 0.0, 128
        %1392 = vxpose.xlu0.b32.cont [5/16] 0.0, 128
        %1393 = vxpose.xlu0.b32.cont [6/16] 0.0, 128
        %1394 = vxpose.xlu0.b32.cont [7/16] 0.0, 128
        %1395 = vxpose.xlu0.b32.cont [8/16] 0.0, 128
        %1396 = vxpose.xlu0.b32.cont [9/16] 0.0, 128
        %1397 = vxpose.xlu0.b32.cont [10/16] 0.0, 128
        %1398 = vxpose.xlu0.b32.cont [11/16] 0.0, 128
        %1399 = vxpose.xlu0.b32.cont [12/16] 0.0, 128
        %1400 = vxpose.xlu0.b32.cont [13/16] 0.0, 128
        %1401 = vxpose.xlu0.b32.cont [14/16] 0.0, 128
        %1402 = vxpose.xlu0.b32.cont [15/16] 0.0, 128
        %1403 = vxpose.xlu0.b32.end [16/16] 0.0, 128
        %v1404 = vpop.trf.xlu0
        %v1405 = vpop.trf.xlu0
        %v1406 = vpop.trf.xlu0
        %v1407 = vpop.trf.xlu0
        %v1408 = vpop.trf.xlu0
        %v1409 = vpop.trf.xlu0
        %v1410 = vpop.trf.xlu0
        %v1411 = vpop.trf.xlu0
        %v1412 = vpop.trf.xlu0
        %v1413 = vpop.trf.xlu0
        %v1414 = vpop.trf.xlu0
        %v1415 = vpop.trf.xlu0
        %v1416 = vpop.trf.xlu0
        %v1417 = vpop.trf.xlu0
        %v1418 = vpop.trf.xlu0
        %v1419 = vpop.trf.xlu0
        %1420 = vxpose.xlu0.b32.start [1/16] %v617, 128
        %1421 = vxpose.xlu0.b32.cont [2/16] 0.0, 128
        %1422 = vxpose.xlu0.b32.cont [3/16] 0.0, 128
        %1423 = vxpose.xlu0.b32.cont [4/16] 0.0, 128
        %1424 = vxpose.xlu0.b32.cont [5/16] 0.0, 128
        %1425 = vxpose.xlu0.b32.cont [6/16] 0.0, 128
        %1426 = vxpose.xlu0.b32.cont [7/16] 0.0, 128
        %1427 = vxpose.xlu0.b32.cont [8/16] 0.0, 128
        %1428 = vxpose.xlu0.b32.cont [9/16] 0.0, 128
        %1429 = vxpose.xlu0.b32.cont [10/16] 0.0, 128
        %1430 = vxpose.xlu0.b32.cont [11/16] 0.0, 128
        %1431 = vxpose.xlu0.b32.cont [12/16] 0.0, 128
        %1432 = vxpose.xlu0.b32.cont [13/16] 0.0, 128
        %1433 = vxpose.xlu0.b32.cont [14/16] 0.0, 128
        %1434 = vxpose.xlu0.b32.cont [15/16] 0.0, 128
        %1435 = vxpose.xlu0.b32.end [16/16] 0.0, 128
        %v1436 = vpop.trf.xlu0
        %v1437 = vpop.trf.xlu0
        %v1438 = vpop.trf.xlu0
        %v1439 = vpop.trf.xlu0
        %v1440 = vpop.trf.xlu0
        %v1441 = vpop.trf.xlu0
        %v1442 = vpop.trf.xlu0
        %v1443 = vpop.trf.xlu0
        %v1444 = vpop.trf.xlu0
        %v1445 = vpop.trf.xlu0
        %v1446 = vpop.trf.xlu0
        %v1447 = vpop.trf.xlu0
        %v1448 = vpop.trf.xlu0
        %v1449 = vpop.trf.xlu0
        %v1450 = vpop.trf.xlu0
        %v1451 = vpop.trf.xlu0
        %1452 = vxpose.xlu0.b32.start [1/16] %v656, 128
        %1453 = vxpose.xlu0.b32.cont [2/16] 0.0, 128
        %1454 = vxpose.xlu0.b32.cont [3/16] 0.0, 128
        %1455 = vxpose.xlu0.b32.cont [4/16] 0.0, 128
        %1456 = vxpose.xlu0.b32.cont [5/16] 0.0, 128
        %1457 = vxpose.xlu0.b32.cont [6/16] 0.0, 128
        %1458 = vxpose.xlu0.b32.cont [7/16] 0.0, 128
        %1459 = vxpose.xlu0.b32.cont [8/16] 0.0, 128
        %1460 = vxpose.xlu0.b32.cont [9/16] 0.0, 128
        %1461 = vxpose.xlu0.b32.cont [10/16] 0.0, 128
        %1462 = vxpose.xlu0.b32.cont [11/16] 0.0, 128
        %1463 = vxpose.xlu0.b32.cont [12/16] 0.0, 128
        %1464 = vxpose.xlu0.b32.cont [13/16] 0.0, 128
        %1465 = vxpose.xlu0.b32.cont [14/16] 0.0, 128
        %1466 = vxpose.xlu0.b32.cont [15/16] 0.0, 128
        %1467 = vxpose.xlu0.b32.end [16/16] 0.0, 128
        %v1468 = vpop.trf.xlu0
        %v1469 = vpop.trf.xlu0
        %v1470 = vpop.trf.xlu0
        %v1471 = vpop.trf.xlu0
        %v1472 = vpop.trf.xlu0
        %v1473 = vpop.trf.xlu0
        %v1474 = vpop.trf.xlu0
        %v1475 = vpop.trf.xlu0
        %v1476 = vpop.trf.xlu0
        %v1477 = vpop.trf.xlu0
        %v1478 = vpop.trf.xlu0
        %v1479 = vpop.trf.xlu0
        %v1480 = vpop.trf.xlu0
        %v1481 = vpop.trf.xlu0
        %v1482 = vpop.trf.xlu0
        %v1483 = vpop.trf.xlu0
        %1484 = vxpose.xlu0.b32.start [1/16] %v680, 128
        %1485 = vxpose.xlu0.b32.cont [2/16] 0.0, 128
        %1486 = vxpose.xlu0.b32.cont [3/16] 0.0, 128
        %1487 = vxpose.xlu0.b32.cont [4/16] 0.0, 128
        %1488 = vxpose.xlu0.b32.cont [5/16] 0.0, 128
        %1489 = vxpose.xlu0.b32.cont [6/16] 0.0, 128
        %1490 = vxpose.xlu0.b32.cont [7/16] 0.0, 128
        %1491 = vxpose.xlu0.b32.cont [8/16] 0.0, 128
        %1492 = vxpose.xlu0.b32.cont [9/16] 0.0, 128
        %1493 = vxpose.xlu0.b32.cont [10/16] 0.0, 128
        %1494 = vxpose.xlu0.b32.cont [11/16] 0.0, 128
        %1495 = vxpose.xlu0.b32.cont [12/16] 0.0, 128
        %1496 = vxpose.xlu0.b32.cont [13/16] 0.0, 128
        %1497 = vxpose.xlu0.b32.cont [14/16] 0.0, 128
        %1498 = vxpose.xlu0.b32.cont [15/16] 0.0, 128
        %1499 = vxpose.xlu0.b32.end [16/16] 0.0, 128
        %v1500 = vpop.trf.xlu0
        %v1501 = vpop.trf.xlu0
        %v1502 = vpop.trf.xlu0
        %v1503 = vpop.trf.xlu0
        %v1504 = vpop.trf.xlu0
        %v1505 = vpop.trf.xlu0
        %v1506 = vpop.trf.xlu0
        %v1507 = vpop.trf.xlu0
        %v1508 = vpop.trf.xlu0
        %v1509 = vpop.trf.xlu0
        %v1510 = vpop.trf.xlu0
        %v1511 = vpop.trf.xlu0
        %v1512 = vpop.trf.xlu0
        %v1513 = vpop.trf.xlu0
        %v1514 = vpop.trf.xlu0
        %v1515 = vpop.trf.xlu0
        %1516 = vxpose.xlu0.b32.start [1/16] %v663, 128
        %1517 = vxpose.xlu0.b32.cont [2/16] 0.0, 128
        %1518 = vxpose.xlu0.b32.cont [3/16] 0.0, 128
        %1519 = vxpose.xlu0.b32.cont [4/16] 0.0, 128
        %1520 = vxpose.xlu0.b32.cont [5/16] 0.0, 128
        %1521 = vxpose.xlu0.b32.cont [6/16] 0.0, 128
        %1522 = vxpose.xlu0.b32.cont [7/16] 0.0, 128
        %1523 = vxpose.xlu0.b32.cont [8/16] 0.0, 128
        %1524 = vxpose.xlu0.b32.cont [9/16] 0.0, 128
        %1525 = vxpose.xlu0.b32.cont [10/16] 0.0, 128
        %1526 = vxpose.xlu0.b32.cont [11/16] 0.0, 128
        %1527 = vxpose.xlu0.b32.cont [12/16] 0.0, 128
        %1528 = vxpose.xlu0.b32.cont [13/16] 0.0, 128
        %1529 = vxpose.xlu0.b32.cont [14/16] 0.0, 128
        %1530 = vxpose.xlu0.b32.cont [15/16] 0.0, 128
        %1531 = vxpose.xlu0.b32.end [16/16] 0.0, 128
        %v1532 = vpop.trf.xlu0
        %v1533 = vpop.trf.xlu0
        %v1534 = vpop.trf.xlu0
        %v1535 = vpop.trf.xlu0
        %v1536 = vpop.trf.xlu0
        %v1537 = vpop.trf.xlu0
        %v1538 = vpop.trf.xlu0
        %v1539 = vpop.trf.xlu0
        %v1540 = vpop.trf.xlu0
        %v1541 = vpop.trf.xlu0
        %v1542 = vpop.trf.xlu0
        %v1543 = vpop.trf.xlu0
        %v1544 = vpop.trf.xlu0
        %v1545 = vpop.trf.xlu0
        %v1546 = vpop.trf.xlu0
        %v1547 = vpop.trf.xlu0
        %1548 = vxpose.xlu0.b32.start [1/16] %v681, 128
        %1549 = vxpose.xlu0.b32.cont [2/16] 0.0, 128
        %1550 = vxpose.xlu0.b32.cont [3/16] 0.0, 128
        %1551 = vxpose.xlu0.b32.cont [4/16] 0.0, 128
        %1552 = vxpose.xlu0.b32.cont [5/16] 0.0, 128
        %1553 = vxpose.xlu0.b32.cont [6/16] 0.0, 128
        %1554 = vxpose.xlu0.b32.cont [7/16] 0.0, 128
        %1555 = vxpose.xlu0.b32.cont [8/16] 0.0, 128
        %1556 = vxpose.xlu0.b32.cont [9/16] 0.0, 128
        %1557 = vxpose.xlu0.b32.cont [10/16] 0.0, 128
        %1558 = vxpose.xlu0.b32.cont [11/16] 0.0, 128
        %1559 = vxpose.xlu0.b32.cont [12/16] 0.0, 128
        %1560 = vxpose.xlu0.b32.cont [13/16] 0.0, 128
        %1561 = vxpose.xlu0.b32.cont [14/16] 0.0, 128
        %1562 = vxpose.xlu0.b32.cont [15/16] 0.0, 128
        %1563 = vxpose.xlu0.b32.end [16/16] 0.0, 128
        %v1564 = vpop.trf.xlu0
        %v1565 = vpop.trf.xlu0
        %v1566 = vpop.trf.xlu0
        %v1567 = vpop.trf.xlu0
        %v1568 = vpop.trf.xlu0
        %v1569 = vpop.trf.xlu0
        %v1570 = vpop.trf.xlu0
        %v1571 = vpop.trf.xlu0
        %v1572 = vpop.trf.xlu0
        %v1573 = vpop.trf.xlu0
        %v1574 = vpop.trf.xlu0
        %v1575 = vpop.trf.xlu0
        %v1576 = vpop.trf.xlu0
        %v1577 = vpop.trf.xlu0
        %v1578 = vpop.trf.xlu0
        %v1579 = vpop.trf.xlu0
        %1580 = vxpose.xlu0.b32.start [1/16] %v672, 128
        %1581 = vxpose.xlu0.b32.cont [2/16] 0.0, 128
        %1582 = vxpose.xlu0.b32.cont [3/16] 0.0, 128
        %1583 = vxpose.xlu0.b32.cont [4/16] 0.0, 128
        %1584 = vxpose.xlu0.b32.cont [5/16] 0.0, 128
        %1585 = vxpose.xlu0.b32.cont [6/16] 0.0, 128
        %1586 = vxpose.xlu0.b32.cont [7/16] 0.0, 128
        %1587 = vxpose.xlu0.b32.cont [8/16] 0.0, 128
        %1588 = vxpose.xlu0.b32.cont [9/16] 0.0, 128
        %1589 = vxpose.xlu0.b32.cont [10/16] 0.0, 128
        %1590 = vxpose.xlu0.b32.cont [11/16] 0.0, 128
        %1591 = vxpose.xlu0.b32.cont [12/16] 0.0, 128
        %1592 = vxpose.xlu0.b32.cont [13/16] 0.0, 128
        %1593 = vxpose.xlu0.b32.cont [14/16] 0.0, 128
        %1594 = vxpose.xlu0.b32.cont [15/16] 0.0, 128
        %1595 = vxpose.xlu0.b32.end [16/16] 0.0, 128
        %v1596 = vpop.trf.xlu0
        %v1597 = vpop.trf.xlu0
        %v1598 = vpop.trf.xlu0
        %v1599 = vpop.trf.xlu0
        %v1600 = vpop.trf.xlu0
        %v1601 = vpop.trf.xlu0
        %v1602 = vpop.trf.xlu0
        %v1603 = vpop.trf.xlu0
        %v1604 = vpop.trf.xlu0
        %v1605 = vpop.trf.xlu0
        %v1606 = vpop.trf.xlu0
        %v1607 = vpop.trf.xlu0
        %v1608 = vpop.trf.xlu0
        %v1609 = vpop.trf.xlu0
        %v1610 = vpop.trf.xlu0
        %v1611 = vpop.trf.xlu0
        %1612 = vxpose.xlu0.b32.start [1/16] %v682, 128
        %1613 = vxpose.xlu0.b32.cont [2/16] 0.0, 128
        %1614 = vxpose.xlu0.b32.cont [3/16] 0.0, 128
        %1615 = vxpose.xlu0.b32.cont [4/16] 0.0, 128
        %1616 = vxpose.xlu0.b32.cont [5/16] 0.0, 128
        %1617 = vxpose.xlu0.b32.cont [6/16] 0.0, 128
        %1618 = vxpose.xlu0.b32.cont [7/16] 0.0, 128
        %1619 = vxpose.xlu0.b32.cont [8/16] 0.0, 128
        %1620 = vxpose.xlu0.b32.cont [9/16] 0.0, 128
        %1621 = vxpose.xlu0.b32.cont [10/16] 0.0, 128
        %1622 = vxpose.xlu0.b32.cont [11/16] 0.0, 128
        %1623 = vxpose.xlu0.b32.cont [12/16] 0.0, 128
        %1624 = vxpose.xlu0.b32.cont [13/16] 0.0, 128
        %1625 = vxpose.xlu0.b32.cont [14/16] 0.0, 128
        %1626 = vxpose.xlu0.b32.cont [15/16] 0.0, 128
        %1627 = vxpose.xlu0.b32.end [16/16] 0.0, 128
        %v1628 = vpop.trf.xlu0
        %v1629 = vpop.trf.xlu0
        %v1630 = vpop.trf.xlu0
        %v1631 = vpop.trf.xlu0
        %v1632 = vpop.trf.xlu0
        %v1633 = vpop.trf.xlu0
        %v1634 = vpop.trf.xlu0
        %v1635 = vpop.trf.xlu0
        %v1636 = vpop.trf.xlu0
        %v1637 = vpop.trf.xlu0
        %v1638 = vpop.trf.xlu0
        %v1639 = vpop.trf.xlu0
        %v1640 = vpop.trf.xlu0
        %v1641 = vpop.trf.xlu0
        %v1642 = vpop.trf.xlu0
        %v1643 = vpop.trf.xlu0
        %1644 = vxpose.xlu0.b32.start [1/16] %v679, 128
        %1645 = vxpose.xlu0.b32.cont [2/16] 0.0, 128
        %1646 = vxpose.xlu0.b32.cont [3/16] 0.0, 128
        %1647 = vxpose.xlu0.b32.cont [4/16] 0.0, 128
        %1648 = vxpose.xlu0.b32.cont [5/16] 0.0, 128
        %1649 = vxpose.xlu0.b32.cont [6/16] 0.0, 128
        %1650 = vxpose.xlu0.b32.cont [7/16] 0.0, 128
        %1651 = vxpose.xlu0.b32.cont [8/16] 0.0, 128
        %1652 = vxpose.xlu0.b32.cont [9/16] 0.0, 128
        %1653 = vxpose.xlu0.b32.cont [10/16] 0.0, 128
        %1654 = vxpose.xlu0.b32.cont [11/16] 0.0, 128
        %1655 = vxpose.xlu0.b32.cont [12/16] 0.0, 128
        %1656 = vxpose.xlu0.b32.cont [13/16] 0.0, 128
        %1657 = vxpose.xlu0.b32.cont [14/16] 0.0, 128
        %1658 = vxpose.xlu0.b32.cont [15/16] 0.0, 128
        %1659 = vxpose.xlu0.b32.end [16/16] 0.0, 128
        %v1660 = vpop.trf.xlu0
        %v1661 = vpop.trf.xlu0
        %v1662 = vpop.trf.xlu0
        %v1663 = vpop.trf.xlu0
        %v1664 = vpop.trf.xlu0
        %v1665 = vpop.trf.xlu0
        %v1666 = vpop.trf.xlu0
        %v1667 = vpop.trf.xlu0
        %v1668 = vpop.trf.xlu0
        %v1669 = vpop.trf.xlu0
        %v1670 = vpop.trf.xlu0
        %v1671 = vpop.trf.xlu0
        %v1672 = vpop.trf.xlu0
        %v1673 = vpop.trf.xlu0
        %v1674 = vpop.trf.xlu0
        %v1675 = vpop.trf.xlu0
        %1676 = vxpose.xlu0.b32.start [1/16] %v683, 128
        %1677 = vxpose.xlu0.b32.cont [2/16] 0.0, 128
        %1678 = vxpose.xlu0.b32.cont [3/16] 0.0, 128
        %1679 = vxpose.xlu0.b32.cont [4/16] 0.0, 128
        %1680 = vxpose.xlu0.b32.cont [5/16] 0.0, 128
        %1681 = vxpose.xlu0.b32.cont [6/16] 0.0, 128
        %1682 = vxpose.xlu0.b32.cont [7/16] 0.0, 128
        %1683 = vxpose.xlu0.b32.cont [8/16] 0.0, 128
        %1684 = vxpose.xlu0.b32.cont [9/16] 0.0, 128
        %1685 = vxpose.xlu0.b32.cont [10/16] 0.0, 128
        %1686 = vxpose.xlu0.b32.cont [11/16] 0.0, 128
        %1687 = vxpose.xlu0.b32.cont [12/16] 0.0, 128
        %1688 = vxpose.xlu0.b32.cont [13/16] 0.0, 128
        %1689 = vxpose.xlu0.b32.cont [14/16] 0.0, 128
        %1690 = vxpose.xlu0.b32.cont [15/16] 0.0, 128
        %1691 = vxpose.xlu0.b32.end [16/16] 0.0, 128
        %v1692 = vpop.trf.xlu0
        %v1693 = vpop.trf.xlu0
        %v1694 = vpop.trf.xlu0
        %v1695 = vpop.trf.xlu0
        %v1696 = vpop.trf.xlu0
        %v1697 = vpop.trf.xlu0
        %v1698 = vpop.trf.xlu0
        %v1699 = vpop.trf.xlu0
        %v1700 = vpop.trf.xlu0
        %v1701 = vpop.trf.xlu0
        %v1702 = vpop.trf.xlu0
        %v1703 = vpop.trf.xlu0
        %v1704 = vpop.trf.xlu0
        %v1705 = vpop.trf.xlu0
        %v1706 = vpop.trf.xlu0
        %v1707 = vpop.trf.xlu0
        %v1708 = vcombine.low %v700, %v764
        %v1709 = vcombine.high %v700, %v764
        %v1711 = vunpack.c.l.s4 1983009808
        %v1712 = vunpack.c.0.s8 %v1711
        %v1713 = vlaneseq
        %v1714 = vshrl.u32 %v1713, 7
        %v1715 = vsub.s32 %v1712, %v1714
        %v1716 = vrot.slane %v1708, %v1715
        %v1718 = vunpack.c.l.s4 1983009808
        %v1719 = vunpack.c.0.s8 %v1718
        %v1720 = vlaneseq
        %v1721 = vshrl.u32 %v1720, 7
        %v1722 = vsub.s32 %v1719, %v1721
        %v1723 = vrot.slane %v1709, %v1722
        %v1724 = vcombine.low %v732, %v796
        %v1725 = vcombine.high %v732, %v796
        %v1727 = vunpack.c.l.s4 1983009808
        %v1728 = vunpack.c.0.s8 %v1727
        %v1729 = vlaneseq
        %v1730 = vshrl.u32 %v1729, 7
        %v1731 = vsub.s32 %v1728, %v1730
        %v1732 = vrot.slane %v1724, %v1731
        %v1734 = vunpack.c.l.s4 1983009808
        %v1735 = vunpack.c.0.s8 %v1734
        %v1736 = vlaneseq
        %v1737 = vshrl.u32 %v1736, 7
        %v1738 = vsub.s32 %v1735, %v1737
        %v1739 = vrot.slane %v1725, %v1738
        %v1740 = vcombine.low %v828, %v892
        %v1741 = vcombine.high %v828, %v892
        %v1743 = vunpack.c.l.s4 1983009808
        %v1744 = vunpack.c.0.s8 %v1743
        %v1745 = vlaneseq
        %v1746 = vshrl.u32 %v1745, 7
        %v1747 = vsub.s32 %v1744, %v1746
        %v1748 = vrot.slane %v1740, %v1747
        %v1750 = vunpack.c.l.s4 1983009808
        %v1751 = vunpack.c.0.s8 %v1750
        %v1752 = vlaneseq
        %v1753 = vshrl.u32 %v1752, 7
        %v1754 = vsub.s32 %v1751, %v1753
        %v1755 = vrot.slane %v1741, %v1754
        %v1756 = vcombine.low %v860, %v924
        %v1757 = vcombine.high %v860, %v924
        %v1759 = vunpack.c.l.s4 1983009808
        %v1760 = vunpack.c.0.s8 %v1759
        %v1761 = vlaneseq
        %v1762 = vshrl.u32 %v1761, 7
        %v1763 = vsub.s32 %v1760, %v1762
        %v1764 = vrot.slane %v1756, %v1763
        %v1766 = vunpack.c.l.s4 1983009808
        %v1767 = vunpack.c.0.s8 %v1766
        %v1768 = vlaneseq
        %v1769 = vshrl.u32 %v1768, 7
        %v1770 = vsub.s32 %v1767, %v1769
        %v1771 = vrot.slane %v1757, %v1770
        %v1772 = vcombine.low %v1716, %v1732
        %v1773 = vcombine.high %v1716, %v1732
        %v1775 = vunpack.c.l.s4 1934713408
        %v1776 = vunpack.c.0.s8 %v1775
        %v1777 = vlaneseq
        %v1778 = vshrl.u32 %v1777, 7
        %v1779 = vsub.s32 %v1776, %v1778
        %v1780 = vrot.slane %v1772, %v1779
        %v1782 = vunpack.c.l.s4 1934713408
        %v1783 = vunpack.c.0.s8 %v1782
        %v1784 = vlaneseq
        %v1785 = vshrl.u32 %v1784, 7
        %v1786 = vsub.s32 %v1783, %v1785
        %v1787 = vrot.slane %v1773, %v1786
        %v1788 = vcombine.low %v1723, %v1739
        %v1789 = vcombine.high %v1723, %v1739
        %v1791 = vunpack.c.l.s4 1934713408
        %v1792 = vunpack.c.0.s8 %v1791
        %v1793 = vlaneseq
        %v1794 = vshrl.u32 %v1793, 7
        %v1795 = vsub.s32 %v1792, %v1794
        %v1796 = vrot.slane %v1788, %v1795
        %v1798 = vunpack.c.l.s4 1934713408
        %v1799 = vunpack.c.0.s8 %v1798
        %v1800 = vlaneseq
        %v1801 = vshrl.u32 %v1800, 7
        %v1802 = vsub.s32 %v1799, %v1801
        %v1803 = vrot.slane %v1789, %v1802
        %v1804 = vcombine.low %v1748, %v1764
        %v1805 = vcombine.high %v1748, %v1764
        %v1807 = vunpack.c.l.s4 1934713408
        %v1808 = vunpack.c.0.s8 %v1807
        %v1809 = vlaneseq
        %v1810 = vshrl.u32 %v1809, 7
        %v1811 = vsub.s32 %v1808, %v1810
        %v1812 = vrot.slane %v1804, %v1811
        %v1814 = vunpack.c.l.s4 1934713408
        %v1815 = vunpack.c.0.s8 %v1814
        %v1816 = vlaneseq
        %v1817 = vshrl.u32 %v1816, 7
        %v1818 = vsub.s32 %v1815, %v1817
        %v1819 = vrot.slane %v1805, %v1818
        %v1820 = vcombine.low %v1755, %v1771
        %v1821 = vcombine.high %v1755, %v1771
        %v1823 = vunpack.c.l.s4 1934713408
        %v1824 = vunpack.c.0.s8 %v1823
        %v1825 = vlaneseq
        %v1826 = vshrl.u32 %v1825, 7
        %v1827 = vsub.s32 %v1824, %v1826
        %v1828 = vrot.slane %v1820, %v1827
        %v1830 = vunpack.c.l.s4 1934713408
        %v1831 = vunpack.c.0.s8 %v1830
        %v1832 = vlaneseq
        %v1833 = vshrl.u32 %v1832, 7
        %v1834 = vsub.s32 %v1831, %v1833
        %v1835 = vrot.slane %v1821, %v1834
        %v1836 = vcombine.low %v1780, %v1812
        %v1837 = vcombine.high %v1780, %v1812
        %v1838 = vcombine.low %v1787, %v1819
        %v1839 = vcombine.high %v1787, %v1819
        %v1840 = vcombine.low %v1796, %v1828
        %v1841 = vcombine.high %v1796, %v1828
        %v1842 = vcombine.low %v1803, %v1835
        %v1843 = vcombine.high %v1803, %v1835
        %v1844 = vcombine.low %v956, %v1020
        %v1845 = vcombine.high %v956, %v1020
        %v1847 = vunpack.c.l.s4 1983009808
        %v1848 = vunpack.c.0.s8 %v1847
        %v1849 = vlaneseq
        %v1850 = vshrl.u32 %v1849, 7
        %v1851 = vsub.s32 %v1848, %v1850
        %v1852 = vrot.slane %v1844, %v1851
        %v1854 = vunpack.c.l.s4 1983009808
        %v1855 = vunpack.c.0.s8 %v1854
        %v1856 = vlaneseq
        %v1857 = vshrl.u32 %v1856, 7
        %v1858 = vsub.s32 %v1855, %v1857
        %v1859 = vrot.slane %v1845, %v1858
        %v1860 = vcombine.low %v988, %v1052
        %v1861 = vcombine.high %v988, %v1052
        %v1863 = vunpack.c.l.s4 1983009808
        %v1864 = vunpack.c.0.s8 %v1863
        %v1865 = vlaneseq
        %v1866 = vshrl.u32 %v1865, 7
        %v1867 = vsub.s32 %v1864, %v1866
        %v1868 = vrot.slane %v1860, %v1867
        %v1870 = vunpack.c.l.s4 1983009808
        %v1871 = vunpack.c.0.s8 %v1870
        %v1872 = vlaneseq
        %v1873 = vshrl.u32 %v1872, 7
        %v1874 = vsub.s32 %v1871, %v1873
        %v1875 = vrot.slane %v1861, %v1874
        %v1876 = vcombine.low %v1084, %v1148
        %v1877 = vcombine.high %v1084, %v1148
        %v1879 = vunpack.c.l.s4 1983009808
        %v1880 = vunpack.c.0.s8 %v1879
        %v1881 = vlaneseq
        %v1882 = vshrl.u32 %v1881, 7
        %v1883 = vsub.s32 %v1880, %v1882
        %v1884 = vrot.slane %v1876, %v1883
        %v1886 = vunpack.c.l.s4 1983009808
        %v1887 = vunpack.c.0.s8 %v1886
        %v1888 = vlaneseq
        %v1889 = vshrl.u32 %v1888, 7
        %v1890 = vsub.s32 %v1887, %v1889
        %v1891 = vrot.slane %v1877, %v1890
        %v1892 = vcombine.low %v1116, %v1180
        %v1893 = vcombine.high %v1116, %v1180
        %v1895 = vunpack.c.l.s4 1983009808
        %v1896 = vunpack.c.0.s8 %v1895
        %v1897 = vlaneseq
        %v1898 = vshrl.u32 %v1897, 7
        %v1899 = vsub.s32 %v1896, %v1898
        %v1900 = vrot.slane %v1892, %v1899
        %v1902 = vunpack.c.l.s4 1983009808
        %v1903 = vunpack.c.0.s8 %v1902
        %v1904 = vlaneseq
        %v1905 = vshrl.u32 %v1904, 7
        %v1906 = vsub.s32 %v1903, %v1905
        %v1907 = vrot.slane %v1893, %v1906
        %v1908 = vcombine.low %v1852, %v1868
        %v1909 = vcombine.high %v1852, %v1868
        %v1911 = vunpack.c.l.s4 1934713408
        %v1912 = vunpack.c.0.s8 %v1911
        %v1913 = vlaneseq
        %v1914 = vshrl.u32 %v1913, 7
        %v1915 = vsub.s32 %v1912, %v1914
        %v1916 = vrot.slane %v1908, %v1915
        %v1918 = vunpack.c.l.s4 1934713408
        %v1919 = vunpack.c.0.s8 %v1918
        %v1920 = vlaneseq
        %v1921 = vshrl.u32 %v1920, 7
        %v1922 = vsub.s32 %v1919, %v1921
        %v1923 = vrot.slane %v1909, %v1922
        %v1924 = vcombine.low %v1859, %v1875
        %v1925 = vcombine.high %v1859, %v1875
        %v1927 = vunpack.c.l.s4 1934713408
        %v1928 = vunpack.c.0.s8 %v1927
        %v1929 = vlaneseq
        %v1930 = vshrl.u32 %v1929, 7
        %v1931 = vsub.s32 %v1928, %v1930
        %v1932 = vrot.slane %v1924, %v1931
        %v1934 = vunpack.c.l.s4 1934713408
        %v1935 = vunpack.c.0.s8 %v1934
        %v1936 = vlaneseq
        %v1937 = vshrl.u32 %v1936, 7
        %v1938 = vsub.s32 %v1935, %v1937
        %v1939 = vrot.slane %v1925, %v1938
        %v1940 = vcombine.low %v1884, %v1900
        %v1941 = vcombine.high %v1884, %v1900
        %v1943 = vunpack.c.l.s4 1934713408
        %v1944 = vunpack.c.0.s8 %v1943
        %v1945 = vlaneseq
        %v1946 = vshrl.u32 %v1945, 7
        %v1947 = vsub.s32 %v1944, %v1946
        %v1948 = vrot.slane %v1940, %v1947
        %v1950 = vunpack.c.l.s4 1934713408
        %v1951 = vunpack.c.0.s8 %v1950
        %v1952 = vlaneseq
        %v1953 = vshrl.u32 %v1952, 7
        %v1954 = vsub.s32 %v1951, %v1953
        %v1955 = vrot.slane %v1941, %v1954
        %v1956 = vcombine.low %v1891, %v1907
        %v1957 = vcombine.high %v1891, %v1907
        %v1959 = vunpack.c.l.s4 1934713408
        %v1960 = vunpack.c.0.s8 %v1959
        %v1961 = vlaneseq
        %v1962 = vshrl.u32 %v1961, 7
        %v1963 = vsub.s32 %v1960, %v1962
        %v1964 = vrot.slane %v1956, %v1963
        %v1966 = vunpack.c.l.s4 1934713408
        %v1967 = vunpack.c.0.s8 %v1966
        %v1968 = vlaneseq
        %v1969 = vshrl.u32 %v1968, 7
        %v1970 = vsub.s32 %v1967, %v1969
        %v1971 = vrot.slane %v1957, %v1970
        %v1972 = vcombine.low %v1916, %v1948
        %v1973 = vcombine.high %v1916, %v1948
        %v1974 = vcombine.low %v1923, %v1955
        %v1975 = vcombine.high %v1923, %v1955
        %v1976 = vcombine.low %v1932, %v1964
        %v1977 = vcombine.high %v1932, %v1964
        %v1978 = vcombine.low %v1939, %v1971
        %v1979 = vcombine.high %v1939, %v1971
        %v1980 = vcombine.low %v1212, %v1276
        %v1981 = vcombine.high %v1212, %v1276
        %v1983 = vunpack.c.l.s4 1983009808
        %v1984 = vunpack.c.0.s8 %v1983
        %v1985 = vlaneseq
        %v1986 = vshrl.u32 %v1985, 7
        %v1987 = vsub.s32 %v1984, %v1986
        %v1988 = vrot.slane %v1980, %v1987
        %v1990 = vunpack.c.l.s4 1983009808
        %v1991 = vunpack.c.0.s8 %v1990
        %v1992 = vlaneseq
        %v1993 = vshrl.u32 %v1992, 7
        %v1994 = vsub.s32 %v1991, %v1993
        %v1995 = vrot.slane %v1981, %v1994
        %v1996 = vcombine.low %v1244, %v1308
        %v1997 = vcombine.high %v1244, %v1308
        %v1999 = vunpack.c.l.s4 1983009808
        %v2000 = vunpack.c.0.s8 %v1999
        %v2001 = vlaneseq
        %v2002 = vshrl.u32 %v2001, 7
        %v2003 = vsub.s32 %v2000, %v2002
        %v2004 = vrot.slane %v1996, %v2003
        %v2006 = vunpack.c.l.s4 1983009808
        %v2007 = vunpack.c.0.s8 %v2006
        %v2008 = vlaneseq
        %v2009 = vshrl.u32 %v2008, 7
        %v2010 = vsub.s32 %v2007, %v2009
        %v2011 = vrot.slane %v1997, %v2010
        %v2012 = vcombine.low %v1340, %v1404
        %v2013 = vcombine.high %v1340, %v1404
        %v2015 = vunpack.c.l.s4 1983009808
        %v2016 = vunpack.c.0.s8 %v2015
        %v2017 = vlaneseq
        %v2018 = vshrl.u32 %v2017, 7
        %v2019 = vsub.s32 %v2016, %v2018
        %v2020 = vrot.slane %v2012, %v2019
        %v2022 = vunpack.c.l.s4 1983009808
        %v2023 = vunpack.c.0.s8 %v2022
        %v2024 = vlaneseq
        %v2025 = vshrl.u32 %v2024, 7
        %v2026 = vsub.s32 %v2023, %v2025
        %v2027 = vrot.slane %v2013, %v2026
        %v2028 = vcombine.low %v1372, %v1436
        %v2029 = vcombine.high %v1372, %v1436
        %v2031 = vunpack.c.l.s4 1983009808
        %v2032 = vunpack.c.0.s8 %v2031
        %v2033 = vlaneseq
        %v2034 = vshrl.u32 %v2033, 7
        %v2035 = vsub.s32 %v2032, %v2034
        %v2036 = vrot.slane %v2028, %v2035
        %v2038 = vunpack.c.l.s4 1983009808
        %v2039 = vunpack.c.0.s8 %v2038
        %v2040 = vlaneseq
        %v2041 = vshrl.u32 %v2040, 7
        %v2042 = vsub.s32 %v2039, %v2041
        %v2043 = vrot.slane %v2029, %v2042
        %v2044 = vcombine.low %v1988, %v2004
        %v2045 = vcombine.high %v1988, %v2004
        %v2047 = vunpack.c.l.s4 1934713408
        %v2048 = vunpack.c.0.s8 %v2047
        %v2049 = vlaneseq
        %v2050 = vshrl.u32 %v2049, 7
        %v2051 = vsub.s32 %v2048, %v2050
        %v2052 = vrot.slane %v2044, %v2051
        %v2054 = vunpack.c.l.s4 1934713408
        %v2055 = vunpack.c.0.s8 %v2054
        %v2056 = vlaneseq
        %v2057 = vshrl.u32 %v2056, 7
        %v2058 = vsub.s32 %v2055, %v2057
        %v2059 = vrot.slane %v2045, %v2058
        %v2060 = vcombine.low %v1995, %v2011
        %v2061 = vcombine.high %v1995, %v2011
        %v2063 = vunpack.c.l.s4 1934713408
        %v2064 = vunpack.c.0.s8 %v2063
        %v2065 = vlaneseq
        %v2066 = vshrl.u32 %v2065, 7
        %v2067 = vsub.s32 %v2064, %v2066
        %v2068 = vrot.slane %v2060, %v2067
        %v2070 = vunpack.c.l.s4 1934713408
        %v2071 = vunpack.c.0.s8 %v2070
        %v2072 = vlaneseq
        %v2073 = vshrl.u32 %v2072, 7
        %v2074 = vsub.s32 %v2071, %v2073
        %v2075 = vrot.slane %v2061, %v2074
        %v2076 = vcombine.low %v2020, %v2036
        %v2077 = vcombine.high %v2020, %v2036
        %v2079 = vunpack.c.l.s4 1934713408
        %v2080 = vunpack.c.0.s8 %v2079
        %v2081 = vlaneseq
        %v2082 = vshrl.u32 %v2081, 7
        %v2083 = vsub.s32 %v2080, %v2082
        %v2084 = vrot.slane %v2076, %v2083
        %v2086 = vunpack.c.l.s4 1934713408
        %v2087 = vunpack.c.0.s8 %v2086
        %v2088 = vlaneseq
        %v2089 = vshrl.u32 %v2088, 7
        %v2090 = vsub.s32 %v2087, %v2089
        %v2091 = vrot.slane %v2077, %v2090
        %v2092 = vcombine.low %v2027, %v2043
        %v2093 = vcombine.high %v2027, %v2043
        %v2095 = vunpack.c.l.s4 1934713408
        %v2096 = vunpack.c.0.s8 %v2095
        %v2097 = vlaneseq
        %v2098 = vshrl.u32 %v2097, 7
        %v2099 = vsub.s32 %v2096, %v2098
        %v2100 = vrot.slane %v2092, %v2099
        %v2102 = vunpack.c.l.s4 1934713408
        %v2103 = vunpack.c.0.s8 %v2102
        %v2104 = vlaneseq
        %v2105 = vshrl.u32 %v2104, 7
        %v2106 = vsub.s32 %v2103, %v2105
        %v2107 = vrot.slane %v2093, %v2106
        %v2108 = vcombine.low %v2052, %v2084
        %v2109 = vcombine.high %v2052, %v2084
        %v2110 = vcombine.low %v2059, %v2091
        %v2111 = vcombine.high %v2059, %v2091
        %v2112 = vcombine.low %v2068, %v2100
        %v2113 = vcombine.high %v2068, %v2100
        %v2114 = vcombine.low %v2075, %v2107
        %v2115 = vcombine.high %v2075, %v2107
        %v2116 = vcombine.low %v1468, %v1532
        %v2117 = vcombine.high %v1468, %v1532
        %v2119 = vunpack.c.l.s4 1983009808
        %v2120 = vunpack.c.0.s8 %v2119
        %v2121 = vlaneseq
        %v2122 = vshrl.u32 %v2121, 7
        %v2123 = vsub.s32 %v2120, %v2122
        %v2124 = vrot.slane %v2116, %v2123
        %v2126 = vunpack.c.l.s4 1983009808
        %v2127 = vunpack.c.0.s8 %v2126
        %v2128 = vlaneseq
        %v2129 = vshrl.u32 %v2128, 7
        %v2130 = vsub.s32 %v2127, %v2129
        %v2131 = vrot.slane %v2117, %v2130
        %v2132 = vcombine.low %v1500, %v1564
        %v2133 = vcombine.high %v1500, %v1564
        %v2135 = vunpack.c.l.s4 1983009808
        %v2136 = vunpack.c.0.s8 %v2135
        %v2137 = vlaneseq
        %v2138 = vshrl.u32 %v2137, 7
        %v2139 = vsub.s32 %v2136, %v2138
        %v2140 = vrot.slane %v2132, %v2139
        %v2142 = vunpack.c.l.s4 1983009808
        %v2143 = vunpack.c.0.s8 %v2142
        %v2144 = vlaneseq
        %v2145 = vshrl.u32 %v2144, 7
        %v2146 = vsub.s32 %v2143, %v2145
        %v2147 = vrot.slane %v2133, %v2146
        %v2148 = vcombine.low %v1596, %v1660
        %v2149 = vcombine.high %v1596, %v1660
        %v2151 = vunpack.c.l.s4 1983009808
        %v2152 = vunpack.c.0.s8 %v2151
        %v2153 = vlaneseq
        %v2154 = vshrl.u32 %v2153, 7
        %v2155 = vsub.s32 %v2152, %v2154
        %v2156 = vrot.slane %v2148, %v2155
        %v2158 = vunpack.c.l.s4 1983009808
        %v2159 = vunpack.c.0.s8 %v2158
        %v2160 = vlaneseq
        %v2161 = vshrl.u32 %v2160, 7
        %v2162 = vsub.s32 %v2159, %v2161
        %v2163 = vrot.slane %v2149, %v2162
        %v2164 = vcombine.low %v1628, %v1692
        %v2165 = vcombine.high %v1628, %v1692
        %v2167 = vunpack.c.l.s4 1983009808
        %v2168 = vunpack.c.0.s8 %v2167
        %v2169 = vlaneseq
        %v2170 = vshrl.u32 %v2169, 7
        %v2171 = vsub.s32 %v2168, %v2170
        %v2172 = vrot.slane %v2164, %v2171
        %v2174 = vunpack.c.l.s4 1983009808
        %v2175 = vunpack.c.0.s8 %v2174
        %v2176 = vlaneseq
        %v2177 = vshrl.u32 %v2176, 7
        %v2178 = vsub.s32 %v2175, %v2177
        %v2179 = vrot.slane %v2165, %v2178
        %v2180 = vcombine.low %v2124, %v2140
        %v2181 = vcombine.high %v2124, %v2140
        %v2183 = vunpack.c.l.s4 1934713408
        %v2184 = vunpack.c.0.s8 %v2183
        %v2185 = vlaneseq
        %v2186 = vshrl.u32 %v2185, 7
        %v2187 = vsub.s32 %v2184, %v2186
        %v2188 = vrot.slane %v2180, %v2187
        %v2190 = vunpack.c.l.s4 1934713408
        %v2191 = vunpack.c.0.s8 %v2190
        %v2192 = vlaneseq
        %v2193 = vshrl.u32 %v2192, 7
        %v2194 = vsub.s32 %v2191, %v2193
        %v2195 = vrot.slane %v2181, %v2194
        %v2196 = vcombine.low %v2131, %v2147
        %v2197 = vcombine.high %v2131, %v2147
        %v2199 = vunpack.c.l.s4 1934713408
        %v2200 = vunpack.c.0.s8 %v2199
        %v2201 = vlaneseq
        %v2202 = vshrl.u32 %v2201, 7
        %v2203 = vsub.s32 %v2200, %v2202
        %v2204 = vrot.slane %v2196, %v2203
        %v2206 = vunpack.c.l.s4 1934713408
        %v2207 = vunpack.c.0.s8 %v2206
        %v2208 = vlaneseq
        %v2209 = vshrl.u32 %v2208, 7
        %v2210 = vsub.s32 %v2207, %v2209
        %v2211 = vrot.slane %v2197, %v2210
        %v2212 = vcombine.low %v2156, %v2172
        %v2213 = vcombine.high %v2156, %v2172
        %v2215 = vunpack.c.l.s4 1934713408
        %v2216 = vunpack.c.0.s8 %v2215
        %v2217 = vlaneseq
        %v2218 = vshrl.u32 %v2217, 7
        %v2219 = vsub.s32 %v2216, %v2218
        %v2220 = vrot.slane %v2212, %v2219
        %v2222 = vunpack.c.l.s4 1934713408
        %v2223 = vunpack.c.0.s8 %v2222
        %v2224 = vlaneseq
        %v2225 = vshrl.u32 %v2224, 7
        %v2226 = vsub.s32 %v2223, %v2225
        %v2227 = vrot.slane %v2213, %v2226
        %v2228 = vcombine.low %v2163, %v2179
        %v2229 = vcombine.high %v2163, %v2179
        %v2231 = vunpack.c.l.s4 1934713408
        %v2232 = vunpack.c.0.s8 %v2231
        %v2233 = vlaneseq
        %v2234 = vshrl.u32 %v2233, 7
        %v2235 = vsub.s32 %v2232, %v2234
        %v2236 = vrot.slane %v2228, %v2235
        %v2238 = vunpack.c.l.s4 1934713408
        %v2239 = vunpack.c.0.s8 %v2238
        %v2240 = vlaneseq
        %v2241 = vshrl.u32 %v2240, 7
        %v2242 = vsub.s32 %v2239, %v2241
        %v2243 = vrot.slane %v2229, %v2242
        %v2244 = vcombine.low %v2188, %v2220
        %v2245 = vcombine.high %v2188, %v2220
        %v2246 = vcombine.low %v2195, %v2227
        %v2247 = vcombine.high %v2195, %v2227
        %v2248 = vcombine.low %v2204, %v2236
        %v2249 = vcombine.high %v2204, %v2236
        %v2250 = vcombine.low %v2211, %v2243
        %v2251 = vcombine.high %v2211, %v2243
        %v2253 = vsel %vm271, %v263, 0
        %2255 = vmatprep.subr.mxu0 0.0
        %2256 = vmatpush1.msra.mxu0 %v1836
        %2257 = vmatprep.subr.mxu0 0.0
        %2258 = vmatpush1.msra.mxu0 %v1972
        %2259 = vmatprep.subr.mxu0 0.0
        %2260 = vmatpush1.msra.mxu0 %v2108
        %2261 = vmatprep.subr.mxu0 0.0
        %2262 = vmatpush1.msra.mxu0 %v2244
        %2263 = vmatprep.subr.mxu0 0.0
        %2264 = vmatpush1.msra.mxu0 0.0
        %2265 = vmatprep.subr.mxu0 0.0
        %2266 = vmatpush1.msra.mxu0 0.0
        %2267 = vmatprep.subr.mxu0 0.0
        %2268 = vmatpush1.msra.mxu0 0.0
        %2269 = vmatprep.subr.mxu0 0.0
        %2270 = vmatpush1.msra.mxu0 0.0
        %2271 = vmatprep.subr.mxu0 0.0
        %2272 = vmatpush1.msra.mxu0 0.0
        %2273 = vmatprep.subr.mxu0 0.0
        %2274 = vmatpush1.msra.mxu0 0.0
        %2275 = vmatprep.subr.mxu0 0.0
        %2276 = vmatpush1.msra.mxu0 0.0
        %2277 = vmatprep.subr.mxu0 0.0
        %2278 = vmatpush1.msra.mxu0 0.0
        %2279 = vmatprep.subr.mxu0 0.0
        %2280 = vmatpush1.msra.mxu0 0.0
        %2281 = vmatprep.subr.mxu0 0.0
        %2282 = vmatpush1.msra.mxu0 0.0
        %2283 = vmatprep.subr.mxu0 0.0
        %2284 = vmatpush1.msra.mxu0 0.0
        %2285 = vmatprep.subr.mxu0 0.0
        %2286 = vmatpush1.msra.mxu0 0.0
        %2287 = vmatprep.subr.mxu0 0.0
        %2288 = vmatpush1.msra.mxu0 0.0
        %2289 = vmatprep.subr.mxu0 0.0
        %2290 = vmatpush1.msra.mxu0 0.0
        %2291 = vmatprep.subr.mxu0 0.0
        %2292 = vmatpush1.msra.mxu0 0.0
        %2293 = vmatprep.subr.mxu0 0.0
        %2294 = vmatpush1.msra.mxu0 0.0
        %2295 = vmatprep.subr.mxu0 0.0
        %2296 = vmatpush1.msra.mxu0 0.0
        %2297 = vmatprep.subr.mxu0 0.0
        %2298 = vmatpush1.msra.mxu0 0.0
        %2299 = vmatprep.subr.mxu0 0.0
        %2300 = vmatpush1.msra.mxu0 0.0
        %2301 = vmatprep.subr.mxu0 0.0
        %2302 = vmatpush1.msra.mxu0 0.0
        %2303 = vmatprep.subr.mxu0 0.0
        %2304 = vmatpush1.msra.mxu0 0.0
        %2305 = vmatprep.subr.mxu0 0.0
        %2306 = vmatpush1.msra.mxu0 0.0
        %2307 = vmatprep.subr.mxu0 0.0
        %2308 = vmatpush1.msra.mxu0 0.0
        %2309 = vmatprep.subr.mxu0 0.0
        %2310 = vmatpush1.msra.mxu0 0.0
        %2311 = vmatprep.subr.mxu0 0.0
        %2312 = vmatpush1.msra.mxu0 0.0
        %2313 = vmatprep.subr.mxu0 0.0
        %2314 = vmatpush1.msra.mxu0 0.0
        %2315 = vmatprep.subr.mxu0 0.0
        %2316 = vmatpush1.msra.mxu0 0.0
        %2317 = vmatprep.subr.mxu0 0.0
        %2318 = vmatpush1.msra.mxu0 0.0
        %2319 = vmatprep.mubr.f32.mxu0 0.0
        %2320 = vmatmul.mubr.f32.gmra.mrb[0].mxu0 %v2253
        %v2321 = vpop.f32.mrb[0].mxu0
        %v2322 = vadd.f32 0.0, %v2321
        %v2323 = vpop.f32.mrb[0].mxu0
        %2324 = vdwg.mxu0
        %v2326 = vsel %vm271, %v264, 0
        %2328 = vmatprep.subr.mxu0 0.0
        %2329 = vmatpush1.msra.mxu0 %v1837
        %2330 = vmatprep.subr.mxu0 0.0
        %2331 = vmatpush1.msra.mxu0 %v1973
        %2332 = vmatprep.subr.mxu0 0.0
        %2333 = vmatpush1.msra.mxu0 %v2109
        %2334 = vmatprep.subr.mxu0 0.0
        %2335 = vmatpush1.msra.mxu0 %v2245
        %2336 = vmatprep.subr.mxu0 0.0
        %2337 = vmatpush1.msra.mxu0 0.0
        %2338 = vmatprep.subr.mxu0 0.0
        %2339 = vmatpush1.msra.mxu0 0.0
        %2340 = vmatprep.subr.mxu0 0.0
        %2341 = vmatpush1.msra.mxu0 0.0
        %2342 = vmatprep.subr.mxu0 0.0
        %2343 = vmatpush1.msra.mxu0 0.0
        %2344 = vmatprep.subr.mxu0 0.0
        %2345 = vmatpush1.msra.mxu0 0.0
        %2346 = vmatprep.subr.mxu0 0.0
        %2347 = vmatpush1.msra.mxu0 0.0
        %2348 = vmatprep.subr.mxu0 0.0
        %2349 = vmatpush1.msra.mxu0 0.0
        %2350 = vmatprep.subr.mxu0 0.0
        %2351 = vmatpush1.msra.mxu0 0.0
        %2352 = vmatprep.subr.mxu0 0.0
        %2353 = vmatpush1.msra.mxu0 0.0
        %2354 = vmatprep.subr.mxu0 0.0
        %2355 = vmatpush1.msra.mxu0 0.0
        %2356 = vmatprep.subr.mxu0 0.0
        %2357 = vmatpush1.msra.mxu0 0.0
        %2358 = vmatprep.subr.mxu0 0.0
        %2359 = vmatpush1.msra.mxu0 0.0
        %2360 = vmatprep.subr.mxu0 0.0
        %2361 = vmatpush1.msra.mxu0 0.0
        %2362 = vmatprep.subr.mxu0 0.0
        %2363 = vmatpush1.msra.mxu0 0.0
        %2364 = vmatprep.subr.mxu0 0.0
        %2365 = vmatpush1.msra.mxu0 0.0
        %2366 = vmatprep.subr.mxu0 0.0
        %2367 = vmatpush1.msra.mxu0 0.0
        %2368 = vmatprep.subr.mxu0 0.0
        %2369 = vmatpush1.msra.mxu0 0.0
        %2370 = vmatprep.subr.mxu0 0.0
        %2371 = vmatpush1.msra.mxu0 0.0
        %2372 = vmatprep.subr.mxu0 0.0
        %2373 = vmatpush1.msra.mxu0 0.0
        %2374 = vmatprep.subr.mxu0 0.0
        %2375 = vmatpush1.msra.mxu0 0.0
        %2376 = vmatprep.subr.mxu0 0.0
        %2377 = vmatpush1.msra.mxu0 0.0
        %2378 = vmatprep.subr.mxu0 0.0
        %2379 = vmatpush1.msra.mxu0 0.0
        %2380 = vmatprep.subr.mxu0 0.0
        %2381 = vmatpush1.msra.mxu0 0.0
        %2382 = vmatprep.subr.mxu0 0.0
        %2383 = vmatpush1.msra.mxu0 0.0
        %2384 = vmatprep.subr.mxu0 0.0
        %2385 = vmatpush1.msra.mxu0 0.0
        %2386 = vmatprep.subr.mxu0 0.0
        %2387 = vmatpush1.msra.mxu0 0.0
        %2388 = vmatprep.subr.mxu0 0.0
        %2389 = vmatpush1.msra.mxu0 0.0
        %2390 = vmatprep.subr.mxu0 0.0
        %2391 = vmatpush1.msra.mxu0 0.0
        %2392 = vmatprep.mubr.f32.mxu0 0.0
        %2393 = vmatmul.mubr.f32.gmra.mrb[0].mxu0 %v2326
        %v2394 = vpop.f32.mrb[0].mxu0
        %v2395 = vadd.f32 0.0, %v2394
        %v2396 = vpop.f32.mrb[0].mxu0
        %2397 = vdwg.mxu0
        %v2399 = vsel %vm271, %v265, 0
        %2401 = vmatprep.subr.mxu0 0.0
        %2402 = vmatpush1.msra.mxu0 %v1838
        %2403 = vmatprep.subr.mxu0 0.0
        %2404 = vmatpush1.msra.mxu0 %v1974
        %2405 = vmatprep.subr.mxu0 0.0
        %2406 = vmatpush1.msra.mxu0 %v2110
        %2407 = vmatprep.subr.mxu0 0.0
        %2408 = vmatpush1.msra.mxu0 %v2246
        %2409 = vmatprep.subr.mxu0 0.0
        %2410 = vmatpush1.msra.mxu0 0.0
        %2411 = vmatprep.subr.mxu0 0.0
        %2412 = vmatpush1.msra.mxu0 0.0
        %2413 = vmatprep.subr.mxu0 0.0
        %2414 = vmatpush1.msra.mxu0 0.0
        %2415 = vmatprep.subr.mxu0 0.0
        %2416 = vmatpush1.msra.mxu0 0.0
        %2417 = vmatprep.subr.mxu0 0.0
        %2418 = vmatpush1.msra.mxu0 0.0
        %2419 = vmatprep.subr.mxu0 0.0
        %2420 = vmatpush1.msra.mxu0 0.0
        %2421 = vmatprep.subr.mxu0 0.0
        %2422 = vmatpush1.msra.mxu0 0.0
        %2423 = vmatprep.subr.mxu0 0.0
        %2424 = vmatpush1.msra.mxu0 0.0
        %2425 = vmatprep.subr.mxu0 0.0
        %2426 = vmatpush1.msra.mxu0 0.0
        %2427 = vmatprep.subr.mxu0 0.0
        %2428 = vmatpush1.msra.mxu0 0.0
        %2429 = vmatprep.subr.mxu0 0.0
        %2430 = vmatpush1.msra.mxu0 0.0
        %2431 = vmatprep.subr.mxu0 0.0
        %2432 = vmatpush1.msra.mxu0 0.0
        %2433 = vmatprep.subr.mxu0 0.0
        %2434 = vmatpush1.msra.mxu0 0.0
        %2435 = vmatprep.subr.mxu0 0.0
        %2436 = vmatpush1.msra.mxu0 0.0
        %2437 = vmatprep.subr.mxu0 0.0
        %2438 = vmatpush1.msra.mxu0 0.0
        %2439 = vmatprep.subr.mxu0 0.0
        %2440 = vmatpush1.msra.mxu0 0.0
        %2441 = vmatprep.subr.mxu0 0.0
        %2442 = vmatpush1.msra.mxu0 0.0
        %2443 = vmatprep.subr.mxu0 0.0
        %2444 = vmatpush1.msra.mxu0 0.0
        %2445 = vmatprep.subr.mxu0 0.0
        %2446 = vmatpush1.msra.mxu0 0.0
        %2447 = vmatprep.subr.mxu0 0.0
        %2448 = vmatpush1.msra.mxu0 0.0
        %2449 = vmatprep.subr.mxu0 0.0
        %2450 = vmatpush1.msra.mxu0 0.0
        %2451 = vmatprep.subr.mxu0 0.0
        %2452 = vmatpush1.msra.mxu0 0.0
        %2453 = vmatprep.subr.mxu0 0.0
        %2454 = vmatpush1.msra.mxu0 0.0
        %2455 = vmatprep.subr.mxu0 0.0
        %2456 = vmatpush1.msra.mxu0 0.0
        %2457 = vmatprep.subr.mxu0 0.0
        %2458 = vmatpush1.msra.mxu0 0.0
        %2459 = vmatprep.subr.mxu0 0.0
        %2460 = vmatpush1.msra.mxu0 0.0
        %2461 = vmatprep.subr.mxu0 0.0
        %2462 = vmatpush1.msra.mxu0 0.0
        %2463 = vmatprep.subr.mxu0 0.0
        %2464 = vmatpush1.msra.mxu0 0.0
        %2465 = vmatprep.mubr.f32.mxu0 0.0
        %2466 = vmatmul.mubr.f32.gmra.mrb[0].mxu0 %v2399
        %v2467 = vpop.f32.mrb[0].mxu0
        %v2468 = vadd.f32 0.0, %v2467
        %v2469 = vpop.f32.mrb[0].mxu0
        %2470 = vdwg.mxu0
        %v2472 = vsel %vm271, %v266, 0
        %2474 = vmatprep.subr.mxu0 0.0
        %2475 = vmatpush1.msra.mxu0 %v1839
        %2476 = vmatprep.subr.mxu0 0.0
        %2477 = vmatpush1.msra.mxu0 %v1975
        %2478 = vmatprep.subr.mxu0 0.0
        %2479 = vmatpush1.msra.mxu0 %v2111
        %2480 = vmatprep.subr.mxu0 0.0
        %2481 = vmatpush1.msra.mxu0 %v2247
        %2482 = vmatprep.subr.mxu0 0.0
        %2483 = vmatpush1.msra.mxu0 0.0
        %2484 = vmatprep.subr.mxu0 0.0
        %2485 = vmatpush1.msra.mxu0 0.0
        %2486 = vmatprep.subr.mxu0 0.0
        %2487 = vmatpush1.msra.mxu0 0.0
        %2488 = vmatprep.subr.mxu0 0.0
        %2489 = vmatpush1.msra.mxu0 0.0
        %2490 = vmatprep.subr.mxu0 0.0
        %2491 = vmatpush1.msra.mxu0 0.0
        %2492 = vmatprep.subr.mxu0 0.0
        %2493 = vmatpush1.msra.mxu0 0.0
        %2494 = vmatprep.subr.mxu0 0.0
        %2495 = vmatpush1.msra.mxu0 0.0
        %2496 = vmatprep.subr.mxu0 0.0
        %2497 = vmatpush1.msra.mxu0 0.0
        %2498 = vmatprep.subr.mxu0 0.0
        %2499 = vmatpush1.msra.mxu0 0.0
        %2500 = vmatprep.subr.mxu0 0.0
        %2501 = vmatpush1.msra.mxu0 0.0
        %2502 = vmatprep.subr.mxu0 0.0
        %2503 = vmatpush1.msra.mxu0 0.0
        %2504 = vmatprep.subr.mxu0 0.0
        %2505 = vmatpush1.msra.mxu0 0.0
        %2506 = vmatprep.subr.mxu0 0.0
        %2507 = vmatpush1.msra.mxu0 0.0
        %2508 = vmatprep.subr.mxu0 0.0
        %2509 = vmatpush1.msra.mxu0 0.0
        %2510 = vmatprep.subr.mxu0 0.0
        %2511 = vmatpush1.msra.mxu0 0.0
        %2512 = vmatprep.subr.mxu0 0.0
        %2513 = vmatpush1.msra.mxu0 0.0
        %2514 = vmatprep.subr.mxu0 0.0
        %2515 = vmatpush1.msra.mxu0 0.0
        %2516 = vmatprep.subr.mxu0 0.0
        %2517 = vmatpush1.msra.mxu0 0.0
        %2518 = vmatprep.subr.mxu0 0.0
        %2519 = vmatpush1.msra.mxu0 0.0
        %2520 = vmatprep.subr.mxu0 0.0
        %2521 = vmatpush1.msra.mxu0 0.0
        %2522 = vmatprep.subr.mxu0 0.0
        %2523 = vmatpush1.msra.mxu0 0.0
        %2524 = vmatprep.subr.mxu0 0.0
        %2525 = vmatpush1.msra.mxu0 0.0
        %2526 = vmatprep.subr.mxu0 0.0
        %2527 = vmatpush1.msra.mxu0 0.0
        %2528 = vmatprep.subr.mxu0 0.0
        %2529 = vmatpush1.msra.mxu0 0.0
        %2530 = vmatprep.subr.mxu0 0.0
        %2531 = vmatpush1.msra.mxu0 0.0
        %2532 = vmatprep.subr.mxu0 0.0
        %2533 = vmatpush1.msra.mxu0 0.0
        %2534 = vmatprep.subr.mxu0 0.0
        %2535 = vmatpush1.msra.mxu0 0.0
        %2536 = vmatprep.subr.mxu0 0.0
        %2537 = vmatpush1.msra.mxu0 0.0
        %2538 = vmatprep.mubr.f32.mxu0 0.0
        %2539 = vmatmul.mubr.f32.gmra.mrb[0].mxu0 %v2472
        %v2540 = vpop.f32.mrb[0].mxu0
        %v2541 = vadd.f32 0.0, %v2540
        %v2542 = vpop.f32.mrb[0].mxu0
        %2543 = vdwg.mxu0
        %v2545 = vsel %vm271, %v267, 0
        %2547 = vmatprep.subr.mxu0 0.0
        %2548 = vmatpush1.msra.mxu0 %v1840
        %2549 = vmatprep.subr.mxu0 0.0
        %2550 = vmatpush1.msra.mxu0 %v1976
        %2551 = vmatprep.subr.mxu0 0.0
        %2552 = vmatpush1.msra.mxu0 %v2112
        %2553 = vmatprep.subr.mxu0 0.0
        %2554 = vmatpush1.msra.mxu0 %v2248
        %2555 = vmatprep.subr.mxu0 0.0
        %2556 = vmatpush1.msra.mxu0 0.0
        %2557 = vmatprep.subr.mxu0 0.0
        %2558 = vmatpush1.msra.mxu0 0.0
        %2559 = vmatprep.subr.mxu0 0.0
        %2560 = vmatpush1.msra.mxu0 0.0
        %2561 = vmatprep.subr.mxu0 0.0
        %2562 = vmatpush1.msra.mxu0 0.0
        %2563 = vmatprep.subr.mxu0 0.0
        %2564 = vmatpush1.msra.mxu0 0.0
        %2565 = vmatprep.subr.mxu0 0.0
        %2566 = vmatpush1.msra.mxu0 0.0
        %2567 = vmatprep.subr.mxu0 0.0
        %2568 = vmatpush1.msra.mxu0 0.0
        %2569 = vmatprep.subr.mxu0 0.0
        %2570 = vmatpush1.msra.mxu0 0.0
        %2571 = vmatprep.subr.mxu0 0.0
        %2572 = vmatpush1.msra.mxu0 0.0
        %2573 = vmatprep.subr.mxu0 0.0
        %2574 = vmatpush1.msra.mxu0 0.0
        %2575 = vmatprep.subr.mxu0 0.0
        %2576 = vmatpush1.msra.mxu0 0.0
        %2577 = vmatprep.subr.mxu0 0.0
        %2578 = vmatpush1.msra.mxu0 0.0
        %2579 = vmatprep.subr.mxu0 0.0
        %2580 = vmatpush1.msra.mxu0 0.0
        %2581 = vmatprep.subr.mxu0 0.0
        %2582 = vmatpush1.msra.mxu0 0.0
        %2583 = vmatprep.subr.mxu0 0.0
        %2584 = vmatpush1.msra.mxu0 0.0
        %2585 = vmatprep.subr.mxu0 0.0
        %2586 = vmatpush1.msra.mxu0 0.0
        %2587 = vmatprep.subr.mxu0 0.0
        %2588 = vmatpush1.msra.mxu0 0.0
        %2589 = vmatprep.subr.mxu0 0.0
        %2590 = vmatpush1.msra.mxu0 0.0
        %2591 = vmatprep.subr.mxu0 0.0
        %2592 = vmatpush1.msra.mxu0 0.0
        %2593 = vmatprep.subr.mxu0 0.0
        %2594 = vmatpush1.msra.mxu0 0.0
        %2595 = vmatprep.subr.mxu0 0.0
        %2596 = vmatpush1.msra.mxu0 0.0
        %2597 = vmatprep.subr.mxu0 0.0
        %2598 = vmatpush1.msra.mxu0 0.0
        %2599 = vmatprep.subr.mxu0 0.0
        %2600 = vmatpush1.msra.mxu0 0.0
        %2601 = vmatprep.subr.mxu0 0.0
        %2602 = vmatpush1.msra.mxu0 0.0
        %2603 = vmatprep.subr.mxu0 0.0
        %2604 = vmatpush1.msra.mxu0 0.0
        %2605 = vmatprep.subr.mxu0 0.0
        %2606 = vmatpush1.msra.mxu0 0.0
        %2607 = vmatprep.subr.mxu0 0.0
        %2608 = vmatpush1.msra.mxu0 0.0
        %2609 = vmatprep.subr.mxu0 0.0
        %2610 = vmatpush1.msra.mxu0 0.0
        %2611 = vmatprep.mubr.f32.mxu0 0.0
        %2612 = vmatmul.mubr.f32.gmra.mrb[0].mxu0 %v2545
        %v2613 = vpop.f32.mrb[0].mxu0
        %v2614 = vadd.f32 0.0, %v2613
        %v2615 = vpop.f32.mrb[0].mxu0
        %2616 = vdwg.mxu0
        %v2618 = vsel %vm271, %v268, 0
        %2620 = vmatprep.subr.mxu0 0.0
        %2621 = vmatpush1.msra.mxu0 %v1841
        %2622 = vmatprep.subr.mxu0 0.0
        %2623 = vmatpush1.msra.mxu0 %v1977
        %2624 = vmatprep.subr.mxu0 0.0
        %2625 = vmatpush1.msra.mxu0 %v2113
        %2626 = vmatprep.subr.mxu0 0.0
        %2627 = vmatpush1.msra.mxu0 %v2249
        %2628 = vmatprep.subr.mxu0 0.0
        %2629 = vmatpush1.msra.mxu0 0.0
        %2630 = vmatprep.subr.mxu0 0.0
        %2631 = vmatpush1.msra.mxu0 0.0
        %2632 = vmatprep.subr.mxu0 0.0
        %2633 = vmatpush1.msra.mxu0 0.0
        %2634 = vmatprep.subr.mxu0 0.0
        %2635 = vmatpush1.msra.mxu0 0.0
        %2636 = vmatprep.subr.mxu0 0.0
        %2637 = vmatpush1.msra.mxu0 0.0
        %2638 = vmatprep.subr.mxu0 0.0
        %2639 = vmatpush1.msra.mxu0 0.0
        %2640 = vmatprep.subr.mxu0 0.0
        %2641 = vmatpush1.msra.mxu0 0.0
        %2642 = vmatprep.subr.mxu0 0.0
        %2643 = vmatpush1.msra.mxu0 0.0
        %2644 = vmatprep.subr.mxu0 0.0
        %2645 = vmatpush1.msra.mxu0 0.0
        %2646 = vmatprep.subr.mxu0 0.0
        %2647 = vmatpush1.msra.mxu0 0.0
        %2648 = vmatprep.subr.mxu0 0.0
        %2649 = vmatpush1.msra.mxu0 0.0
        %2650 = vmatprep.subr.mxu0 0.0
        %2651 = vmatpush1.msra.mxu0 0.0
        %2652 = vmatprep.subr.mxu0 0.0
        %2653 = vmatpush1.msra.mxu0 0.0
        %2654 = vmatprep.subr.mxu0 0.0
        %2655 = vmatpush1.msra.mxu0 0.0
        %2656 = vmatprep.subr.mxu0 0.0
        %2657 = vmatpush1.msra.mxu0 0.0
        %2658 = vmatprep.subr.mxu0 0.0
        %2659 = vmatpush1.msra.mxu0 0.0
        %2660 = vmatprep.subr.mxu0 0.0
        %2661 = vmatpush1.msra.mxu0 0.0
        %2662 = vmatprep.subr.mxu0 0.0
        %2663 = vmatpush1.msra.mxu0 0.0
        %2664 = vmatprep.subr.mxu0 0.0
        %2665 = vmatpush1.msra.mxu0 0.0
        %2666 = vmatprep.subr.mxu0 0.0
        %2667 = vmatpush1.msra.mxu0 0.0
        %2668 = vmatprep.subr.mxu0 0.0
        %2669 = vmatpush1.msra.mxu0 0.0
        %2670 = vmatprep.subr.mxu0 0.0
        %2671 = vmatpush1.msra.mxu0 0.0
        %2672 = vmatprep.subr.mxu0 0.0
        %2673 = vmatpush1.msra.mxu0 0.0
        %2674 = vmatprep.subr.mxu0 0.0
        %2675 = vmatpush1.msra.mxu0 0.0
        %2676 = vmatprep.subr.mxu0 0.0
        %2677 = vmatpush1.msra.mxu0 0.0
        %2678 = vmatprep.subr.mxu0 0.0
        %2679 = vmatpush1.msra.mxu0 0.0
        %2680 = vmatprep.subr.mxu0 0.0
        %2681 = vmatpush1.msra.mxu0 0.0
        %2682 = vmatprep.subr.mxu0 0.0
        %2683 = vmatpush1.msra.mxu0 0.0
        %2684 = vmatprep.mubr.f32.mxu0 0.0
        %2685 = vmatmul.mubr.f32.gmra.mrb[0].mxu0 %v2618
        %v2686 = vpop.f32.mrb[0].mxu0
        %v2687 = vadd.f32 0.0, %v2686
        %v2688 = vpop.f32.mrb[0].mxu0
        %2689 = vdwg.mxu0
        %v2691 = vsel %vm271, %v269, 0
        %2693 = vmatprep.subr.mxu0 0.0
        %2694 = vmatpush1.msra.mxu0 %v1842
        %2695 = vmatprep.subr.mxu0 0.0
        %2696 = vmatpush1.msra.mxu0 %v1978
        %2697 = vmatprep.subr.mxu0 0.0
        %2698 = vmatpush1.msra.mxu0 %v2114
        %2699 = vmatprep.subr.mxu0 0.0
        %2700 = vmatpush1.msra.mxu0 %v2250
        %2701 = vmatprep.subr.mxu0 0.0
        %2702 = vmatpush1.msra.mxu0 0.0
        %2703 = vmatprep.subr.mxu0 0.0
        %2704 = vmatpush1.msra.mxu0 0.0
        %2705 = vmatprep.subr.mxu0 0.0
        %2706 = vmatpush1.msra.mxu0 0.0
        %2707 = vmatprep.subr.mxu0 0.0
        %2708 = vmatpush1.msra.mxu0 0.0
        %2709 = vmatprep.subr.mxu0 0.0
        %2710 = vmatpush1.msra.mxu0 0.0
        %2711 = vmatprep.subr.mxu0 0.0
        %2712 = vmatpush1.msra.mxu0 0.0
        %2713 = vmatprep.subr.mxu0 0.0
        %2714 = vmatpush1.msra.mxu0 0.0
        %2715 = vmatprep.subr.mxu0 0.0
        %2716 = vmatpush1.msra.mxu0 0.0
        %2717 = vmatprep.subr.mxu0 0.0
        %2718 = vmatpush1.msra.mxu0 0.0
        %2719 = vmatprep.subr.mxu0 0.0
        %2720 = vmatpush1.msra.mxu0 0.0
        %2721 = vmatprep.subr.mxu0 0.0
        %2722 = vmatpush1.msra.mxu0 0.0
        %2723 = vmatprep.subr.mxu0 0.0
        %2724 = vmatpush1.msra.mxu0 0.0
        %2725 = vmatprep.subr.mxu0 0.0
        %2726 = vmatpush1.msra.mxu0 0.0
        %2727 = vmatprep.subr.mxu0 0.0
        %2728 = vmatpush1.msra.mxu0 0.0
        %2729 = vmatprep.subr.mxu0 0.0
        %2730 = vmatpush1.msra.mxu0 0.0
        %2731 = vmatprep.subr.mxu0 0.0
        %2732 = vmatpush1.msra.mxu0 0.0
        %2733 = vmatprep.subr.mxu0 0.0
        %2734 = vmatpush1.msra.mxu0 0.0
        %2735 = vmatprep.subr.mxu0 0.0
        %2736 = vmatpush1.msra.mxu0 0.0
        %2737 = vmatprep.subr.mxu0 0.0
        %2738 = vmatpush1.msra.mxu0 0.0
        %2739 = vmatprep.subr.mxu0 0.0
        %2740 = vmatpush1.msra.mxu0 0.0
        %2741 = vmatprep.subr.mxu0 0.0
        %2742 = vmatpush1.msra.mxu0 0.0
        %2743 = vmatprep.subr.mxu0 0.0
        %2744 = vmatpush1.msra.mxu0 0.0
        %2745 = vmatprep.subr.mxu0 0.0
        %2746 = vmatpush1.msra.mxu0 0.0
        %2747 = vmatprep.subr.mxu0 0.0
        %2748 = vmatpush1.msra.mxu0 0.0
        %2749 = vmatprep.subr.mxu0 0.0
        %2750 = vmatpush1.msra.mxu0 0.0
        %2751 = vmatprep.subr.mxu0 0.0
        %2752 = vmatpush1.msra.mxu0 0.0
        %2753 = vmatprep.subr.mxu0 0.0
        %2754 = vmatpush1.msra.mxu0 0.0
        %2755 = vmatprep.subr.mxu0 0.0
        %2756 = vmatpush1.msra.mxu0 0.0
        %2757 = vmatprep.mubr.f32.mxu0 0.0
        %2758 = vmatmul.mubr.f32.gmra.mrb[0].mxu0 %v2691
        %v2759 = vpop.f32.mrb[0].mxu0
        %v2760 = vadd.f32 0.0, %v2759
        %v2761 = vpop.f32.mrb[0].mxu0
        %2762 = vdwg.mxu0
        %v2764 = vsel %vm271, %v270, 0
        %2766 = vmatprep.subr.mxu0 0.0
        %2767 = vmatpush1.msra.mxu0 %v1843
        %2768 = vmatprep.subr.mxu0 0.0
        %2769 = vmatpush1.msra.mxu0 %v1979
        %2770 = vmatprep.subr.mxu0 0.0
        %2771 = vmatpush1.msra.mxu0 %v2115
        %2772 = vmatprep.subr.mxu0 0.0
        %2773 = vmatpush1.msra.mxu0 %v2251
        %2774 = vmatprep.subr.mxu0 0.0
        %2775 = vmatpush1.msra.mxu0 0.0
        %2776 = vmatprep.subr.mxu0 0.0
        %2777 = vmatpush1.msra.mxu0 0.0
        %2778 = vmatprep.subr.mxu0 0.0
        %2779 = vmatpush1.msra.mxu0 0.0
        %2780 = vmatprep.subr.mxu0 0.0
        %2781 = vmatpush1.msra.mxu0 0.0
        %2782 = vmatprep.subr.mxu0 0.0
        %2783 = vmatpush1.msra.mxu0 0.0
        %2784 = vmatprep.subr.mxu0 0.0
        %2785 = vmatpush1.msra.mxu0 0.0
        %2786 = vmatprep.subr.mxu0 0.0
        %2787 = vmatpush1.msra.mxu0 0.0
        %2788 = vmatprep.subr.mxu0 0.0
        %2789 = vmatpush1.msra.mxu0 0.0
        %2790 = vmatprep.subr.mxu0 0.0
        %2791 = vmatpush1.msra.mxu0 0.0
        %2792 = vmatprep.subr.mxu0 0.0
        %2793 = vmatpush1.msra.mxu0 0.0
        %2794 = vmatprep.subr.mxu0 0.0
        %2795 = vmatpush1.msra.mxu0 0.0
        %2796 = vmatprep.subr.mxu0 0.0
        %2797 = vmatpush1.msra.mxu0 0.0
        %2798 = vmatprep.subr.mxu0 0.0
        %2799 = vmatpush1.msra.mxu0 0.0
        %2800 = vmatprep.subr.mxu0 0.0
        %2801 = vmatpush1.msra.mxu0 0.0
        %2802 = vmatprep.subr.mxu0 0.0
        %2803 = vmatpush1.msra.mxu0 0.0
        %2804 = vmatprep.subr.mxu0 0.0
        %2805 = vmatpush1.msra.mxu0 0.0
        %2806 = vmatprep.subr.mxu0 0.0
        %2807 = vmatpush1.msra.mxu0 0.0
        %2808 = vmatprep.subr.mxu0 0.0
        %2809 = vmatpush1.msra.mxu0 0.0
        %2810 = vmatprep.subr.mxu0 0.0
        %2811 = vmatpush1.msra.mxu0 0.0
        %2812 = vmatprep.subr.mxu0 0.0
        %2813 = vmatpush1.msra.mxu0 0.0
        %2814 = vmatprep.subr.mxu0 0.0
        %2815 = vmatpush1.msra.mxu0 0.0
        %2816 = vmatprep.subr.mxu0 0.0
        %2817 = vmatpush1.msra.mxu0 0.0
        %2818 = vmatprep.subr.mxu0 0.0
        %2819 = vmatpush1.msra.mxu0 0.0
        %2820 = vmatprep.subr.mxu0 0.0
        %2821 = vmatpush1.msra.mxu0 0.0
        %2822 = vmatprep.subr.mxu0 0.0
        %2823 = vmatpush1.msra.mxu0 0.0
        %2824 = vmatprep.subr.mxu0 0.0
        %2825 = vmatpush1.msra.mxu0 0.0
        %2826 = vmatprep.subr.mxu0 0.0
        %2827 = vmatpush1.msra.mxu0 0.0
        %2828 = vmatprep.subr.mxu0 0.0
        %2829 = vmatpush1.msra.mxu0 0.0
        %2830 = vmatprep.mubr.f32.mxu0 0.0
        %2831 = vmatmul.mubr.f32.gmra.mrb[0].mxu0 %v2764
        %v2832 = vpop.f32.mrb[0].mxu0
        %v2833 = vadd.f32 0.0, %v2832
        %v2834 = vpop.f32.mrb[0].mxu0
        %2835 = vdwg.mxu0
        %2836 = vxpose.xlu0.b32.start [1/16] %v2322, 128
        %2837 = vxpose.xlu0.b32.cont [2/16] 0.0, 128
        %2838 = vxpose.xlu0.b32.cont [3/16] 0.0, 128
        %2839 = vxpose.xlu0.b32.cont [4/16] 0.0, 128
        %2840 = vxpose.xlu0.b32.cont [5/16] 0.0, 128
        %2841 = vxpose.xlu0.b32.cont [6/16] 0.0, 128
        %2842 = vxpose.xlu0.b32.cont [7/16] 0.0, 128
        %2843 = vxpose.xlu0.b32.cont [8/16] 0.0, 128
        %2844 = vxpose.xlu0.b32.cont [9/16] 0.0, 128
        %2845 = vxpose.xlu0.b32.cont [10/16] 0.0, 128
        %2846 = vxpose.xlu0.b32.cont [11/16] 0.0, 128
        %2847 = vxpose.xlu0.b32.cont [12/16] 0.0, 128
        %2848 = vxpose.xlu0.b32.cont [13/16] 0.0, 128
        %2849 = vxpose.xlu0.b32.cont [14/16] 0.0, 128
        %2850 = vxpose.xlu0.b32.cont [15/16] 0.0, 128
        %2851 = vxpose.xlu0.b32.end [16/16] 0.0, 128
        %v2852 = vpop.trf.xlu0
        %v2853 = vpop.trf.xlu0
        %v2854 = vpop.trf.xlu0
        %v2855 = vpop.trf.xlu0
        %v2856 = vpop.trf.xlu0
        %v2857 = vpop.trf.xlu0
        %v2858 = vpop.trf.xlu0
        %v2859 = vpop.trf.xlu0
        %v2860 = vpop.trf.xlu0
        %v2861 = vpop.trf.xlu0
        %v2862 = vpop.trf.xlu0
        %v2863 = vpop.trf.xlu0
        %v2864 = vpop.trf.xlu0
        %v2865 = vpop.trf.xlu0
        %v2866 = vpop.trf.xlu0
        %v2867 = vpop.trf.xlu0
        %2868 = vxpose.xlu0.b32.start [1/16] %v2395, 128
        %2869 = vxpose.xlu0.b32.cont [2/16] 0.0, 128
        %2870 = vxpose.xlu0.b32.cont [3/16] 0.0, 128
        %2871 = vxpose.xlu0.b32.cont [4/16] 0.0, 128
        %2872 = vxpose.xlu0.b32.cont [5/16] 0.0, 128
        %2873 = vxpose.xlu0.b32.cont [6/16] 0.0, 128
        %2874 = vxpose.xlu0.b32.cont [7/16] 0.0, 128
        %2875 = vxpose.xlu0.b32.cont [8/16] 0.0, 128
        %2876 = vxpose.xlu0.b32.cont [9/16] 0.0, 128
        %2877 = vxpose.xlu0.b32.cont [10/16] 0.0, 128
        %2878 = vxpose.xlu0.b32.cont [11/16] 0.0, 128
        %2879 = vxpose.xlu0.b32.cont [12/16] 0.0, 128
        %2880 = vxpose.xlu0.b32.cont [13/16] 0.0, 128
        %2881 = vxpose.xlu0.b32.cont [14/16] 0.0, 128
        %2882 = vxpose.xlu0.b32.cont [15/16] 0.0, 128
        %2883 = vxpose.xlu0.b32.end [16/16] 0.0, 128
        %v2884 = vpop.trf.xlu0
        %v2885 = vpop.trf.xlu0
        %v2886 = vpop.trf.xlu0
        %v2887 = vpop.trf.xlu0
        %v2888 = vpop.trf.xlu0
        %v2889 = vpop.trf.xlu0
        %v2890 = vpop.trf.xlu0
        %v2891 = vpop.trf.xlu0
        %v2892 = vpop.trf.xlu0
        %v2893 = vpop.trf.xlu0
        %v2894 = vpop.trf.xlu0
        %v2895 = vpop.trf.xlu0
        %v2896 = vpop.trf.xlu0
        %v2897 = vpop.trf.xlu0
        %v2898 = vpop.trf.xlu0
        %v2899 = vpop.trf.xlu0
        %2900 = vxpose.xlu0.b32.start [1/16] %v2468, 128
        %2901 = vxpose.xlu0.b32.cont [2/16] 0.0, 128
        %2902 = vxpose.xlu0.b32.cont [3/16] 0.0, 128
        %2903 = vxpose.xlu0.b32.cont [4/16] 0.0, 128
        %2904 = vxpose.xlu0.b32.cont [5/16] 0.0, 128
        %2905 = vxpose.xlu0.b32.cont [6/16] 0.0, 128
        %2906 = vxpose.xlu0.b32.cont [7/16] 0.0, 128
        %2907 = vxpose.xlu0.b32.cont [8/16] 0.0, 128
        %2908 = vxpose.xlu0.b32.cont [9/16] 0.0, 128
        %2909 = vxpose.xlu0.b32.cont [10/16] 0.0, 128
        %2910 = vxpose.xlu0.b32.cont [11/16] 0.0, 128
        %2911 = vxpose.xlu0.b32.cont [12/16] 0.0, 128
        %2912 = vxpose.xlu0.b32.cont [13/16] 0.0, 128
        %2913 = vxpose.xlu0.b32.cont [14/16] 0.0, 128
        %2914 = vxpose.xlu0.b32.cont [15/16] 0.0, 128
        %2915 = vxpose.xlu0.b32.end [16/16] 0.0, 128
        %v2916 = vpop.trf.xlu0
        %v2917 = vpop.trf.xlu0
        %v2918 = vpop.trf.xlu0
        %v2919 = vpop.trf.xlu0
        %v2920 = vpop.trf.xlu0
        %v2921 = vpop.trf.xlu0
        %v2922 = vpop.trf.xlu0
        %v2923 = vpop.trf.xlu0
        %v2924 = vpop.trf.xlu0
        %v2925 = vpop.trf.xlu0
        %v2926 = vpop.trf.xlu0
        %v2927 = vpop.trf.xlu0
        %v2928 = vpop.trf.xlu0
        %v2929 = vpop.trf.xlu0
        %v2930 = vpop.trf.xlu0
        %v2931 = vpop.trf.xlu0
        %2932 = vxpose.xlu0.b32.start [1/16] %v2541, 128
        %2933 = vxpose.xlu0.b32.cont [2/16] 0.0, 128
        %2934 = vxpose.xlu0.b32.cont [3/16] 0.0, 128
        %2935 = vxpose.xlu0.b32.cont [4/16] 0.0, 128
        %2936 = vxpose.xlu0.b32.cont [5/16] 0.0, 128
        %2937 = vxpose.xlu0.b32.cont [6/16] 0.0, 128
        %2938 = vxpose.xlu0.b32.cont [7/16] 0.0, 128
        %2939 = vxpose.xlu0.b32.cont [8/16] 0.0, 128
        %2940 = vxpose.xlu0.b32.cont [9/16] 0.0, 128
        %2941 = vxpose.xlu0.b32.cont [10/16] 0.0, 128
        %2942 = vxpose.xlu0.b32.cont [11/16] 0.0, 128
        %2943 = vxpose.xlu0.b32.cont [12/16] 0.0, 128
        %2944 = vxpose.xlu0.b32.cont [13/16] 0.0, 128
        %2945 = vxpose.xlu0.b32.cont [14/16] 0.0, 128
        %2946 = vxpose.xlu0.b32.cont [15/16] 0.0, 128
        %2947 = vxpose.xlu0.b32.end [16/16] 0.0, 128
        %v2948 = vpop.trf.xlu0
        %v2949 = vpop.trf.xlu0
        %v2950 = vpop.trf.xlu0
        %v2951 = vpop.trf.xlu0
        %v2952 = vpop.trf.xlu0
        %v2953 = vpop.trf.xlu0
        %v2954 = vpop.trf.xlu0
        %v2955 = vpop.trf.xlu0
        %v2956 = vpop.trf.xlu0
        %v2957 = vpop.trf.xlu0
        %v2958 = vpop.trf.xlu0
        %v2959 = vpop.trf.xlu0
        %v2960 = vpop.trf.xlu0
        %v2961 = vpop.trf.xlu0
        %v2962 = vpop.trf.xlu0
        %v2963 = vpop.trf.xlu0
        %2964 = vxpose.xlu0.b32.start [1/16] %v2614, 128
        %2965 = vxpose.xlu0.b32.cont [2/16] 0.0, 128
        %2966 = vxpose.xlu0.b32.cont [3/16] 0.0, 128
        %2967 = vxpose.xlu0.b32.cont [4/16] 0.0, 128
        %2968 = vxpose.xlu0.b32.cont [5/16] 0.0, 128
        %2969 = vxpose.xlu0.b32.cont [6/16] 0.0, 128
        %2970 = vxpose.xlu0.b32.cont [7/16] 0.0, 128
        %2971 = vxpose.xlu0.b32.cont [8/16] 0.0, 128
        %2972 = vxpose.xlu0.b32.cont [9/16] 0.0, 128
        %2973 = vxpose.xlu0.b32.cont [10/16] 0.0, 128
        %2974 = vxpose.xlu0.b32.cont [11/16] 0.0, 128
        %2975 = vxpose.xlu0.b32.cont [12/16] 0.0, 128
        %2976 = vxpose.xlu0.b32.cont [13/16] 0.0, 128
        %2977 = vxpose.xlu0.b32.cont [14/16] 0.0, 128
        %2978 = vxpose.xlu0.b32.cont [15/16] 0.0, 128
        %2979 = vxpose.xlu0.b32.end [16/16] 0.0, 128
        %v2980 = vpop.trf.xlu0
        %v2981 = vpop.trf.xlu0
        %v2982 = vpop.trf.xlu0
        %v2983 = vpop.trf.xlu0
        %v2984 = vpop.trf.xlu0
        %v2985 = vpop.trf.xlu0
        %v2986 = vpop.trf.xlu0
        %v2987 = vpop.trf.xlu0
        %v2988 = vpop.trf.xlu0
        %v2989 = vpop.trf.xlu0
        %v2990 = vpop.trf.xlu0
        %v2991 = vpop.trf.xlu0
        %v2992 = vpop.trf.xlu0
        %v2993 = vpop.trf.xlu0
        %v2994 = vpop.trf.xlu0
        %v2995 = vpop.trf.xlu0
        %2996 = vxpose.xlu0.b32.start [1/16] %v2687, 128
        %2997 = vxpose.xlu0.b32.cont [2/16] 0.0, 128
        %2998 = vxpose.xlu0.b32.cont [3/16] 0.0, 128
        %2999 = vxpose.xlu0.b32.cont [4/16] 0.0, 128
        %3000 = vxpose.xlu0.b32.cont [5/16] 0.0, 128
        %3001 = vxpose.xlu0.b32.cont [6/16] 0.0, 128
        %3002 = vxpose.xlu0.b32.cont [7/16] 0.0, 128
        %3003 = vxpose.xlu0.b32.cont [8/16] 0.0, 128
        %3004 = vxpose.xlu0.b32.cont [9/16] 0.0, 128
        %3005 = vxpose.xlu0.b32.cont [10/16] 0.0, 128
        %3006 = vxpose.xlu0.b32.cont [11/16] 0.0, 128
        %3007 = vxpose.xlu0.b32.cont [12/16] 0.0, 128
        %3008 = vxpose.xlu0.b32.cont [13/16] 0.0, 128
        %3009 = vxpose.xlu0.b32.cont [14/16] 0.0, 128
        %3010 = vxpose.xlu0.b32.cont [15/16] 0.0, 128
        %3011 = vxpose.xlu0.b32.end [16/16] 0.0, 128
        %v3012 = vpop.trf.xlu0
        %v3013 = vpop.trf.xlu0
        %v3014 = vpop.trf.xlu0
        %v3015 = vpop.trf.xlu0
        %v3016 = vpop.trf.xlu0
        %v3017 = vpop.trf.xlu0
        %v3018 = vpop.trf.xlu0
        %v3019 = vpop.trf.xlu0
        %v3020 = vpop.trf.xlu0
        %v3021 = vpop.trf.xlu0
        %v3022 = vpop.trf.xlu0
        %v3023 = vpop.trf.xlu0
        %v3024 = vpop.trf.xlu0
        %v3025 = vpop.trf.xlu0
        %v3026 = vpop.trf.xlu0
        %v3027 = vpop.trf.xlu0
        %3028 = vxpose.xlu0.b32.start [1/16] %v2760, 128
        %3029 = vxpose.xlu0.b32.cont [2/16] 0.0, 128
        %3030 = vxpose.xlu0.b32.cont [3/16] 0.0, 128
        %3031 = vxpose.xlu0.b32.cont [4/16] 0.0, 128
        %3032 = vxpose.xlu0.b32.cont [5/16] 0.0, 128
        %3033 = vxpose.xlu0.b32.cont [6/16] 0.0, 128
        %3034 = vxpose.xlu0.b32.cont [7/16] 0.0, 128
        %3035 = vxpose.xlu0.b32.cont [8/16] 0.0, 128
        %3036 = vxpose.xlu0.b32.cont [9/16] 0.0, 128
        %3037 = vxpose.xlu0.b32.cont [10/16] 0.0, 128
        %3038 = vxpose.xlu0.b32.cont [11/16] 0.0, 128
        %3039 = vxpose.xlu0.b32.cont [12/16] 0.0, 128
        %3040 = vxpose.xlu0.b32.cont [13/16] 0.0, 128
        %3041 = vxpose.xlu0.b32.cont [14/16] 0.0, 128
        %3042 = vxpose.xlu0.b32.cont [15/16] 0.0, 128
        %3043 = vxpose.xlu0.b32.end [16/16] 0.0, 128
        %v3044 = vpop.trf.xlu0
        %v3045 = vpop.trf.xlu0
        %v3046 = vpop.trf.xlu0
        %v3047 = vpop.trf.xlu0
        %v3048 = vpop.trf.xlu0
        %v3049 = vpop.trf.xlu0
        %v3050 = vpop.trf.xlu0
        %v3051 = vpop.trf.xlu0
        %v3052 = vpop.trf.xlu0
        %v3053 = vpop.trf.xlu0
        %v3054 = vpop.trf.xlu0
        %v3055 = vpop.trf.xlu0
        %v3056 = vpop.trf.xlu0
        %v3057 = vpop.trf.xlu0
        %v3058 = vpop.trf.xlu0
        %v3059 = vpop.trf.xlu0
        %3060 = vxpose.xlu0.b32.start [1/16] %v2833, 128
        %3061 = vxpose.xlu0.b32.cont [2/16] 0.0, 128
        %3062 = vxpose.xlu0.b32.cont [3/16] 0.0, 128
        %3063 = vxpose.xlu0.b32.cont [4/16] 0.0, 128
        %3064 = vxpose.xlu0.b32.cont [5/16] 0.0, 128
        %3065 = vxpose.xlu0.b32.cont [6/16] 0.0, 128
        %3066 = vxpose.xlu0.b32.cont [7/16] 0.0, 128
        %3067 = vxpose.xlu0.b32.cont [8/16] 0.0, 128
        %3068 = vxpose.xlu0.b32.cont [9/16] 0.0, 128
        %3069 = vxpose.xlu0.b32.cont [10/16] 0.0, 128
        %3070 = vxpose.xlu0.b32.cont [11/16] 0.0, 128
        %3071 = vxpose.xlu0.b32.cont [12/16] 0.0, 128
        %3072 = vxpose.xlu0.b32.cont [13/16] 0.0, 128
        %3073 = vxpose.xlu0.b32.cont [14/16] 0.0, 128
        %3074 = vxpose.xlu0.b32.cont [15/16] 0.0, 128
        %3075 = vxpose.xlu0.b32.end [16/16] 0.0, 128
        %v3076 = vpop.trf.xlu0
        %v3077 = vpop.trf.xlu0
        %v3078 = vpop.trf.xlu0
        %v3079 = vpop.trf.xlu0
        %v3080 = vpop.trf.xlu0
        %v3081 = vpop.trf.xlu0
        %v3082 = vpop.trf.xlu0
        %v3083 = vpop.trf.xlu0
        %v3084 = vpop.trf.xlu0
        %v3085 = vpop.trf.xlu0
        %v3086 = vpop.trf.xlu0
        %v3087 = vpop.trf.xlu0
        %v3088 = vpop.trf.xlu0
        %v3089 = vpop.trf.xlu0
        %v3090 = vpop.trf.xlu0
        %v3091 = vpop.trf.xlu0
        %v3092 = vcombine.low %v2852, %v2916
        %v3094 = vunpack.c.l.s4 1983009808
        %v3095 = vunpack.c.0.s8 %v3094
        %v3096 = vlaneseq
        %v3097 = vshrl.u32 %v3096, 7
        %v3098 = vsub.s32 %v3095, %v3097
        %v3099 = vrot.slane %v3092, %v3098
        %v3100 = vcombine.low %v2884, %v2948
        %v3102 = vunpack.c.l.s4 1983009808
        %v3103 = vunpack.c.0.s8 %v3102
        %v3104 = vlaneseq
        %v3105 = vshrl.u32 %v3104, 7
        %v3106 = vsub.s32 %v3103, %v3105
        %v3107 = vrot.slane %v3100, %v3106
        %v3108 = vcombine.low %v2980, %v3044
        %v3110 = vunpack.c.l.s4 1983009808
        %v3111 = vunpack.c.0.s8 %v3110
        %v3112 = vlaneseq
        %v3113 = vshrl.u32 %v3112, 7
        %v3114 = vsub.s32 %v3111, %v3113
        %v3115 = vrot.slane %v3108, %v3114
        %v3116 = vcombine.low %v3012, %v3076
        %v3118 = vunpack.c.l.s4 1983009808
        %v3119 = vunpack.c.0.s8 %v3118
        %v3120 = vlaneseq
        %v3121 = vshrl.u32 %v3120, 7
        %v3122 = vsub.s32 %v3119, %v3121
        %v3123 = vrot.slane %v3116, %v3122
        %v3124 = vcombine.low %v3099, %v3107
        %v3126 = vunpack.c.l.s4 1934713408
        %v3127 = vunpack.c.0.s8 %v3126
        %v3128 = vlaneseq
        %v3129 = vshrl.u32 %v3128, 7
        %v3130 = vsub.s32 %v3127, %v3129
        %v3131 = vrot.slane %v3124, %v3130
        %v3132 = vcombine.low %v3115, %v3123
        %v3134 = vunpack.c.l.s4 1934713408
        %v3135 = vunpack.c.0.s8 %v3134
        %v3136 = vlaneseq
        %v3137 = vshrl.u32 %v3136, 7
        %v3138 = vsub.s32 %v3135, %v3137
        %v3139 = vrot.slane %v3132, %v3138
        %v3140 = vcombine.low %v3131, %v3139
        %v3141 = vcombine.high %v3131, %v3139
        %v3142 = vlaneseq
        %v3143 = vshrl.u32 %v3142, 7
        %v3144 = vsub.s32 0, %v3143
        %v3145 = vrot.slane %v348, %v3144
        %3147 = vbcast.lane.b32.xlu0 %v3145, 256
        %v3148 = vpop.permute.xlu0 %3147
        %v3149 = vlaneseq
        %v3150 = vshrl.u32 %v3149, 7
        %v3151 = vsub.s32 1, %v3150
        %v3152 = vrot.slane %v348, %v3151
        %3154 = vbcast.lane.b32.xlu0 %v3152, 256
        %v3155 = vpop.permute.xlu0 %3154
        %v3156 = vlaneseq
        %v3157 = vshrl.u32 %v3156, 7
        %v3158 = vsub.s32 2, %v3157
        %v3159 = vrot.slane %v348, %v3158
        %3161 = vbcast.lane.b32.xlu0 %v3159, 256
        %v3162 = vpop.permute.xlu0 %3161
        %v3163 = vlaneseq
        %v3164 = vshrl.u32 %v3163, 7
        %v3165 = vsub.s32 3, %v3164
        %v3166 = vrot.slane %v348, %v3165
        %3168 = vbcast.lane.b32.xlu0 %v3166, 256
        %v3169 = vpop.permute.xlu0 %3168
        %v3170 = vlaneseq
        %v3171 = vshrl.u32 %v3170, 7
        %v3172 = vsub.s32 4, %v3171
        %v3173 = vrot.slane %v348, %v3172
        %3175 = vbcast.lane.b32.xlu0 %v3173, 256
        %v3176 = vpop.permute.xlu0 %3175
        %v3177 = vlaneseq
        %v3178 = vshrl.u32 %v3177, 7
        %v3179 = vsub.s32 5, %v3178
        %v3180 = vrot.slane %v348, %v3179
        %3182 = vbcast.lane.b32.xlu0 %v3180, 256
        %v3183 = vpop.permute.xlu0 %3182
        %v3184 = vlaneseq
        %v3185 = vshrl.u32 %v3184, 7
        %v3186 = vsub.s32 6, %v3185
        %v3187 = vrot.slane %v348, %v3186
        %3189 = vbcast.lane.b32.xlu0 %v3187, 256
        %v3190 = vpop.permute.xlu0 %3189
        %v3191 = vlaneseq
        %v3192 = vshrl.u32 %v3191, 7
        %v3193 = vsub.s32 7, %v3192
        %v3194 = vrot.slane %v348, %v3193
        %3196 = vbcast.lane.b32.xlu0 %v3194, 256
        %v3197 = vpop.permute.xlu0 %3196
        %v3198 = vlaneseq
        %v3199 = vshrl.u32 %v3198, 7
        %v3200 = vsub.s32 0, %v3199
        %v3201 = vrot.slane %v353, %v3200
        %3203 = vbcast.lane.b32.xlu0 %v3201, 256
        %v3204 = vpop.permute.xlu0 %3203
        %v3205 = vlaneseq
        %v3206 = vshrl.u32 %v3205, 7
        %v3207 = vsub.s32 1, %v3206
        %v3208 = vrot.slane %v353, %v3207
        %3210 = vbcast.lane.b32.xlu0 %v3208, 256
        %v3211 = vpop.permute.xlu0 %3210
        %v3212 = vlaneseq
        %v3213 = vshrl.u32 %v3212, 7
        %v3214 = vsub.s32 2, %v3213
        %v3215 = vrot.slane %v353, %v3214
        %3217 = vbcast.lane.b32.xlu0 %v3215, 256
        %v3218 = vpop.permute.xlu0 %3217
        %v3219 = vlaneseq
        %v3220 = vshrl.u32 %v3219, 7
        %v3221 = vsub.s32 3, %v3220
        %v3222 = vrot.slane %v353, %v3221
        %3224 = vbcast.lane.b32.xlu0 %v3222, 256
        %v3225 = vpop.permute.xlu0 %3224
        %v3226 = vlaneseq
        %v3227 = vshrl.u32 %v3226, 7
        %v3228 = vsub.s32 4, %v3227
        %v3229 = vrot.slane %v353, %v3228
        %3231 = vbcast.lane.b32.xlu0 %v3229, 256
        %v3232 = vpop.permute.xlu0 %3231
        %v3233 = vlaneseq
        %v3234 = vshrl.u32 %v3233, 7
        %v3235 = vsub.s32 5, %v3234
        %v3236 = vrot.slane %v353, %v3235
        %3238 = vbcast.lane.b32.xlu0 %v3236, 256
        %v3239 = vpop.permute.xlu0 %3238
        %v3240 = vlaneseq
        %v3241 = vshrl.u32 %v3240, 7
        %v3242 = vsub.s32 6, %v3241
        %v3243 = vrot.slane %v353, %v3242
        %3245 = vbcast.lane.b32.xlu0 %v3243, 256
        %v3246 = vpop.permute.xlu0 %3245
        %v3247 = vlaneseq
        %v3248 = vshrl.u32 %v3247, 7
        %v3249 = vsub.s32 7, %v3248
        %v3250 = vrot.slane %v353, %v3249
        %3252 = vbcast.lane.b32.xlu0 %v3250, 256
        %v3253 = vpop.permute.xlu0 %3252
        %v3256 = vcombine.high %v3140, %v3140
        %v3258 = vunpack.c.l.s4 1966171168
        %v3259 = vunpack.c.0.s8 %v3258
        %v3260 = vlaneseq
        %v3261 = vshrl.u32 %v3260, 7
        %v3262 = vsub.s32 %v3259, %v3261
        %v3263 = vrot.slane %v3140, %v3262
        %v3265 = vunpack.c.l.s4 1966171168
        %v3266 = vunpack.c.0.s8 %v3265
        %v3267 = vlaneseq
        %v3268 = vshrl.u32 %v3267, 7
        %v3269 = vsub.s32 %v3266, %v3268
        %v3270 = vrot.slane %v3256, %v3269
        %v3271 = vcombine.high %v3263, %v3263
        %v3272 = vcombine.high %v3270, %v3270
        %v3274 = vunpack.c.l.s4 1966171168
        %v3275 = vunpack.c.0.s8 %v3274
        %v3276 = vlaneseq
        %v3277 = vshrl.u32 %v3276, 7
        %v3278 = vsub.s32 %v3275, %v3277
        %v3279 = vrot.slane %v3263, %v3278
        %v3281 = vunpack.c.l.s4 1966171168
        %v3282 = vunpack.c.0.s8 %v3281
        %v3283 = vlaneseq
        %v3284 = vshrl.u32 %v3283, 7
        %v3285 = vsub.s32 %v3282, %v3284
        %v3286 = vrot.slane %v3270, %v3285
        %v3288 = vunpack.c.l.s4 1966171168
        %v3289 = vunpack.c.0.s8 %v3288
        %v3290 = vlaneseq
        %v3291 = vshrl.u32 %v3290, 7
        %v3292 = vsub.s32 %v3289, %v3291
        %v3293 = vrot.slane %v3271, %v3292
        %v3295 = vunpack.c.l.s4 1966171168
        %v3296 = vunpack.c.0.s8 %v3295
        %v3297 = vlaneseq
        %v3298 = vshrl.u32 %v3297, 7
        %v3299 = vsub.s32 %v3296, %v3298
        %v3300 = vrot.slane %v3272, %v3299
        %v3301 = vcombine.high %v3279, %v3279
        %v3302 = vcombine.high %v3286, %v3286
        %v3303 = vcombine.high %v3293, %v3293
        %v3304 = vcombine.high %v3300, %v3300
        %v3305 = vcombine.high %v3141, %v3141
        %v3307 = vunpack.c.l.s4 1966171168
        %v3308 = vunpack.c.0.s8 %v3307
        %v3309 = vlaneseq
        %v3310 = vshrl.u32 %v3309, 7
        %v3311 = vsub.s32 %v3308, %v3310
        %v3312 = vrot.slane %v3141, %v3311
        %v3314 = vunpack.c.l.s4 1966171168
        %v3315 = vunpack.c.0.s8 %v3314
        %v3316 = vlaneseq
        %v3317 = vshrl.u32 %v3316, 7
        %v3318 = vsub.s32 %v3315, %v3317
        %v3319 = vrot.slane %v3305, %v3318
        %v3320 = vcombine.high %v3312, %v3312
        %v3321 = vcombine.high %v3319, %v3319
        %v3323 = vunpack.c.l.s4 1966171168
        %v3324 = vunpack.c.0.s8 %v3323
        %v3325 = vlaneseq
        %v3326 = vshrl.u32 %v3325, 7
        %v3327 = vsub.s32 %v3324, %v3326
        %v3328 = vrot.slane %v3312, %v3327
        %v3330 = vunpack.c.l.s4 1966171168
        %v3331 = vunpack.c.0.s8 %v3330
        %v3332 = vlaneseq
        %v3333 = vshrl.u32 %v3332, 7
        %v3334 = vsub.s32 %v3331, %v3333
        %v3335 = vrot.slane %v3319, %v3334
        %v3337 = vunpack.c.l.s4 1966171168
        %v3338 = vunpack.c.0.s8 %v3337
        %v3339 = vlaneseq
        %v3340 = vshrl.u32 %v3339, 7
        %v3341 = vsub.s32 %v3338, %v3340
        %v3342 = vrot.slane %v3320, %v3341
        %v3344 = vunpack.c.l.s4 1966171168
        %v3345 = vunpack.c.0.s8 %v3344
        %v3346 = vlaneseq
        %v3347 = vshrl.u32 %v3346, 7
        %v3348 = vsub.s32 %v3345, %v3347
        %v3349 = vrot.slane %v3321, %v3348
        %v3350 = vcombine.high %v3328, %v3328
        %v3351 = vcombine.high %v3335, %v3335
        %v3352 = vcombine.high %v3342, %v3342
        %v3353 = vcombine.high %v3349, %v3349
        %v3354 = vlaneseq
        %v3355 = vshrl.u32 %v3354, 7
        %v3356 = vsub.s32 0, %v3355
        %v3357 = vrot.slane %v3279, %v3356
        %v3358 = vlaneseq
        %v3359 = vshrl.u32 %v3358, 7
        %v3360 = vsub.s32 0, %v3359
        %v3361 = vrot.slane %v3293, %v3360
        %v3362 = vlaneseq
        %v3363 = vshrl.u32 %v3362, 7
        %v3364 = vsub.s32 0, %v3363
        %v3365 = vrot.slane %v3301, %v3364
        %v3366 = vlaneseq
        %v3367 = vshrl.u32 %v3366, 7
        %v3368 = vsub.s32 0, %v3367
        %v3369 = vrot.slane %v3303, %v3368
        %v3370 = vlaneseq
        %v3371 = vshrl.u32 %v3370, 7
        %v3372 = vsub.s32 0, %v3371
        %v3373 = vrot.slane %v3286, %v3372
        %v3374 = vlaneseq
        %v3375 = vshrl.u32 %v3374, 7
        %v3376 = vsub.s32 0, %v3375
        %v3377 = vrot.slane %v3300, %v3376
        %v3378 = vlaneseq
        %v3379 = vshrl.u32 %v3378, 7
        %v3380 = vsub.s32 0, %v3379
        %v3381 = vrot.slane %v3302, %v3380
        %v3382 = vlaneseq
        %v3383 = vshrl.u32 %v3382, 7
        %v3384 = vsub.s32 0, %v3383
        %v3385 = vrot.slane %v3304, %v3384
        %v3386 = vlaneseq
        %v3387 = vshrl.u32 %v3386, 7
        %v3388 = vsub.s32 0, %v3387
        %v3389 = vrot.slane %v3328, %v3388
        %v3390 = vlaneseq
        %v3391 = vshrl.u32 %v3390, 7
        %v3392 = vsub.s32 0, %v3391
        %v3393 = vrot.slane %v3342, %v3392
        %v3394 = vlaneseq
        %v3395 = vshrl.u32 %v3394, 7
        %v3396 = vsub.s32 0, %v3395
        %v3397 = vrot.slane %v3350, %v3396
        %v3398 = vlaneseq
        %v3399 = vshrl.u32 %v3398, 7
        %v3400 = vsub.s32 0, %v3399
        %v3401 = vrot.slane %v3352, %v3400
        %v3402 = vlaneseq
        %v3403 = vshrl.u32 %v3402, 7
        %v3404 = vsub.s32 0, %v3403
        %v3405 = vrot.slane %v3335, %v3404
        %v3406 = vlaneseq
        %v3407 = vshrl.u32 %v3406, 7
        %v3408 = vsub.s32 0, %v3407
        %v3409 = vrot.slane %v3349, %v3408
        %v3410 = vlaneseq
        %v3411 = vshrl.u32 %v3410, 7
        %v3412 = vsub.s32 0, %v3411
        %v3413 = vrot.slane %v3351, %v3412
        %v3414 = vlaneseq
        %v3415 = vshrl.u32 %v3414, 7
        %v3416 = vsub.s32 0, %v3415
        %v3417 = vrot.slane %v3353, %v3416
        %v3434 = vadd.f32 %v3148, %v3357
        %v3435 = vadd.f32 %v3155, %v3361
        %v3436 = vadd.f32 %v3162, %v3365
        %v3437 = vadd.f32 %v3169, %v3369
        %v3438 = vadd.f32 %v3176, %v3373
        %v3439 = vadd.f32 %v3183, %v3377
        %v3440 = vadd.f32 %v3190, %v3381
        %v3441 = vadd.f32 %v3197, %v3385
        %v3442 = vadd.f32 %v3204, %v3389
        %v3443 = vadd.f32 %v3211, %v3393
        %v3444 = vadd.f32 %v3218, %v3397
        %v3445 = vadd.f32 %v3225, %v3401
        %v3446 = vadd.f32 %v3232, %v3405
        %v3447 = vadd.f32 %v3239, %v3409
        %v3448 = vadd.f32 %v3246, %v3413
        %v3449 = vadd.f32 %v3253, %v3417
        %v3450 = vcombine.low %v3434, %v3436
        %v3451 = vcombine.high %v3434, %v3436
        %v3453 = vunpack.c.l.s4 1983009808
        %v3454 = vunpack.c.0.s8 %v3453
        %v3455 = vlaneseq
        %v3456 = vshrl.u32 %v3455, 7
        %v3457 = vsub.s32 %v3454, %v3456
        %v3458 = vrot.slane %v3450, %v3457
        %v3460 = vunpack.c.l.s4 1983009808
        %v3461 = vunpack.c.0.s8 %v3460
        %v3462 = vlaneseq
        %v3463 = vshrl.u32 %v3462, 7
        %v3464 = vsub.s32 %v3461, %v3463
        %v3465 = vrot.slane %v3451, %v3464
        %v3466 = vcombine.low %v3435, %v3437
        %v3467 = vcombine.high %v3435, %v3437
        %v3469 = vunpack.c.l.s4 1983009808
        %v3470 = vunpack.c.0.s8 %v3469
        %v3471 = vlaneseq
        %v3472 = vshrl.u32 %v3471, 7
        %v3473 = vsub.s32 %v3470, %v3472
        %v3474 = vrot.slane %v3466, %v3473
        %v3476 = vunpack.c.l.s4 1983009808
        %v3477 = vunpack.c.0.s8 %v3476
        %v3478 = vlaneseq
        %v3479 = vshrl.u32 %v3478, 7
        %v3480 = vsub.s32 %v3477, %v3479
        %v3481 = vrot.slane %v3467, %v3480
        %v3482 = vcombine.low %v3438, %v3440
        %v3483 = vcombine.high %v3438, %v3440
        %v3485 = vunpack.c.l.s4 1983009808
        %v3486 = vunpack.c.0.s8 %v3485
        %v3487 = vlaneseq
        %v3488 = vshrl.u32 %v3487, 7
        %v3489 = vsub.s32 %v3486, %v3488
        %v3490 = vrot.slane %v3482, %v3489
        %v3492 = vunpack.c.l.s4 1983009808
        %v3493 = vunpack.c.0.s8 %v3492
        %v3494 = vlaneseq
        %v3495 = vshrl.u32 %v3494, 7
        %v3496 = vsub.s32 %v3493, %v3495
        %v3497 = vrot.slane %v3483, %v3496
        %v3498 = vcombine.low %v3439, %v3441
        %v3499 = vcombine.high %v3439, %v3441
        %v3501 = vunpack.c.l.s4 1983009808
        %v3502 = vunpack.c.0.s8 %v3501
        %v3503 = vlaneseq
        %v3504 = vshrl.u32 %v3503, 7
        %v3505 = vsub.s32 %v3502, %v3504
        %v3506 = vrot.slane %v3498, %v3505
        %v3508 = vunpack.c.l.s4 1983009808
        %v3509 = vunpack.c.0.s8 %v3508
        %v3510 = vlaneseq
        %v3511 = vshrl.u32 %v3510, 7
        %v3512 = vsub.s32 %v3509, %v3511
        %v3513 = vrot.slane %v3499, %v3512
        %v3514 = vcombine.low %v3458, %v3474
        %v3515 = vcombine.high %v3458, %v3474
        %v3517 = vunpack.c.l.s4 1934713408
        %v3518 = vunpack.c.0.s8 %v3517
        %v3519 = vlaneseq
        %v3520 = vshrl.u32 %v3519, 7
        %v3521 = vsub.s32 %v3518, %v3520
        %v3522 = vrot.slane %v3514, %v3521
        %v3524 = vunpack.c.l.s4 1934713408
        %v3525 = vunpack.c.0.s8 %v3524
        %v3526 = vlaneseq
        %v3527 = vshrl.u32 %v3526, 7
        %v3528 = vsub.s32 %v3525, %v3527
        %v3529 = vrot.slane %v3515, %v3528
        %v3530 = vcombine.low %v3465, %v3481
        %v3531 = vcombine.high %v3465, %v3481
        %v3533 = vunpack.c.l.s4 1934713408
        %v3534 = vunpack.c.0.s8 %v3533
        %v3535 = vlaneseq
        %v3536 = vshrl.u32 %v3535, 7
        %v3537 = vsub.s32 %v3534, %v3536
        %v3538 = vrot.slane %v3530, %v3537
        %v3540 = vunpack.c.l.s4 1934713408
        %v3541 = vunpack.c.0.s8 %v3540
        %v3542 = vlaneseq
        %v3543 = vshrl.u32 %v3542, 7
        %v3544 = vsub.s32 %v3541, %v3543
        %v3545 = vrot.slane %v3531, %v3544
        %v3546 = vcombine.low %v3490, %v3506
        %v3547 = vcombine.high %v3490, %v3506
        %v3549 = vunpack.c.l.s4 1934713408
        %v3550 = vunpack.c.0.s8 %v3549
        %v3551 = vlaneseq
        %v3552 = vshrl.u32 %v3551, 7
        %v3553 = vsub.s32 %v3550, %v3552
        %v3554 = vrot.slane %v3546, %v3553
        %v3556 = vunpack.c.l.s4 1934713408
        %v3557 = vunpack.c.0.s8 %v3556
        %v3558 = vlaneseq
        %v3559 = vshrl.u32 %v3558, 7
        %v3560 = vsub.s32 %v3557, %v3559
        %v3561 = vrot.slane %v3547, %v3560
        %v3562 = vcombine.low %v3497, %v3513
        %v3563 = vcombine.high %v3497, %v3513
        %v3565 = vunpack.c.l.s4 1934713408
        %v3566 = vunpack.c.0.s8 %v3565
        %v3567 = vlaneseq
        %v3568 = vshrl.u32 %v3567, 7
        %v3569 = vsub.s32 %v3566, %v3568
        %v3570 = vrot.slane %v3562, %v3569
        %v3572 = vunpack.c.l.s4 1934713408
        %v3573 = vunpack.c.0.s8 %v3572
        %v3574 = vlaneseq
        %v3575 = vshrl.u32 %v3574, 7
        %v3576 = vsub.s32 %v3573, %v3575
        %v3577 = vrot.slane %v3563, %v3576
        %v3578 = vcombine.low %v3522, %v3554
        %v3579 = vcombine.high %v3522, %v3554
        %v3580 = vcombine.low %v3529, %v3561
        %v3581 = vcombine.high %v3529, %v3561
        %v3582 = vcombine.low %v3538, %v3570
        %v3583 = vcombine.high %v3538, %v3570
        %v3584 = vcombine.low %v3545, %v3577
        %v3585 = vcombine.high %v3545, %v3577
        %v3586 = vcombine.low %v3442, %v3444
        %v3587 = vcombine.high %v3442, %v3444
        %v3589 = vunpack.c.l.s4 1983009808
        %v3590 = vunpack.c.0.s8 %v3589
        %v3591 = vlaneseq
        %v3592 = vshrl.u32 %v3591, 7
        %v3593 = vsub.s32 %v3590, %v3592
        %v3594 = vrot.slane %v3586, %v3593
        %v3596 = vunpack.c.l.s4 1983009808
        %v3597 = vunpack.c.0.s8 %v3596
        %v3598 = vlaneseq
        %v3599 = vshrl.u32 %v3598, 7
        %v3600 = vsub.s32 %v3597, %v3599
        %v3601 = vrot.slane %v3587, %v3600
        %v3602 = vcombine.low %v3443, %v3445
        %v3603 = vcombine.high %v3443, %v3445
        %v3605 = vunpack.c.l.s4 1983009808
        %v3606 = vunpack.c.0.s8 %v3605
        %v3607 = vlaneseq
        %v3608 = vshrl.u32 %v3607, 7
        %v3609 = vsub.s32 %v3606, %v3608
        %v3610 = vrot.slane %v3602, %v3609
        %v3612 = vunpack.c.l.s4 1983009808
        %v3613 = vunpack.c.0.s8 %v3612
        %v3614 = vlaneseq
        %v3615 = vshrl.u32 %v3614, 7
        %v3616 = vsub.s32 %v3613, %v3615
        %v3617 = vrot.slane %v3603, %v3616
        %v3618 = vcombine.low %v3446, %v3448
        %v3619 = vcombine.high %v3446, %v3448
        %v3621 = vunpack.c.l.s4 1983009808
        %v3622 = vunpack.c.0.s8 %v3621
        %v3623 = vlaneseq
        %v3624 = vshrl.u32 %v3623, 7
        %v3625 = vsub.s32 %v3622, %v3624
        %v3626 = vrot.slane %v3618, %v3625
        %v3628 = vunpack.c.l.s4 1983009808
        %v3629 = vunpack.c.0.s8 %v3628
        %v3630 = vlaneseq
        %v3631 = vshrl.u32 %v3630, 7
        %v3632 = vsub.s32 %v3629, %v3631
        %v3633 = vrot.slane %v3619, %v3632
        %v3634 = vcombine.low %v3447, %v3449
        %v3635 = vcombine.high %v3447, %v3449
        %v3637 = vunpack.c.l.s4 1983009808
        %v3638 = vunpack.c.0.s8 %v3637
        %v3639 = vlaneseq
        %v3640 = vshrl.u32 %v3639, 7
        %v3641 = vsub.s32 %v3638, %v3640
        %v3642 = vrot.slane %v3634, %v3641
        %v3644 = vunpack.c.l.s4 1983009808
        %v3645 = vunpack.c.0.s8 %v3644
        %v3646 = vlaneseq
        %v3647 = vshrl.u32 %v3646, 7
        %v3648 = vsub.s32 %v3645, %v3647
        %v3649 = vrot.slane %v3635, %v3648
        %v3650 = vcombine.low %v3594, %v3610
        %v3651 = vcombine.high %v3594, %v3610
        %v3653 = vunpack.c.l.s4 1934713408
        %v3654 = vunpack.c.0.s8 %v3653
        %v3655 = vlaneseq
        %v3656 = vshrl.u32 %v3655, 7
        %v3657 = vsub.s32 %v3654, %v3656
        %v3658 = vrot.slane %v3650, %v3657
        %v3660 = vunpack.c.l.s4 1934713408
        %v3661 = vunpack.c.0.s8 %v3660
        %v3662 = vlaneseq
        %v3663 = vshrl.u32 %v3662, 7
        %v3664 = vsub.s32 %v3661, %v3663
        %v3665 = vrot.slane %v3651, %v3664
        %v3666 = vcombine.low %v3601, %v3617
        %v3667 = vcombine.high %v3601, %v3617
        %v3669 = vunpack.c.l.s4 1934713408
        %v3670 = vunpack.c.0.s8 %v3669
        %v3671 = vlaneseq
        %v3672 = vshrl.u32 %v3671, 7
        %v3673 = vsub.s32 %v3670, %v3672
        %v3674 = vrot.slane %v3666, %v3673
        %v3676 = vunpack.c.l.s4 1934713408
        %v3677 = vunpack.c.0.s8 %v3676
        %v3678 = vlaneseq
        %v3679 = vshrl.u32 %v3678, 7
        %v3680 = vsub.s32 %v3677, %v3679
        %v3681 = vrot.slane %v3667, %v3680
        %v3682 = vcombine.low %v3626, %v3642
        %v3683 = vcombine.high %v3626, %v3642
        %v3685 = vunpack.c.l.s4 1934713408
        %v3686 = vunpack.c.0.s8 %v3685
        %v3687 = vlaneseq
        %v3688 = vshrl.u32 %v3687, 7
        %v3689 = vsub.s32 %v3686, %v3688
        %v3690 = vrot.slane %v3682, %v3689
        %v3692 = vunpack.c.l.s4 1934713408
        %v3693 = vunpack.c.0.s8 %v3692
        %v3694 = vlaneseq
        %v3695 = vshrl.u32 %v3694, 7
        %v3696 = vsub.s32 %v3693, %v3695
        %v3697 = vrot.slane %v3683, %v3696
        %v3698 = vcombine.low %v3633, %v3649
        %v3699 = vcombine.high %v3633, %v3649
        %v3701 = vunpack.c.l.s4 1934713408
        %v3702 = vunpack.c.0.s8 %v3701
        %v3703 = vlaneseq
        %v3704 = vshrl.u32 %v3703, 7
        %v3705 = vsub.s32 %v3702, %v3704
        %v3706 = vrot.slane %v3698, %v3705
        %v3708 = vunpack.c.l.s4 1934713408
        %v3709 = vunpack.c.0.s8 %v3708
        %v3710 = vlaneseq
        %v3711 = vshrl.u32 %v3710, 7
        %v3712 = vsub.s32 %v3709, %v3711
        %v3713 = vrot.slane %v3699, %v3712
        %v3714 = vcombine.low %v3658, %v3690
        %v3715 = vcombine.high %v3658, %v3690
        %v3716 = vcombine.low %v3665, %v3697
        %v3717 = vcombine.high %v3665, %v3697
        %v3718 = vcombine.low %v3674, %v3706
        %v3719 = vcombine.high %v3674, %v3706
        %v3720 = vcombine.low %v3681, %v3713
        %v3721 = vcombine.high %v3681, %v3713
        %3724 = vrot.lane.b32.xlu0 %v3579, 8
        %v3725 = vpop.permute.xlu0 %3724
        %3726 = vrot.lane.b32.xlu0 %v3715, 8
        %v3727 = vpop.permute.xlu0 %3726
        %3732 = vrot.lane.b32.xlu0 %v3580, 16
        %v3733 = vpop.permute.xlu0 %3732
        %3734 = vrot.lane.b32.xlu0 %v3716, 16
        %v3735 = vpop.permute.xlu0 %3734
        %3740 = vrot.lane.b32.xlu0 %v3581, 24
        %v3741 = vpop.permute.xlu0 %3740
        %3742 = vrot.lane.b32.xlu0 %v3717, 24
        %v3743 = vpop.permute.xlu0 %3742
        %3748 = vrot.lane.b32.xlu0 %v3582, 32
        %v3749 = vpop.permute.xlu0 %3748
        %3750 = vrot.lane.b32.xlu0 %v3718, 32
        %v3751 = vpop.permute.xlu0 %3750
        %3756 = vrot.lane.b32.xlu0 %v3583, 40
        %v3757 = vpop.permute.xlu0 %3756
        %3758 = vrot.lane.b32.xlu0 %v3719, 40
        %v3759 = vpop.permute.xlu0 %3758
        %3764 = vrot.lane.b32.xlu0 %v3584, 48
        %v3765 = vpop.permute.xlu0 %3764
        %3766 = vrot.lane.b32.xlu0 %v3720, 48
        %v3767 = vpop.permute.xlu0 %3766
        %3772 = vrot.lane.b32.xlu0 %v3585, 56
        %v3773 = vpop.permute.xlu0 %3772
        %3774 = vrot.lane.b32.xlu0 %v3721, 56
        %v3775 = vpop.permute.xlu0 %3774
        %vm3778 = vcmask 64512
        %v3779 = vsel %vm3778, %v3578, %v3725
        %v3780 = vsel %vm3778, %v3714, %v3727
        %vm3781 = vcmask 130048
        %v3782 = vsel %vm3781, %v3779, %v3733
        %v3783 = vsel %vm3781, %v3780, %v3735
        %vm3784 = vcmask 195584
        %v3785 = vsel %vm3784, %v3782, %v3741
        %v3786 = vsel %vm3784, %v3783, %v3743
        %v3787 = vsel %vm271, %v3785, %v3749
        %v3788 = vsel %vm271, %v3786, %v3751
        %vm3789 = vcmask 326656
        %v3790 = vsel %vm3789, %v3787, %v3757
        %v3791 = vsel %vm3789, %v3788, %v3759
        %vm3792 = vcmask 392192
        %v3793 = vsel %vm3792, %v3790, %v3765
        %v3794 = vsel %vm3792, %v3791, %v3767
        %vm3795 = vcmask 457728
        %v3796 = vsel %vm3795, %v3793, %v3773
        %v3797 = vsel %vm3795, %v3794, %v3775
        %vm3798 = vcmask 523264
        %3799 = vst.msk [vmem:[%s257] sm:$0xff] %vm3798, %v3796
        %3800 = vst.msk [vmem:[%s257 + $0x8] sm:$0xff] %vm3798, %v3797
        %s3801 = sand.u32 %s120, 1
        %s3802 = scalar_lea.sflag [#allocation4], %s3801
        %s3803 = sand.u32 %s120, 1
        %s3804 = smul.addr %s3803, 16
        %s3805 = scalar_lea.vmem [#allocation8], %s3804
        // Predicated region
        $region45: #{tpu_custom_call.1} parent=31 // pred_check
          %p3806 = pneg %p130
        $region46: #{tpu_custom_call.1} parent=31 // pred_check_branch
          %3808 = sbr.rel (%p3806) target = $region48
        $region47: #{tpu_custom_call.1} parent=31 // pred_region
          %s3809 = smul.u32 2, %s27
          %s3811 = ssub.s32 256, 256
          %3812 = vsyncadd %s3802, %s3811
          %s3813 = smul.addr %s3809, 8
          %s3814 = sadd.s32 %s28, %s3813
          %s3815 = smul.addr %s3814, 128
          %s3816 = scalar_lea.hbm %s3, %s3815
          %s3817 = sshll.u32 %s3805, 4
          %s3818 = int_to_ptr.vmem [resolvable:$true] %s3817
          %3823 = dma.vmem_to_hbm [thread:$0]  %s3818, 256, %s3816, %s3802, 128, 1024, 8
        $region48: #{tpu_custom_call.1} parent=31 // pred_fallthru
          _
      $region32: #{tpu_custom_call.1} parent=5 // pred_fallthru
        _
      %p3824 = scmp.le.s32.totalorder 2, %s18
      // Predicated region
      $region49: #{tpu_custom_call.1} parent=5 // pred_check
        %p3825 = pneg %p3824
      $region50: #{tpu_custom_call.1} parent=5 // pred_check_branch
        %3827 = sbr.rel (%p3825) target = $region52
      $region51: #{tpu_custom_call.1} parent=5 // pred_region
        %s3828 = ssub.s32 %s18, 2
        // Predicated region
        $region53: #{tpu_custom_call.1} parent=51 // pred_check
          %p3829 = pneg %p136
        $region54: #{tpu_custom_call.1} parent=51 // pred_check_branch
          %3831 = sbr.rel (%p3829) target = $region56
        $region55: #{tpu_custom_call.1} parent=51 // pred_region
          %s3832 = sand.u32 %s121, 1
          %s3833 = scalar_lea.sflag [#allocation4], %s3832
          %s3834 = sand.u32 %s121, 1
          %s3835 = smul.addr %s3834, 16
          %s3836 = scalar_lea.vmem [#allocation8], %s3835
          %3837 = dma.done %s3833, 256
        $region56: #{tpu_custom_call.1} parent=51 // pred_fallthru
          _
      $region52: #{tpu_custom_call.1} parent=5 // pred_fallthru
        _
    $region6: #{tpu_custom_call.1} parent=1 // loop_footer
      %s22 = sadd.s32 1, %s18
    $region7: #{tpu_custom_call.1} parent=1 // loop_footer_branch
      %17 = sbr.rel target = $region3
    $region8: #{tpu_custom_call.1} parent=1 // loop_exit
      _
    %3838 = vsyncpa [#allocation3], 1
    %s3839 = scalar_lea.sflag [#allocation3], 1
    %3840 = vsyncpa %s3839, 1
    %3841 = vsyncpa [#allocation6], 1
    %s3842 = scalar_lea.sflag [#allocation6], 1
    %3843 = vsyncpa %s3842, 1
    %3844 = vsyncpa [#allocation4], 1
    %s3845 = scalar_lea.sflag [#allocation4], 1
    %3846 = vsyncpa %s3845, 1

</llo_original>
